<compile_context>
chip_gen: v7x
topology: tpu7x:2x2x1
jax: 0.10.0
libtpu: 0.0.40
codegen_flags: <defaults>
</compile_context>

<pallas_src>
import jax
import jax.numpy as jnp
from jax.experimental import pallas as pl
from jax.experimental.pallas import tpu as pltpu

_EPS = 1e-5


# --------------------------------------------------------------------------- #
# Kernels
# --------------------------------------------------------------------------- #
def _ln_f32(x):
    # One-pass LN stats: mean and mean-of-squares are independent reductions
    # (overlap on the 2 XLUs); var = E[x^2] - mu^2, clamped for safety.
    mu = jnp.mean(x, axis=-1, keepdims=True)
    ms = jnp.mean(x * x, axis=-1, keepdims=True)
    var = jnp.maximum(ms - mu * mu, 0.0)
    return (x - mu) * jax.lax.rsqrt(var + _EPS)


def feedforward_resident_kernel(x_ref, gamma_ref, beta_ref, w1_ref, b1_ref,
                                w2_ref, b2_ref, o_ref):
    # x_ref: (TN, D) bf16 token tile.  Params have constant index maps, so the
    # same VMEM block is reused across grid steps (no re-DMA).
    x = x_ref[...].astype(jnp.float32)                       # (TN, D) f32

    x_ln = _ln_f32(x) * gamma_ref[...] + beta_ref[...]       # f32 elementwise

    # dense_1 + ReLU: bf16 operands, f32 accumulation on the MXU
    h = jnp.dot(x_ln.astype(jnp.bfloat16), w1_ref[...],
                preferred_element_type=jnp.float32)          # (TN, H) f32
    h = jnp.maximum(h + b1_ref[...], 0.0)

    # dense_2: bf16 operands, f32 accumulation
    y = jnp.dot(h.astype(jnp.bfloat16), w2_ref[...],
                preferred_element_type=jnp.float32)          # (TN, D) f32
    y = y + b2_ref[...]

    # dropout (eval mode: identity) + residual in f32, bf16 store
    o_ref[...] = (x + y).astype(o_ref.dtype)


def feedforward_stream_kernel(x_ref, gamma_ref, beta_ref, w1_ref, b1_ref,
                              w2_ref, b2_ref, o_ref, xln_sc, acc_sc):
    # Streams the hidden dim: grid = (token tiles, H tiles).  W1 arrives as a
    # (D, th) column block, W2 as a (th, D) row block; acc_sc accumulates the
    # dense_2 partial products in f32 across the H axis.
    hi = pl.program_id(1)

    @pl.when(hi == 0)
    def _():
        x = x_ref[...].astype(jnp.float32)
        xln_sc[...] = _ln_f32(x) * gamma_ref[...] + beta_ref[...]
        acc_sc[...] = jnp.zeros_like(acc_sc)

    h = jnp.dot(xln_sc[...].astype(jnp.bfloat16), w1_ref[...],
                preferred_element_type=jnp.float32)          # (TN, th) f32
    h = jnp.maximum(h + b1_ref[...], 0.0)
    acc_sc[...] += jnp.dot(h.astype(jnp.bfloat16), w2_ref[...],
                           preferred_element_type=jnp.float32)

    @pl.when(hi == pl.num_programs(1) - 1)
    def _():
        y = acc_sc[...] + b2_ref[...]
        # dropout (eval mode: identity) + residual
        o_ref[...] = (x_ref[...].astype(jnp.float32) + y).astype(o_ref.dtype)


# --------------------------------------------------------------------------- #
# Wrapper helpers
# --------------------------------------------------------------------------- #
def _vmem_capacity_bytes():
    try:
        return int(pltpu.get_tpu_info().vmem_capacity_bytes)
    except Exception:
        return 128 << 20            # v5e/v6e default if the query is unavailable


def _vmem_clamp(cap_bytes):
    # Leave headroom for Mosaic internal scratch:
    #   128 MiB chips (v5e/v6e) -> 100 MiB; 64 MiB chips (v7x) -> 48 MiB.
    return int(min(cap_bytes - (16 << 20), 100 << 20))


def _choose_tile_n(n_tokens, requested):
    """Token-tile height: <= requested, multiple of 16 (bf16 sublane tile),
    divides N, leaves >=2 grid steps when there is enough work, and prefers an
    even step count so v7x's 2 TensorCores stay balanced."""
    assert n_tokens % 16 == 0, "token count must be a multiple of 16"
    cap = min(requested, n_tokens)
    if n_tokens >= 512:                       # enough work to split across 2 TCs
        cap = min(cap, n_tokens // 2)
    cap = max(16, (cap // 16) * 16)

    best_any, best_even = None, None
    t = cap
    while t >= 16:
        if n_tokens % t == 0:
            if best_any is None:
                best_any = t
            if best_even is None and (n_tokens // t) % 2 == 0:
                best_even = t
            if best_any is not None and best_even is not None:
                break
        t -= 16
    if best_any is None:
        return 16
    if best_even is not None and best_even * 2 >= best_any:
        return best_even                       # even megacore split, tile not <half
    return best_any


def _const_spec(shape, single_buffer):
    """BlockSpec for a parameter that is identical for every grid step."""
    ndim = len(shape)
    index_map = lambda *args: (0,) * ndim
    if single_buffer:
        # Constant-index blocks are never re-DMA'd; a single buffer halves
        # their resident VMEM (matters for W1/W2 under v7x's 64 MiB).
        return pl.BlockSpec(shape, index_map, pipeline_mode=pl.Buffered(1))
    return pl.BlockSpec(shape, index_map)


# --------------------------------------------------------------------------- #
# pallas_call builders
# --------------------------------------------------------------------------- #
def _call_resident(args, *, tn, grid_n, D, H, vmem_clamp, out_shape):
    def build(single_buffer_params):
        w_bufs = 1 if single_buffer_params else 2
        vmem_needed = (
            2 * 2 * tn * D * 2                 # x + out tiles, 2 bufs, bf16
            + w_bufs * 2 * D * H * 2           # W1 + W2, bf16
            + w_bufs * 8 * (3 * D + H) * 4     # gamma/beta/b2 + b1 (sublane-padded)
            + tn * D * (4 + 4 + 2 + 4)         # x f32, x_ln f32, x_ln bf16, y f32
            + tn * H * (4 + 2)                 # h f32 + h bf16
        )
        vmem_limit = int(min(max(int(1.25 * vmem_needed), 32 << 20), vmem_clamp))
        return pl.pallas_call(
            feedforward_resident_kernel,
            out_shape=out_shape,
            grid_spec=pltpu.PrefetchScalarGridSpec(
                num_scalar_prefetch=0,
                grid=(grid_n,),
                in_specs=[
                    pl.BlockSpec((tn, D), lambda i: (i, 0)),     # x tile (bf16)
                    _const_spec((1, D), single_buffer_params),   # gamma
                    _const_spec((1, D), single_buffer_params),   # beta
                    _const_spec((D, H), single_buffer_params),   # W1 (bf16)
                    _const_spec((1, H), single_buffer_params),   # b1
                    _const_spec((H, D), single_buffer_params),   # W2 (bf16)
                    _const_spec((1, D), single_buffer_params),   # b2
                ],
                out_specs=pl.BlockSpec((tn, D), lambda i: (i, 0)),
            ),
            compiler_params=pltpu.CompilerParams(
                dimension_semantics=("parallel",),
                vmem_limit_bytes=vmem_limit),
        )

    try:
        return build(True)(*args)
    except Exception:
        # pl.Buffered(1) not supported on this runtime -> default double-buffer.
        return build(False)(*args)


def _call_stream(args, *, tn, grid_n, D, H, th, vmem_clamp, out_shape):
    grid_h = H // th

    def build(single_buffer_params):
        p_bufs = 1 if single_buffer_params else 2
        vmem_needed = (
            2 * 2 * tn * D * 2                 # x + out tiles, 2 bufs, bf16
            + 2 * 2 * D * th * 2               # W1 + W2 tiles, 2 bufs, bf16
            + 2 * 8 * th * 4                   # b1 tile (padded), 2 bufs
            + p_bufs * 8 * 3 * D * 4           # gamma/beta/b2 (padded)
            + 2 * tn * D * 4                   # xln + acc scratch (f32)
            + tn * D * (4 + 2)                 # x f32 view + xln bf16
            + tn * th * (4 + 2)                # h f32 + h bf16
        )
        vmem_limit = int(min(max(int(1.25 * vmem_needed), 32 << 20), vmem_clamp))
        return pl.pallas_call(
            feedforward_stream_kernel,
            out_shape=out_shape,
            grid_spec=pltpu.PrefetchScalarGridSpec(
                num_scalar_prefetch=0,
                grid=(grid_n, grid_h),
                in_specs=[
                    pl.BlockSpec((tn, D), lambda i, h: (i, 0)),  # x tile (bf16)
                    _const_spec((1, D), single_buffer_params),   # gamma
                    _const_spec((1, D), single_buffer_params),   # beta
                    pl.BlockSpec((D, th), lambda i, h: (0, h)),  # W1 col tile
                    pl.BlockSpec((1, th), lambda i, h: (0, h)),  # b1 tile
                    pl.BlockSpec((th, D), lambda i, h: (h, 0)),  # W2 row tile
                    _const_spec((1, D), single_buffer_params),   # b2
                ],
                out_specs=pl.BlockSpec((tn, D), lambda i, h: (i, 0)),
                scratch_shapes=[pltpu.VMEM((tn, D), jnp.float32),   # x_ln
                                pltpu.VMEM((tn, D), jnp.float32)],  # accumulator
            ),
            compiler_params=pltpu.CompilerParams(
                dimension_semantics=("parallel", "arbitrary"),
                vmem_limit_bytes=vmem_limit),
        )

    try:
        return build(True)(*args)
    except Exception:
        return build(False)(*args)


# --------------------------------------------------------------------------- #
# Public entry point
# --------------------------------------------------------------------------- #
def feedforward(x, gamma, beta, w1, b1, w2, b2, *,
                tile_n=None, tile_h=None, force_stream=False):
    """x: (batch, seq, in_feats).  w1: (D, H), w2: (H, D).  Returns bf16."""
    B, S, D = x.shape
    H = w1.shape[1]
    N = B * S
    assert D % 128 == 0 and H % 128 == 0, "feature dims must be lane-dense (x128)"

    vmem_cap = _vmem_capacity_bytes()
    vmem_clamp = _vmem_clamp(vmem_cap)

    if tile_n is None:
        # Bigger tiles on 128-MiB chips (v5e/v6e); smaller on 64-MiB v7x so the
        # resident weights + (tn, H) hidden intermediate still fit.
        tile_n = 1024 if vmem_cap >= (96 << 20) else 512
    tn = _choose_tile_n(N, tile_n)
    grid_n = N // tn

    # bf16 activation I/O; elementwise math stays f32 inside the kernel.
    x2 = x.reshape(N, D).astype(jnp.bfloat16)
    gamma2 = gamma.reshape(1, D).astype(jnp.float32)
    beta2 = beta.reshape(1, D).astype(jnp.float32)
    b1_2 = b1.reshape(1, H).astype(jnp.float32)
    b2_2 = b2.reshape(1, D).astype(jnp.float32)
    w1_bf = w1.astype(jnp.bfloat16)
    w2_bf = w2.astype(jnp.bfloat16)

    out_shape = jax.ShapeDtypeStruct((N, D), jnp.bfloat16)
    args = (x2, gamma2, beta2, w1_bf, b1_2, w2_bf, b2_2)

    # Resident weights only if W1+W2 (bf16, single-buffered) fit comfortably;
    # otherwise stream the hidden dimension through VMEM.
    weight_bytes = 2 * D * H * 2
    use_stream = force_stream or (weight_bytes > vmem_clamp // 2)

    if not use_stream:
        out = _call_resident(args, tn=tn, grid_n=grid_n, D=D, H=H,
                             vmem_clamp=vmem_clamp, out_shape=out_shape)
    else:
        if tile_h is None:
            tile_h = 512
        th = min(max(128, (min(tile_h, H) // 128) * 128), H)
        while H % th:
            th -= 128
        out = _call_stream(args, tn=tn, grid_n=grid_n, D=D, H=H, th=th,
                           vmem_clamp=vmem_clamp, out_shape=out_shape)

    return out.reshape(B, S, D)


# --------------------------------------------------------------------------- #
# Pure-JAX reference (mirrors the bf16-matmul / f32-accumulate path)
# --------------------------------------------------------------------------- #
def reference(x, gamma, beta, w1, b1, w2, b2):
    mu = jnp.mean(x, axis=-1, keepdims=True)
    var = jnp.mean((x - mu) ** 2, axis=-1, keepdims=True)
    x_ln = (x - mu) * jax.lax.rsqrt(var + _EPS) * gamma + beta
    h = jnp.dot(x_ln.astype(jnp.bfloat16), w1.astype(jnp.bfloat16),
                preferred_element_type=jnp.float32) + b1
    h = jnp.maximum(h, 0.0)
    y = jnp.dot(h.astype(jnp.bfloat16), w2.astype(jnp.bfloat16),
                preferred_element_type=jnp.float32) + b2
    return x + y


if __name__ == "__main__":
    # Lane-dense shapes: D and H are multiples of 128 so stores are unmasked
    # and the MXU N/K dims are used; N = 512 tokens -> 2 even grid steps.
    batch, seq = 2, 256
    in_feats, hidden = 128, 256

    key = jax.random.PRNGKey(0)
    kx, kw1, kb1, kw2, kb2 = jax.random.split(key, 5)

    x = jax.random.normal(kx, (batch, seq, in_feats), dtype=jnp.float32)
    # PyTorch shapes: dense_1 (out,in), dense_2 (in,out); stored pre-transposed
    # here as (D, H) and (H, D) for row-major matmuls.
    w1 = jax.random.normal(kw1, (in_feats, hidden), dtype=jnp.float32) * 0.05
    b1 = jax.random.normal(kb1, (hidden,), dtype=jnp.float32) * 0.01
    w2 = jax.random.normal(kw2, (hidden, in_feats), dtype=jnp.float32) * 0.05
    b2 = jax.random.normal(kb2, (in_feats,), dtype=jnp.float32) * 0.01
    gamma = jnp.ones((in_feats,), dtype=jnp.float32)
    beta = jnp.zeros((in_feats,), dtype=jnp.float32)

    # Reference sees the same bf16-quantized activations the kernel ingests.
    x_q = x.astype(jnp.bfloat16).astype(jnp.float32)
    ref = reference(x_q, gamma, beta, w1, b1, w2, b2)

    # Resident-weight path (auto-selected at these shapes).
    out = feedforward(x, gamma, beta, w1, b1, w2, b2)
    out = jax.block_until_ready(out)
    assert out.shape == x.shape and out.dtype == jnp.bfloat16
    assert jnp.allclose(out.astype(jnp.float32), ref, atol=3e-2, rtol=3e-2), \
        "resident-path mismatch vs reference"

    # H-streaming path (production D/H fallback), forced here to exercise it.
    out_s = feedforward(x, gamma, beta, w1, b1, w2, b2,
                        force_stream=True, tile_h=128)
    out_s = jax.block_until_ready(out_s)
    assert out_s.shape == x.shape and out_s.dtype == jnp.bfloat16
    assert jnp.allclose(out_s.astype(jnp.float32), ref, atol=3e-2, rtol=3e-2), \
        "streaming-path mismatch vs reference"

    print("KERNEL_OK")
</pallas_src>

<mosaic_0001>
module attributes {stable_mosaic.version = 11 : i64} {
  func.func @feedforward_resident_kernel(%arg0: i32, %arg1: memref<256x128xbf16, #tpu.memory_space<vmem>>, %arg2: memref<1x128xf32, #tpu.memory_space<vmem>>, %arg3: memref<1x128xf32, #tpu.memory_space<vmem>>, %arg4: memref<128x256xbf16, #tpu.memory_space<vmem>>, %arg5: memref<1x256xf32, #tpu.memory_space<vmem>>, %arg6: memref<256x128xbf16, #tpu.memory_space<vmem>>, %arg7: memref<1x128xf32, #tpu.memory_space<vmem>>, %arg8: memref<256x128xbf16, #tpu.memory_space<vmem>>) attributes {dimension_semantics = [#tpu.dimension_semantics<parallel>], iteration_bounds = array<i64: 2>, scalar_prefetch = 0 : i64, scratch_operands = 0 : i64, tpu.core_type = #tpu.core_type<tc>, window_params = [{transform_indices = @transform_0, window_bounds = array<i64: 256, 128>}, {pipeline_mode = #tpu.pipeline_mode<synchronous>, transform_indices = @transform_1, window_bounds = array<i64: 1, 128>}, {pipeline_mode = #tpu.pipeline_mode<synchronous>, transform_indices = @transform_2, window_bounds = array<i64: 1, 128>}, {pipeline_mode = #tpu.pipeline_mode<synchronous>, transform_indices = @transform_3, window_bounds = array<i64: 128, 256>}, {pipeline_mode = #tpu.pipeline_mode<synchronous>, transform_indices = @transform_4, window_bounds = array<i64: 1, 256>}, {pipeline_mode = #tpu.pipeline_mode<synchronous>, transform_indices = @transform_5, window_bounds = array<i64: 256, 128>}, {pipeline_mode = #tpu.pipeline_mode<synchronous>, transform_indices = @transform_6, window_bounds = array<i64: 1, 128>}, {transform_indices = @transform_7, window_bounds = array<i64: 256, 128>}]} {
    %c0 = arith.constant 0 : index
    %c0_0 = arith.constant 0 : index
    %0 = vector.load %arg1[%c0, %c0_0] : memref<256x128xbf16, #tpu.memory_space<vmem>>, vector<256x128xbf16>
    %1 = arith.extf %0 : vector<256x128xbf16> to vector<256x128xf32>
    %cst = arith.constant dense<0.000000e+00> : vector<256xf32>
    %2 = vector.multi_reduction <add>, %1, %cst [1] : vector<256x128xf32> to vector<256xf32>
    %3 = vector.shape_cast %2 : vector<256xf32> to vector<256x1xf32>
    %cst_1 = arith.constant 1.280000e+02 : f32
    %4 = vector.broadcast %cst_1 : f32 to vector<256x1xf32>
    %5 = arith.divf %3, %4 : vector<256x1xf32>
    %6 = arith.mulf %1, %1 : vector<256x128xf32>
    %cst_2 = arith.constant dense<0.000000e+00> : vector<256xf32>
    %7 = vector.multi_reduction <add>, %6, %cst_2 [1] : vector<256x128xf32> to vector<256xf32>
    %8 = vector.shape_cast %7 : vector<256xf32> to vector<256x1xf32>
    %cst_3 = arith.constant 1.280000e+02 : f32
    %9 = vector.broadcast %cst_3 : f32 to vector<256x1xf32>
    %10 = arith.divf %8, %9 : vector<256x1xf32>
    %11 = arith.mulf %5, %5 : vector<256x1xf32>
    %12 = arith.subf %10, %11 : vector<256x1xf32>
    %cst_4 = arith.constant 0.000000e+00 : f32
    %13 = vector.broadcast %cst_4 : f32 to vector<256x1xf32>
    %14 = arith.maximumf %12, %13 : vector<256x1xf32>
    %15 = vector.broadcast %5 : vector<256x1xf32> to vector<256x128xf32>
    %16 = arith.subf %1, %15 : vector<256x128xf32>
    %cst_5 = arith.constant 9.99999974E-6 : f32
    %17 = vector.broadcast %cst_5 : f32 to vector<256x1xf32>
    %18 = arith.addf %14, %17 : vector<256x1xf32>
    %19 = math.rsqrt %18 : vector<256x1xf32>
    %20 = vector.broadcast %19 : vector<256x1xf32> to vector<256x128xf32>
    %21 = arith.mulf %16, %20 : vector<256x128xf32>
    %c0_6 = arith.constant 0 : index
    %c0_7 = arith.constant 0 : index
    %22 = vector.load %arg2[%c0_6, %c0_7] : memref<1x128xf32, #tpu.memory_space<vmem>>, vector<1x128xf32>
    %23 = vector.broadcast %22 : vector<1x128xf32> to vector<256x128xf32>
    %24 = arith.mulf %21, %23 : vector<256x128xf32>
    %c0_8 = arith.constant 0 : index
    %c0_9 = arith.constant 0 : index
    %25 = vector.load %arg3[%c0_8, %c0_9] : memref<1x128xf32, #tpu.memory_space<vmem>>, vector<1x128xf32>
    %26 = vector.broadcast %25 : vector<1x128xf32> to vector<256x128xf32>
    %27 = arith.addf %24, %26 : vector<256x128xf32>
    %28 = arith.truncf %27 : vector<256x128xf32> to vector<256x128xbf16>
    %c0_10 = arith.constant 0 : index
    %c0_11 = arith.constant 0 : index
    %29 = vector.load %arg4[%c0_10, %c0_11] : memref<128x256xbf16, #tpu.memory_space<vmem>>, vector<128x256xbf16>
    %cst_12 = arith.constant dense<0.000000e+00> : vector<256x256xf32>
    %30 = tpu.matmul %28, %29, %cst_12 {dimension_numbers = #tpu.dot_dimension_numbers<[1], [0], [0], [1], [0, 0, 1, 1], [], []>} : vector<256x128xbf16>, vector<128x256xbf16>, vector<256x256xf32> -> vector<256x256xf32>
    %c0_13 = arith.constant 0 : index
    %c0_14 = arith.constant 0 : index
    %31 = vector.load %arg5[%c0_13, %c0_14] : memref<1x256xf32, #tpu.memory_space<vmem>>, vector<1x256xf32>
    %32 = vector.broadcast %31 : vector<1x256xf32> to vector<256x256xf32>
    %33 = arith.addf %30, %32 : vector<256x256xf32>
    %cst_15 = arith.constant 0.000000e+00 : f32
    %34 = vector.broadcast %cst_15 : f32 to vector<256x256xf32>
    %35 = arith.maximumf %33, %34 : vector<256x256xf32>
    %36 = arith.truncf %35 : vector<256x256xf32> to vector<256x256xbf16>
    %c0_16 = arith.constant 0 : index
    %c0_17 = arith.constant 0 : index
    %37 = vector.load %arg6[%c0_16, %c0_17] : memref<256x128xbf16, #tpu.memory_space<vmem>>, vector<256x128xbf16>
    %cst_18 = arith.constant dense<0.000000e+00> : vector<256x128xf32>
    %38 = tpu.matmul %36, %37, %cst_18 {dimension_numbers = #tpu.dot_dimension_numbers<[1], [0], [0], [1], [0, 0, 1, 1], [], []>} : vector<256x256xbf16>, vector<256x128xbf16>, vector<256x128xf32> -> vector<256x128xf32>
    %c0_19 = arith.constant 0 : index
    %c0_20 = arith.constant 0 : index
    %39 = vector.load %arg7[%c0_19, %c0_20] : memref<1x128xf32, #tpu.memory_space<vmem>>, vector<1x128xf32>
    %40 = vector.broadcast %39 : vector<1x128xf32> to vector<256x128xf32>
    %41 = arith.addf %38, %40 : vector<256x128xf32>
    %42 = arith.addf %1, %41 : vector<256x128xf32>
    %43 = arith.truncf %42 : vector<256x128xf32> to vector<256x128xbf16>
    %c0_21 = arith.constant 0 : index
    %c0_22 = arith.constant 0 : index
    %44 = vector.load %arg8[%c0_21, %c0_22] : memref<256x128xbf16, #tpu.memory_space<vmem>>, vector<256x128xbf16>
    tpu.vector_store %arg8[%c0_21, %c0_22], %43 {strides = array<i32>} : memref<256x128xbf16, #tpu.memory_space<vmem>>, vector<256x128xbf16>,
    return
  }
  func.func @transform_0(%arg0: i32) -> (i32, i32) {
    %c0_i32 = arith.constant 0 : i32
    %c0_i32_0 = arith.constant 0 : i32
    return %arg0, %c0_i32 : i32, i32
  }
  func.func @transform_1(%arg0: i32) -> (i32, i32) {
    %c0_i32 = arith.constant 0 : i32
    %c0_i32_0 = arith.constant 0 : i32
    %c0_i32_1 = arith.constant 0 : i32
    return %c0_i32, %c0_i32_0 : i32, i32
  }
  func.func @transform_2(%arg0: i32) -> (i32, i32) {
    %c0_i32 = arith.constant 0 : i32
    %c0_i32_0 = arith.constant 0 : i32
    %c0_i32_1 = arith.constant 0 : i32
    return %c0_i32, %c0_i32_0 : i32, i32
  }
  func.func @transform_3(%arg0: i32) -> (i32, i32) {
    %c0_i32 = arith.constant 0 : i32
    %c0_i32_0 = arith.constant 0 : i32
    %c0_i32_1 = arith.constant 0 : i32
    return %c0_i32, %c0_i32_0 : i32, i32
  }
  func.func @transform_4(%arg0: i32) -> (i32, i32) {
    %c0_i32 = arith.constant 0 : i32
    %c0_i32_0 = arith.constant 0 : i32
    %c0_i32_1 = arith.constant 0 : i32
    return %c0_i32, %c0_i32_0 : i32, i32
  }
  func.func @transform_5(%arg0: i32) -> (i32, i32) {
    %c0_i32 = arith.constant 0 : i32
    %c0_i32_0 = arith.constant 0 : i32
    %c0_i32_1 = arith.constant 0 : i32
    return %c0_i32, %c0_i32_0 : i32, i32
  }
  func.func @transform_6(%arg0: i32) -> (i32, i32) {
    %c0_i32 = arith.constant 0 : i32
    %c0_i32_0 = arith.constant 0 : i32
    %c0_i32_1 = arith.constant 0 : i32
    return %c0_i32, %c0_i32_0 : i32, i32
  }
  func.func @transform_7(%arg0: i32) -> (i32, i32) {
    %c0_i32 = arith.constant 0 : i32
    %c0_i32_0 = arith.constant 0 : i32
    return %arg0, %c0_i32 : i32, i32
  }
}

module attributes {stable_mosaic.version = 11 : i64} {
  func.func @feedforward_resident_kernel(%arg0: i32, %arg1: memref<256x128xbf16, #tpu.memory_space<vmem>>, %arg2: memref<1x128xf32, #tpu.memory_space<vmem>>, %arg3: memref<1x128xf32, #tpu.memory_space<vmem>>, %arg4: memref<128x256xbf16, #tpu.memory_space<vmem>>, %arg5: memref<1x256xf32, #tpu.memory_space<vmem>>, %arg6: memref<256x128xbf16, #tpu.memory_space<vmem>>, %arg7: memref<1x128xf32, #tpu.memory_space<vmem>>, %arg8: memref<256x128xbf16, #tpu.memory_space<vmem>>) attributes {dimension_semantics = [#tpu.dimension_semantics<parallel>], iteration_bounds = array<i64: 2>, scalar_prefetch = 0 : i64, scratch_operands = 0 : i64, tpu.core_type = #tpu.core_type<tc>, window_params = [{transform_indices = @transform_0, window_bounds = array<i64: 256, 128>}, {pipeline_mode = #tpu.pipeline_mode<synchronous>, transform_indices = @transform_1, window_bounds = array<i64: 1, 128>}, {pipeline_mode = #tpu.pipeline_mode<synchronous>, transform_indices = @transform_2, window_bounds = array<i64: 1, 128>}, {pipeline_mode = #tpu.pipeline_mode<synchronous>, transform_indices = @transform_3, window_bounds = array<i64: 128, 256>}, {pipeline_mode = #tpu.pipeline_mode<synchronous>, transform_indices = @transform_4, window_bounds = array<i64: 1, 256>}, {pipeline_mode = #tpu.pipeline_mode<synchronous>, transform_indices = @transform_5, window_bounds = array<i64: 256, 128>}, {pipeline_mode = #tpu.pipeline_mode<synchronous>, transform_indices = @transform_6, window_bounds = array<i64: 1, 128>}, {transform_indices = @transform_7, window_bounds = array<i64: 256, 128>}]} {
    %c0 = arith.constant 0 : index
    %c0_0 = arith.constant 0 : index
    %0 = vector.load %arg1[%c0, %c0_0] : memref<256x128xbf16, #tpu.memory_space<vmem>>, vector<256x128xbf16>
    %1 = arith.extf %0 : vector<256x128xbf16> to vector<256x128xf32>
    %cst = arith.constant dense<0.000000e+00> : vector<256xf32>
    %2 = vector.multi_reduction <add>, %1, %cst [1] : vector<256x128xf32> to vector<256xf32>
    %3 = vector.shape_cast %2 : vector<256xf32> to vector<256x1xf32>
    %cst_1 = arith.constant 1.280000e+02 : f32
    %4 = vector.broadcast %cst_1 : f32 to vector<256x1xf32>
    %5 = arith.divf %3, %4 : vector<256x1xf32>
    %6 = arith.mulf %1, %1 : vector<256x128xf32>
    %cst_2 = arith.constant dense<0.000000e+00> : vector<256xf32>
    %7 = vector.multi_reduction <add>, %6, %cst_2 [1] : vector<256x128xf32> to vector<256xf32>
    %8 = vector.shape_cast %7 : vector<256xf32> to vector<256x1xf32>
    %cst_3 = arith.constant 1.280000e+02 : f32
    %9 = vector.broadcast %cst_3 : f32 to vector<256x1xf32>
    %10 = arith.divf %8, %9 : vector<256x1xf32>
    %11 = arith.mulf %5, %5 : vector<256x1xf32>
    %12 = arith.subf %10, %11 : vector<256x1xf32>
    %cst_4 = arith.constant 0.000000e+00 : f32
    %13 = vector.broadcast %cst_4 : f32 to vector<256x1xf32>
    %14 = arith.maximumf %12, %13 : vector<256x1xf32>
    %15 = vector.broadcast %5 : vector<256x1xf32> to vector<256x128xf32>
    %16 = arith.subf %1, %15 : vector<256x128xf32>
    %cst_5 = arith.constant 9.99999974E-6 : f32
    %17 = vector.broadcast %cst_5 : f32 to vector<256x1xf32>
    %18 = arith.addf %14, %17 : vector<256x1xf32>
    %19 = math.rsqrt %18 : vector<256x1xf32>
    %20 = vector.broadcast %19 : vector<256x1xf32> to vector<256x128xf32>
    %21 = arith.mulf %16, %20 : vector<256x128xf32>
    %c0_6 = arith.constant 0 : index
    %c0_7 = arith.constant 0 : index
    %22 = vector.load %arg2[%c0_6, %c0_7] : memref<1x128xf32, #tpu.memory_space<vmem>>, vector<1x128xf32>
    %23 = vector.broadcast %22 : vector<1x128xf32> to vector<256x128xf32>
    %24 = arith.mulf %21, %23 : vector<256x128xf32>
    %c0_8 = arith.constant 0 : index
    %c0_9 = arith.constant 0 : index
    %25 = vector.load %arg3[%c0_8, %c0_9] : memref<1x128xf32, #tpu.memory_space<vmem>>, vector<1x128xf32>
    %26 = vector.broadcast %25 : vector<1x128xf32> to vector<256x128xf32>
    %27 = arith.addf %24, %26 : vector<256x128xf32>
    %28 = arith.truncf %27 : vector<256x128xf32> to vector<256x128xbf16>
    %c0_10 = arith.constant 0 : index
    %c0_11 = arith.constant 0 : index
    %29 = vector.load %arg4[%c0_10, %c0_11] : memref<128x256xbf16, #tpu.memory_space<vmem>>, vector<128x256xbf16>
    %cst_12 = arith.constant dense<0.000000e+00> : vector<256x256xf32>
    %30 = tpu.matmul %28, %29, %cst_12 {dimension_numbers = #tpu.dot_dimension_numbers<[1], [0], [0], [1], [0, 0, 1, 1], [], []>} : vector<256x128xbf16>, vector<128x256xbf16>, vector<256x256xf32> -> vector<256x256xf32>
    %c0_13 = arith.constant 0 : index
    %c0_14 = arith.constant 0 : index
    %31 = vector.load %arg5[%c0_13, %c0_14] : memref<1x256xf32, #tpu.memory_space<vmem>>, vector<1x256xf32>
    %32 = vector.broadcast %31 : vector<1x256xf32> to vector<256x256xf32>
    %33 = arith.addf %30, %32 : vector<256x256xf32>
    %cst_15 = arith.constant 0.000000e+00 : f32
    %34 = vector.broadcast %cst_15 : f32 to vector<256x256xf32>
    %35 = arith.maximumf %33, %34 : vector<256x256xf32>
    %36 = arith.truncf %35 : vector<256x256xf32> to vector<256x256xbf16>
    %c0_16 = arith.constant 0 : index
    %c0_17 = arith.constant 0 : index
    %37 = vector.load %arg6[%c0_16, %c0_17] : memref<256x128xbf16, #tpu.memory_space<vmem>>, vector<256x128xbf16>
    %cst_18 = arith.constant dense<0.000000e+00> : vector<256x128xf32>
    %38 = tpu.matmul %36, %37, %cst_18 {dimension_numbers = #tpu.dot_dimension_numbers<[1], [0], [0], [1], [0, 0, 1, 1], [], []>} : vector<256x256xbf16>, vector<256x128xbf16>, vector<256x128xf32> -> vector<256x128xf32>
    %c0_19 = arith.constant 0 : index
    %c0_20 = arith.constant 0 : index
    %39 = vector.load %arg7[%c0_19, %c0_20] : memref<1x128xf32, #tpu.memory_space<vmem>>, vector<1x128xf32>
    %40 = vector.broadcast %39 : vector<1x128xf32> to vector<256x128xf32>
    %41 = arith.addf %38, %40 : vector<256x128xf32>
    %42 = arith.addf %1, %41 : vector<256x128xf32>
    %43 = arith.truncf %42 : vector<256x128xf32> to vector<256x128xbf16>
    %c0_21 = arith.constant 0 : index
    %c0_22 = arith.constant 0 : index
    %44 = vector.load %arg8[%c0_21, %c0_22] : memref<256x128xbf16, #tpu.memory_space<vmem>>, vector<256x128xbf16>
    tpu.vector_store %arg8[%c0_21, %c0_22], %43 {strides = array<i32>} : memref<256x128xbf16, #tpu.memory_space<vmem>>, vector<256x128xbf16>,
    return
  }
  func.func @transform_0(%arg0: i32) -> (i32, i32) {
    %c0_i32 = arith.constant 0 : i32
    %c0_i32_0 = arith.constant 0 : i32
    return %arg0, %c0_i32 : i32, i32
  }
  func.func @transform_1(%arg0: i32) -> (i32, i32) {
    %c0_i32 = arith.constant 0 : i32
    %c0_i32_0 = arith.constant 0 : i32
    %c0_i32_1 = arith.constant 0 : i32
    return %c0_i32, %c0_i32_0 : i32, i32
  }
  func.func @transform_2(%arg0: i32) -> (i32, i32) {
    %c0_i32 = arith.constant 0 : i32
    %c0_i32_0 = arith.constant 0 : i32
    %c0_i32_1 = arith.constant 0 : i32
    return %c0_i32, %c0_i32_0 : i32, i32
  }
  func.func @transform_3(%arg0: i32) -> (i32, i32) {
    %c0_i32 = arith.constant 0 : i32
    %c0_i32_0 = arith.constant 0 : i32
    %c0_i32_1 = arith.constant 0 : i32
    return %c0_i32, %c0_i32_0 : i32, i32
  }
  func.func @transform_4(%arg0: i32) -> (i32, i32) {
    %c0_i32 = arith.constant 0 : i32
    %c0_i32_0 = arith.constant 0 : i32
    %c0_i32_1 = arith.constant 0 : i32
    return %c0_i32, %c0_i32_0 : i32, i32
  }
  func.func @transform_5(%arg0: i32) -> (i32, i32) {
    %c0_i32 = arith.constant 0 : i32
    %c0_i32_0 = arith.constant 0 : i32
    %c0_i32_1 = arith.constant 0 : i32
    return %c0_i32, %c0_i32_0 : i32, i32
  }
  func.func @transform_6(%arg0: i32) -> (i32, i32) {
    %c0_i32 = arith.constant 0 : i32
    %c0_i32_0 = arith.constant 0 : i32
    %c0_i32_1 = arith.constant 0 : i32
    return %c0_i32, %c0_i32_0 : i32, i32
  }
  func.func @transform_7(%arg0: i32) -> (i32, i32) {
    %c0_i32 = arith.constant 0 : i32
    %c0_i32_0 = arith.constant 0 : i32
    return %arg0, %c0_i32 : i32, i32
  }
}

</mosaic_0001>

<llo_original>
// kernel: tpu_custom_call.1
$region0: #{tpu_custom_call.1}
  #allocation0 [shape = 'u32[]', space=smem, size = 0x4, offset = 0x4, fixed_abs, tag = 'smem constant byte address 0x4 - core index']
  #allocation1 [shape = 'u32[144,128]{1,0:T(1,128)}', space=vmem, size = 0x12000, scoped, tag = 'internal scratch']
  %s0 = inlined_call_operand.hbm [shape: bf16[512,128], index: 0, kind: input, shape index: {}]
  %s1 = inlined_call_operand.vmem [shape: f32[1,128], index: 1, kind: input, shape index: {}]
  %s2 = inlined_call_operand.vmem [shape: f32[1,128], index: 2, kind: input, shape index: {}]
  %s3 = inlined_call_operand.hbm [shape: bf16[128,256], index: 3, kind: input, shape index: {}]
  %s4 = inlined_call_operand.vmem [shape: f32[1,256], index: 4, kind: input, shape index: {}]
  %s5 = inlined_call_operand.hbm [shape: bf16[256,128], index: 5, kind: input, shape index: {}]
  %s6 = inlined_call_operand.vmem [shape: f32[1,128], index: 6, kind: input, shape index: {}]
  %s7 = inlined_call_operand.hbm [shape: bf16[512,128], index: 7, kind: output, shape index: {}]
  %s8 = sld [smem:[#allocation0]]
  $region73: #{tpu_custom_call.1} parent=0
    _
  %s10 = ssub.s32 1, %s8
  %s11 = scalar_select 0, %s10, %s8
  $region1: #{tpu_custom_call.1} parent=0
    #allocation2 [shape = 'u8[131072]{0}', space=vmem, size = 0x20000, scoped, tag = 'input window, operand 0']
    #allocation3 [shape = 's32[2]{0}', space=sflag, size = 0x8, scoped, tag = 'scoped memory for tpu_custom_call.1']
    #allocation4 [shape = 's32[2]{0}', space=sflag, size = 0x8, scoped, tag = 'scoped memory for tpu_custom_call.1']
    #allocation5 [shape = 'u8[65536]{0}', space=vmem, size = 0x10000, scoped, tag = 'input window, operand 3, single buffered']
    #allocation6 [shape = 's32[1]{0}', space=sflag, size = 0x4, scoped, tag = 'scoped memory for tpu_custom_call.1']
    #allocation7 [shape = 'u8[65536]{0}', space=vmem, size = 0x10000, scoped, tag = 'input window, operand 5, single buffered']
    #allocation8 [shape = 'u8[131072]{0}', space=vmem, size = 0x20000, scoped, tag = 'output window, operand 0']
    %12 = vsyncpa [#allocation3], 0
    %s13 = scalar_lea.sflag [#allocation3], 1
    %14 = vsyncpa %s13, 0
    %15 = vsyncpa [#allocation6], 0
    %16 = vsyncpa [#allocation4], 0
    %s17 = scalar_lea.sflag [#allocation4], 1
    %18 = vsyncpa %s17, 0
    loop: start=0, step=1, limit=4
    $region2: #{tpu_custom_call.1} parent=1 // loop_pre_header
      _
    $region3: #{tpu_custom_call.1} parent=1 // loop_header
      %s20 = sphi 0, %s24
      %p21 = scmp.ge.s32.totalorder %s20, 4
      %s30 = sphi 0, %s32
      %s33 = sphi 0, %s30
      %s34 = sphi 0, %s33
      %s50 = sphi 0, %s34
      %s54 = sphi 0, %s54
      %s56 = sphi 0, %s54
      %s57 = sphi 0, %s56
      %s71 = sphi 0, %s57
      %s75 = sphi 0, %s75
      %s77 = sphi 0, %s75
      %s78 = sphi 0, %s77
      %s92 = sphi 0, %s78
      %s96 = sphi 0, %s96
      %s98 = sphi 0, %s96
      %s99 = sphi 0, %s98
      %s113 = sphi 0, %s99
      %s117 = sphi 0, %s117
      %s119 = sphi 0, %s117
      %s120 = sphi 0, %s119
      %s134 = sphi 0, %s120
      %s138 = sphi 0, %s138
      %s140 = sphi 0, %s138
      %s141 = sphi 0, %s140
      %s155 = sphi 0, %s141
      %s159 = sphi 0, %s159
      %s161 = sphi 0, %s159
      %s162 = sphi 0, %s161
      %s176 = sphi 0, %s162
      %s182 = sphi 0, %s184
      %s185 = sphi 0, %s182
      %s186 = sphi 0, %s185
      %s202 = sphi 0, %s186
    $region4: #{tpu_custom_call.1} parent=1 // loop_header_branch
      %23 = sbr.rel (%p21) target = $region8
    $region5: #{tpu_custom_call.1} parent=1 // loop_body
      %s25 = ssub.s32 %s20, 1
      %s26 = ssub.s32 %s20, 2
      %s27 = sadd.s32 %s20, 1
      %s28 = ssub.s32 %s20, %s27
      %p29 = scmp.eq.s32.totalorder %s28, 0
      %s31 = sadd.s32 %s30, 1
      %s32 = scalar_select %p29, %s30, %s31
      %p35 = pneg %p29
      %p36 = scmp.eq.s32.totalorder %s20, 1
      %p37 = por %p35, %p36
      %p38 = scmp.ne.s32.totalorder %s30, %s33
      %p39 = scmp.eq.s32.totalorder %s20, 0
      %p40 = por %p38, %p39
      %p41 = scmp.ne.s32.totalorder %s30, %s33
      %p42 = scmp.eq.s32.totalorder %s25, 1
      %p43 = por %p41, %p42
      %p44 = scmp.ne.s32.totalorder %s33, %s34
      %p45 = scmp.eq.s32.totalorder %s25, 0
      %p46 = por %p44, %p45
      %p47 = scmp.ne.s32.totalorder %s33, %s34
      %p48 = scmp.eq.s32.totalorder %s26, 1
      %p49 = por %p47, %p48
      %p51 = scmp.ne.s32.totalorder %s34, %s50
      %p52 = scmp.eq.s32.totalorder %s26, 0
      %p53 = por %p51, %p52
      %s55 = sadd.s32 %s54, 1
      %p58 = scmp.eq.s32.totalorder %s20, 1
      %p59 = scmp.ne.s32.totalorder %s54, %s56
      %p60 = scmp.eq.s32.totalorder %s20, 0
      %p61 = por %p59, %p60
      %p62 = scmp.ne.s32.totalorder %s54, %s56
      %p63 = scmp.eq.s32.totalorder %s25, 1
      %p64 = por %p62, %p63
      %p65 = scmp.ne.s32.totalorder %s56, %s57
      %p66 = scmp.eq.s32.totalorder %s25, 0
      %p67 = por %p65, %p66
      %p68 = scmp.ne.s32.totalorder %s56, %s57
      %p69 = scmp.eq.s32.totalorder %s26, 1
      %p70 = por %p68, %p69
      %p72 = scmp.ne.s32.totalorder %s57, %s71
      %p73 = scmp.eq.s32.totalorder %s26, 0
      %p74 = por %p72, %p73
      %s76 = sadd.s32 %s75, 1
      %p79 = scmp.eq.s32.totalorder %s20, 1
      %p80 = scmp.ne.s32.totalorder %s75, %s77
      %p81 = scmp.eq.s32.totalorder %s20, 0
      %p82 = por %p80, %p81
      %p83 = scmp.ne.s32.totalorder %s75, %s77
      %p84 = scmp.eq.s32.totalorder %s25, 1
      %p85 = por %p83, %p84
      %p86 = scmp.ne.s32.totalorder %s77, %s78
      %p87 = scmp.eq.s32.totalorder %s25, 0
      %p88 = por %p86, %p87
      %p89 = scmp.ne.s32.totalorder %s77, %s78
      %p90 = scmp.eq.s32.totalorder %s26, 1
      %p91 = por %p89, %p90
      %p93 = scmp.ne.s32.totalorder %s78, %s92
      %p94 = scmp.eq.s32.totalorder %s26, 0
      %p95 = por %p93, %p94
      %s97 = sadd.s32 %s96, 1
      %p100 = scmp.eq.s32.totalorder %s20, 1
      %p101 = scmp.ne.s32.totalorder %s96, %s98
      %p102 = scmp.eq.s32.totalorder %s20, 0
      %p103 = por %p101, %p102
      %p104 = scmp.ne.s32.totalorder %s96, %s98
      %p105 = scmp.eq.s32.totalorder %s25, 1
      %p106 = por %p104, %p105
      %p107 = scmp.ne.s32.totalorder %s98, %s99
      %p108 = scmp.eq.s32.totalorder %s25, 0
      %p109 = por %p107, %p108
      %p110 = scmp.ne.s32.totalorder %s98, %s99
      %p111 = scmp.eq.s32.totalorder %s26, 1
      %p112 = por %p110, %p111
      %p114 = scmp.ne.s32.totalorder %s99, %s113
      %p115 = scmp.eq.s32.totalorder %s26, 0
      %p116 = por %p114, %p115
      %s118 = sadd.s32 %s117, 1
      %p121 = scmp.eq.s32.totalorder %s20, 1
      %p122 = scmp.ne.s32.totalorder %s117, %s119
      %p123 = scmp.eq.s32.totalorder %s20, 0
      %p124 = por %p122, %p123
      %p125 = scmp.ne.s32.totalorder %s117, %s119
      %p126 = scmp.eq.s32.totalorder %s25, 1
      %p127 = por %p125, %p126
      %p128 = scmp.ne.s32.totalorder %s119, %s120
      %p129 = scmp.eq.s32.totalorder %s25, 0
      %p130 = por %p128, %p129
      %p131 = scmp.ne.s32.totalorder %s119, %s120
      %p132 = scmp.eq.s32.totalorder %s26, 1
      %p133 = por %p131, %p132
      %p135 = scmp.ne.s32.totalorder %s120, %s134
      %p136 = scmp.eq.s32.totalorder %s26, 0
      %p137 = por %p135, %p136
      %s139 = sadd.s32 %s138, 1
      %p142 = scmp.eq.s32.totalorder %s20, 1
      %p143 = scmp.ne.s32.totalorder %s138, %s140
      %p144 = scmp.eq.s32.totalorder %s20, 0
      %p145 = por %p143, %p144
      %p146 = scmp.ne.s32.totalorder %s138, %s140
      %p147 = scmp.eq.s32.totalorder %s25, 1
      %p148 = por %p146, %p147
      %p149 = scmp.ne.s32.totalorder %s140, %s141
      %p150 = scmp.eq.s32.totalorder %s25, 0
      %p151 = por %p149, %p150
      %p152 = scmp.ne.s32.totalorder %s140, %s141
      %p153 = scmp.eq.s32.totalorder %s26, 1
      %p154 = por %p152, %p153
      %p156 = scmp.ne.s32.totalorder %s141, %s155
      %p157 = scmp.eq.s32.totalorder %s26, 0
      %p158 = por %p156, %p157
      %s160 = sadd.s32 %s159, 1
      %p163 = scmp.eq.s32.totalorder %s20, 1
      %p164 = scmp.ne.s32.totalorder %s159, %s161
      %p165 = scmp.eq.s32.totalorder %s20, 0
      %p166 = por %p164, %p165
      %p167 = scmp.ne.s32.totalorder %s159, %s161
      %p168 = scmp.eq.s32.totalorder %s25, 1
      %p169 = por %p167, %p168
      %p170 = scmp.ne.s32.totalorder %s161, %s162
      %p171 = scmp.eq.s32.totalorder %s25, 0
      %p172 = por %p170, %p171
      %p173 = scmp.ne.s32.totalorder %s161, %s162
      %p174 = scmp.eq.s32.totalorder %s26, 1
      %p175 = por %p173, %p174
      %p177 = scmp.ne.s32.totalorder %s162, %s176
      %p178 = scmp.eq.s32.totalorder %s26, 0
      %p179 = por %p177, %p178
      %s180 = ssub.s32 %s20, %s27
      %p181 = scmp.eq.s32.totalorder %s180, 0
      %s183 = sadd.s32 %s182, 1
      %s184 = scalar_select %p181, %s182, %s183
      %p187 = pneg %p181
      %p188 = scmp.eq.s32.totalorder %s20, 1
      %p189 = por %p187, %p188
      %p190 = scmp.ne.s32.totalorder %s182, %s185
      %p191 = scmp.eq.s32.totalorder %s20, 0
      %p192 = por %p190, %p191
      %p193 = scmp.ne.s32.totalorder %s182, %s185
      %p194 = scmp.eq.s32.totalorder %s25, 1
      %p195 = por %p193, %p194
      %p196 = scmp.ne.s32.totalorder %s185, %s186
      %p197 = scmp.eq.s32.totalorder %s25, 0
      %p198 = por %p196, %p197
      %p199 = scmp.ne.s32.totalorder %s185, %s186
      %p200 = scmp.eq.s32.totalorder %s26, 1
      %p201 = por %p199, %p200
      %p203 = scmp.ne.s32.totalorder %s186, %s202
      %p204 = scmp.eq.s32.totalorder %s26, 0
      %p205 = por %p203, %p204
      %p206 = scmp.le.s32.totalorder 1, %s20
      %p207 = scmp.lt.s32.totalorder %s20, 3
      %p208 = pnand %p206, %p207
      %p209 = pneg %p208
      // Predicated region
      $region9: #{tpu_custom_call.1} parent=5 // pred_check
        _
      $region10: #{tpu_custom_call.1} parent=5 // pred_check_branch
        %211 = sbr.rel (%p208) target = $region12
      $region11: #{tpu_custom_call.1} parent=5 // pred_region
        %s212 = ssub.s32 %s20, 1
        // Predicated region
        $region13: #{tpu_custom_call.1} parent=11 // pred_check
          %p213 = pneg %p67
        $region14: #{tpu_custom_call.1} parent=11 // pred_check_branch
          %215 = sbr.rel (%p213) target = $region16
        $region15: #{tpu_custom_call.1} parent=11 // pred_region
          _
        $region16: #{tpu_custom_call.1} parent=11 // pred_fallthru
          _
        // Predicated region
        $region17: #{tpu_custom_call.1} parent=11 // pred_check
          %p216 = pneg %p88
        $region18: #{tpu_custom_call.1} parent=11 // pred_check_branch
          %218 = sbr.rel (%p216) target = $region20
        $region19: #{tpu_custom_call.1} parent=11 // pred_region
          _
        $region20: #{tpu_custom_call.1} parent=11 // pred_fallthru
          _
        // Predicated region
        $region21: #{tpu_custom_call.1} parent=11 // pred_check
          %p219 = pneg %p109
        $region22: #{tpu_custom_call.1} parent=11 // pred_check_branch
          %221 = sbr.rel (%p219) target = $region24
        $region23: #{tpu_custom_call.1} parent=11 // pred_region
          %s223 = ssub.s32 2048, 2048
          %224 = vsyncadd [#allocation6], %s223
          %s225 = sshll.u32 [#allocation5], 4
          %s226 = int_to_ptr.vmem [resolvable:$true] %s225
          %231 = dma.hbm_to_vmem [thread:$0]  %s3, 2048, %s226, [#allocation6], 128, 128, 8
        $region24: #{tpu_custom_call.1} parent=11 // pred_fallthru
          _
        // Predicated region
        $region25: #{tpu_custom_call.1} parent=11 // pred_check
          %p232 = pneg %p130
        $region26: #{tpu_custom_call.1} parent=11 // pred_check_branch
          %234 = sbr.rel (%p232) target = $region28
        $region27: #{tpu_custom_call.1} parent=11 // pred_region
          _
        $region28: #{tpu_custom_call.1} parent=11 // pred_fallthru
          _
        // Predicated region
        $region29: #{tpu_custom_call.1} parent=11 // pred_check
          %p235 = pneg %p151
        $region30: #{tpu_custom_call.1} parent=11 // pred_check_branch
          %237 = sbr.rel (%p235) target = $region32
        $region31: #{tpu_custom_call.1} parent=11 // pred_region
          %s239 = ssub.s32 2048, 2048
          %240 = vsyncadd [#allocation6], %s239
          %s241 = sshll.u32 [#allocation7], 4
          %s242 = int_to_ptr.vmem [resolvable:$true] %s241
          %247 = dma.hbm_to_vmem [thread:$0]  %s5, 2048, %s242, [#allocation6], 64, 64, 4
        $region32: #{tpu_custom_call.1} parent=11 // pred_fallthru
          _
        // Predicated region
        $region33: #{tpu_custom_call.1} parent=11 // pred_check
          %p248 = pneg %p172
        $region34: #{tpu_custom_call.1} parent=11 // pred_check_branch
          %250 = sbr.rel (%p248) target = $region36
        $region35: #{tpu_custom_call.1} parent=11 // pred_region
          _
        $region36: #{tpu_custom_call.1} parent=11 // pred_fallthru
          _
      $region12: #{tpu_custom_call.1} parent=5 // pred_fallthru
        _
      %p251 = scmp.lt.s32.totalorder %s20, 2
      // Predicated region
      $region37: #{tpu_custom_call.1} parent=5 // pred_check
        %p252 = pneg %p251
      $region38: #{tpu_custom_call.1} parent=5 // pred_check_branch
        %254 = sbr.rel (%p252) target = $region40
      $region39: #{tpu_custom_call.1} parent=5 // pred_region
        // Predicated region
        $region41: #{tpu_custom_call.1} parent=39 // pred_check
          %p255 = pneg %p40
        $region42: #{tpu_custom_call.1} parent=39 // pred_check_branch
          %257 = sbr.rel (%p255) target = $region44
        $region43: #{tpu_custom_call.1} parent=39 // pred_region
          %s258 = sand.u32 %s30, 1
          %s259 = scalar_lea.sflag [#allocation3], %s258
          %s260 = sand.u32 %s30, 1
          %s261 = smul.addr %s260, 128
          %s262 = scalar_lea.vmem [#allocation2], %s261
          %s263 = smul.u32 32, %s20
          %s265 = ssub.s32 2048, 2048
          %266 = vsyncadd %s259, %s265
          %s267 = smul.addr %s263, 64
          %s268 = scalar_lea.hbm %s0, %s267
          %s269 = sshll.u32 %s262, 4
          %s270 = int_to_ptr.vmem [resolvable:$true] %s269
          %275 = dma.hbm_to_vmem [thread:$0]  %s268, 2048, %s270, %s259, 64, 64, 4
        $region44: #{tpu_custom_call.1} parent=39 // pred_fallthru
          _
      $region40: #{tpu_custom_call.1} parent=5 // pred_fallthru
        _
      %p276 = scmp.le.s32.totalorder 1, %s20
      %p277 = scmp.lt.s32.totalorder %s20, 3
      %p278 = pnand %p276, %p277
      %p279 = pneg %p278
      // Predicated region
      $region45: #{tpu_custom_call.1} parent=5 // pred_check
        _
      $region46: #{tpu_custom_call.1} parent=5 // pred_check_branch
        %281 = sbr.rel (%p278) target = $region48
      $region47: #{tpu_custom_call.1} parent=5 // pred_region
        %s282 = ssub.s32 %s20, 1
        %s283 = sand.u32 %s33, 1
        %s284 = scalar_lea.sflag [#allocation3], %s283
        %s285 = sand.u32 %s33, 1
        %s286 = smul.addr %s285, 128
        %s287 = scalar_lea.vmem [#allocation2], %s286
        // Predicated region
        $region49: #{tpu_custom_call.1} parent=47 // pred_check
          %p288 = pneg %p46
        $region50: #{tpu_custom_call.1} parent=47 // pred_check_branch
          %290 = sbr.rel (%p288) target = $region52
        $region51: #{tpu_custom_call.1} parent=47 // pred_region
          %291 = dma.done %s284, 2048
        $region52: #{tpu_custom_call.1} parent=47 // pred_fallthru
          _
        // Predicated region
        $region53: #{tpu_custom_call.1} parent=47 // pred_check
          %p292 = pneg %p109
        $region54: #{tpu_custom_call.1} parent=47 // pred_check_branch
          %294 = sbr.rel (%p292) target = $region56
        $region55: #{tpu_custom_call.1} parent=47 // pred_region
          %295 = dma.done [#allocation6], 2048
        $region56: #{tpu_custom_call.1} parent=47 // pred_fallthru
          _
        // Predicated region
        $region57: #{tpu_custom_call.1} parent=47 // pred_check
          %p296 = pneg %p151
        $region58: #{tpu_custom_call.1} parent=47 // pred_check_branch
          %298 = sbr.rel (%p296) target = $region60
        $region59: #{tpu_custom_call.1} parent=47 // pred_region
          %299 = dma.done [#allocation6], 2048
        $region60: #{tpu_custom_call.1} parent=47 // pred_fallthru
          _
        %s300 = sand.u32 %s33, 1
        %s301 = scalar_lea.sflag [#allocation3], %s300
        %s302 = sand.u32 %s33, 1
        %s303 = smul.addr %s302, 128
        %s304 = scalar_lea.vmem [#allocation2], %s303
        %p305 = pneg %p46
        %p306 = pneg %p43
        %p307 = pneg %p67
        %p308 = pneg %p64
        %p309 = pneg %p88
        %p310 = pneg %p85
        %p311 = pneg %p109
        %p312 = pneg %p106
        %p313 = pneg %p130
        %p314 = pneg %p127
        %p315 = pneg %p151
        %p316 = pneg %p148
        %p317 = pneg %p172
        %p318 = pneg %p169
        %p319 = pneg %p198
        %p320 = pneg %p195
        %s321 = sand.u32 %s185, 1
        %s322 = scalar_lea.sflag [#allocation4], %s321
        %s323 = sand.u32 %s185, 1
        %s324 = smul.addr %s323, 128
        %s325 = scalar_lea.vmem [#allocation8], %s324
        %s326 = smul.u32 32, %s25
        %s327 = smul.u32 32, %s25
        %v329 = vld [vmem:[%s287] sm:$0xf]
        %v330 = vld [vmem:[%s287 + $0x4] sm:$0xf]
        %v331 = vld [vmem:[%s287 + $0x8] sm:$0xf]
        %v332 = vld [vmem:[%s287 + $0xc] sm:$0xf]
        %v333 = vld [vmem:[%s287 + $0x10] sm:$0xf]
        %v334 = vld [vmem:[%s287 + $0x14] sm:$0xf]
        %v335 = vld [vmem:[%s287 + $0x18] sm:$0xf]
        %v336 = vld [vmem:[%s287 + $0x1c] sm:$0xf]
        %v337 = vld [vmem:[%s287 + $0x20] sm:$0xf]
        %v338 = vld [vmem:[%s287 + $0x24] sm:$0xf]
        %v339 = vld [vmem:[%s287 + $0x28] sm:$0xf]
        %v340 = vld [vmem:[%s287 + $0x2c] sm:$0xf]
        %v341 = vld [vmem:[%s287 + $0x30] sm:$0xf]
        %v342 = vld [vmem:[%s287 + $0x34] sm:$0xf]
        %v343 = vld [vmem:[%s287 + $0x38] sm:$0xf]
        %v344 = vld [vmem:[%s287 + $0x3c] sm:$0xf]
        %v345 = vld [vmem:[%s287 + $0x40] sm:$0xf]
        %v346 = vld [vmem:[%s287 + $0x44] sm:$0xf]
        %v347 = vld [vmem:[%s287 + $0x48] sm:$0xf]
        %v348 = vld [vmem:[%s287 + $0x4c] sm:$0xf]
        %v349 = vld [vmem:[%s287 + $0x50] sm:$0xf]
        %v350 = vld [vmem:[%s287 + $0x54] sm:$0xf]
        %v351 = vld [vmem:[%s287 + $0x58] sm:$0xf]
        %v352 = vld [vmem:[%s287 + $0x5c] sm:$0xf]
        %v353 = vld [vmem:[%s287 + $0x60] sm:$0xf]
        %v354 = vld [vmem:[%s287 + $0x64] sm:$0xf]
        %v355 = vld [vmem:[%s287 + $0x68] sm:$0xf]
        %v356 = vld [vmem:[%s287 + $0x6c] sm:$0xf]
        %v357 = vld [vmem:[%s287 + $0x70] sm:$0xf]
        %v358 = vld [vmem:[%s287 + $0x74] sm:$0xf]
        %v359 = vld [vmem:[%s287 + $0x78] sm:$0xf]
        %v360 = vld [vmem:[%s287 + $0x7c] sm:$0xf]
        %v361 = vunpack.c.l.bf16 %v329
        %v362 = vunpack.c.l.bf16 %v330
        %v363 = vunpack.c.l.bf16 %v331
        %v364 = vunpack.c.l.bf16 %v332
        %v365 = vunpack.c.l.bf16 %v333
        %v366 = vunpack.c.l.bf16 %v334
        %v367 = vunpack.c.l.bf16 %v335
        %v368 = vunpack.c.l.bf16 %v336
        %v369 = vunpack.c.l.bf16 %v337
        %v370 = vunpack.c.l.bf16 %v338
        %v371 = vunpack.c.l.bf16 %v339
        %v372 = vunpack.c.l.bf16 %v340
        %v373 = vunpack.c.l.bf16 %v341
        %v374 = vunpack.c.l.bf16 %v342
        %v375 = vunpack.c.l.bf16 %v343
        %v376 = vunpack.c.l.bf16 %v344
        %v377 = vunpack.c.l.bf16 %v345
        %v378 = vunpack.c.l.bf16 %v346
        %v379 = vunpack.c.l.bf16 %v347
        %v380 = vunpack.c.l.bf16 %v348
        %v381 = vunpack.c.l.bf16 %v349
        %v382 = vunpack.c.l.bf16 %v350
        %v383 = vunpack.c.l.bf16 %v351
        %v384 = vunpack.c.l.bf16 %v352
        %v385 = vunpack.c.l.bf16 %v353
        %v386 = vunpack.c.l.bf16 %v354
        %v387 = vunpack.c.l.bf16 %v355
        %v388 = vunpack.c.l.bf16 %v356
        %v389 = vunpack.c.l.bf16 %v357
        %v390 = vunpack.c.l.bf16 %v358
        %v391 = vunpack.c.l.bf16 %v359
        %v392 = vunpack.c.l.bf16 %v360
        %393 = vadd.xlane.f32.xlu0 %v361
        %v394 = vpop.xlane.xlu0 %393
        %395 = vadd.xlane.f32.xlu0 %v362
        %v396 = vpop.xlane.xlu0 %395
        %397 = vadd.xlane.f32.xlu0 %v363
        %v398 = vpop.xlane.xlu0 %397
        %399 = vadd.xlane.f32.xlu0 %v364
        %v400 = vpop.xlane.xlu0 %399
        %401 = vadd.xlane.f32.xlu0 %v365
        %v402 = vpop.xlane.xlu0 %401
        %403 = vadd.xlane.f32.xlu0 %v366
        %v404 = vpop.xlane.xlu0 %403
        %405 = vadd.xlane.f32.xlu0 %v367
        %v406 = vpop.xlane.xlu0 %405
        %407 = vadd.xlane.f32.xlu0 %v368
        %v408 = vpop.xlane.xlu0 %407
        %409 = vadd.xlane.f32.xlu0 %v369
        %v410 = vpop.xlane.xlu0 %409
        %411 = vadd.xlane.f32.xlu0 %v370
        %v412 = vpop.xlane.xlu0 %411
        %413 = vadd.xlane.f32.xlu0 %v371
        %v414 = vpop.xlane.xlu0 %413
        %415 = vadd.xlane.f32.xlu0 %v372
        %v416 = vpop.xlane.xlu0 %415
        %417 = vadd.xlane.f32.xlu0 %v373
        %v418 = vpop.xlane.xlu0 %417
        %419 = vadd.xlane.f32.xlu0 %v374
        %v420 = vpop.xlane.xlu0 %419
        %421 = vadd.xlane.f32.xlu0 %v375
        %v422 = vpop.xlane.xlu0 %421
        %423 = vadd.xlane.f32.xlu0 %v376
        %v424 = vpop.xlane.xlu0 %423
        %425 = vadd.xlane.f32.xlu0 %v377
        %v426 = vpop.xlane.xlu0 %425
        %427 = vadd.xlane.f32.xlu0 %v378
        %v428 = vpop.xlane.xlu0 %427
        %429 = vadd.xlane.f32.xlu0 %v379
        %v430 = vpop.xlane.xlu0 %429
        %431 = vadd.xlane.f32.xlu0 %v380
        %v432 = vpop.xlane.xlu0 %431
        %433 = vadd.xlane.f32.xlu0 %v381
        %v434 = vpop.xlane.xlu0 %433
        %435 = vadd.xlane.f32.xlu0 %v382
        %v436 = vpop.xlane.xlu0 %435
        %437 = vadd.xlane.f32.xlu0 %v383
        %v438 = vpop.xlane.xlu0 %437
        %439 = vadd.xlane.f32.xlu0 %v384
        %v440 = vpop.xlane.xlu0 %439
        %441 = vadd.xlane.f32.xlu0 %v385
        %v442 = vpop.xlane.xlu0 %441
        %443 = vadd.xlane.f32.xlu0 %v386
        %v444 = vpop.xlane.xlu0 %443
        %445 = vadd.xlane.f32.xlu0 %v387
        %v446 = vpop.xlane.xlu0 %445
        %447 = vadd.xlane.f32.xlu0 %v388
        %v448 = vpop.xlane.xlu0 %447
        %449 = vadd.xlane.f32.xlu0 %v389
        %v450 = vpop.xlane.xlu0 %449
        %451 = vadd.xlane.f32.xlu0 %v390
        %v452 = vpop.xlane.xlu0 %451
        %453 = vadd.xlane.f32.xlu0 %v391
        %v454 = vpop.xlane.xlu0 %453
        %455 = vadd.xlane.f32.xlu0 %v392
        %v456 = vpop.xlane.xlu0 %455
        %v457 = vrcp.pop 128.0
        %v458 = vmul.f32 %v394, %v457
        %v459 = vmul.f32 %v396, %v457
        %v460 = vmul.f32 %v398, %v457
        %v461 = vmul.f32 %v400, %v457
        %v462 = vmul.f32 %v402, %v457
        %v463 = vmul.f32 %v404, %v457
        %v464 = vmul.f32 %v406, %v457
        %v465 = vmul.f32 %v408, %v457
        %v466 = vmul.f32 %v410, %v457
        %v467 = vmul.f32 %v412, %v457
        %v468 = vmul.f32 %v414, %v457
        %v469 = vmul.f32 %v416, %v457
        %v470 = vmul.f32 %v418, %v457
        %v471 = vmul.f32 %v420, %v457
        %v472 = vmul.f32 %v422, %v457
        %v473 = vmul.f32 %v424, %v457
        %v474 = vmul.f32 %v426, %v457
        %v475 = vmul.f32 %v428, %v457
        %v476 = vmul.f32 %v430, %v457
        %v477 = vmul.f32 %v432, %v457
        %v478 = vmul.f32 %v434, %v457
        %v479 = vmul.f32 %v436, %v457
        %v480 = vmul.f32 %v438, %v457
        %v481 = vmul.f32 %v440, %v457
        %v482 = vmul.f32 %v442, %v457
        %v483 = vmul.f32 %v444, %v457
        %v484 = vmul.f32 %v446, %v457
        %v485 = vmul.f32 %v448, %v457
        %v486 = vmul.f32 %v450, %v457
        %v487 = vmul.f32 %v452, %v457
        %v488 = vmul.f32 %v454, %v457
        %v489 = vmul.f32 %v456, %v457
        %v490 = vmul.f32 %v361, %v361
        %v491 = vmul.f32 %v362, %v362
        %v492 = vmul.f32 %v363, %v363
        %v493 = vmul.f32 %v364, %v364
        %v494 = vmul.f32 %v365, %v365
        %v495 = vmul.f32 %v366, %v366
        %v496 = vmul.f32 %v367, %v367
        %v497 = vmul.f32 %v368, %v368
        %v498 = vmul.f32 %v369, %v369
        %v499 = vmul.f32 %v370, %v370
        %v500 = vmul.f32 %v371, %v371
        %v501 = vmul.f32 %v372, %v372
        %v502 = vmul.f32 %v373, %v373
        %v503 = vmul.f32 %v374, %v374
        %v504 = vmul.f32 %v375, %v375
        %v505 = vmul.f32 %v376, %v376
        %v506 = vmul.f32 %v377, %v377
        %v507 = vmul.f32 %v378, %v378
        %v508 = vmul.f32 %v379, %v379
        %v509 = vmul.f32 %v380, %v380
        %v510 = vmul.f32 %v381, %v381
        %v511 = vmul.f32 %v382, %v382
        %v512 = vmul.f32 %v383, %v383
        %v513 = vmul.f32 %v384, %v384
        %v514 = vmul.f32 %v385, %v385
        %v515 = vmul.f32 %v386, %v386
        %v516 = vmul.f32 %v387, %v387
        %v517 = vmul.f32 %v388, %v388
        %v518 = vmul.f32 %v389, %v389
        %v519 = vmul.f32 %v390, %v390
        %v520 = vmul.f32 %v391, %v391
        %v521 = vmul.f32 %v392, %v392
        %522 = vadd.xlane.f32.xlu0 %v490
        %v523 = vpop.xlane.xlu0 %522
        %524 = vadd.xlane.f32.xlu0 %v491
        %v525 = vpop.xlane.xlu0 %524
        %526 = vadd.xlane.f32.xlu0 %v492
        %v527 = vpop.xlane.xlu0 %526
        %528 = vadd.xlane.f32.xlu0 %v493
        %v529 = vpop.xlane.xlu0 %528
        %530 = vadd.xlane.f32.xlu0 %v494
        %v531 = vpop.xlane.xlu0 %530
        %532 = vadd.xlane.f32.xlu0 %v495
        %v533 = vpop.xlane.xlu0 %532
        %534 = vadd.xlane.f32.xlu0 %v496
        %v535 = vpop.xlane.xlu0 %534
        %536 = vadd.xlane.f32.xlu0 %v497
        %v537 = vpop.xlane.xlu0 %536
        %538 = vadd.xlane.f32.xlu0 %v498
        %v539 = vpop.xlane.xlu0 %538
        %540 = vadd.xlane.f32.xlu0 %v499
        %v541 = vpop.xlane.xlu0 %540
        %542 = vadd.xlane.f32.xlu0 %v500
        %v543 = vpop.xlane.xlu0 %542
        %544 = vadd.xlane.f32.xlu0 %v501
        %v545 = vpop.xlane.xlu0 %544
        %546 = vadd.xlane.f32.xlu0 %v502
        %v547 = vpop.xlane.xlu0 %546
        %548 = vadd.xlane.f32.xlu0 %v503
        %v549 = vpop.xlane.xlu0 %548
        %550 = vadd.xlane.f32.xlu0 %v504
        %v551 = vpop.xlane.xlu0 %550
        %552 = vadd.xlane.f32.xlu0 %v505
        %v553 = vpop.xlane.xlu0 %552
        %554 = vadd.xlane.f32.xlu0 %v506
        %v555 = vpop.xlane.xlu0 %554
        %556 = vadd.xlane.f32.xlu0 %v507
        %v557 = vpop.xlane.xlu0 %556
        %558 = vadd.xlane.f32.xlu0 %v508
        %v559 = vpop.xlane.xlu0 %558
        %560 = vadd.xlane.f32.xlu0 %v509
        %v561 = vpop.xlane.xlu0 %560
        %562 = vadd.xlane.f32.xlu0 %v510
        %v563 = vpop.xlane.xlu0 %562
        %564 = vadd.xlane.f32.xlu0 %v511
        %v565 = vpop.xlane.xlu0 %564
        %566 = vadd.xlane.f32.xlu0 %v512
        %v567 = vpop.xlane.xlu0 %566
        %568 = vadd.xlane.f32.xlu0 %v513
        %v569 = vpop.xlane.xlu0 %568
        %570 = vadd.xlane.f32.xlu0 %v514
        %v571 = vpop.xlane.xlu0 %570
        %572 = vadd.xlane.f32.xlu0 %v515
        %v573 = vpop.xlane.xlu0 %572
        %574 = vadd.xlane.f32.xlu0 %v516
        %v575 = vpop.xlane.xlu0 %574
        %576 = vadd.xlane.f32.xlu0 %v517
        %v577 = vpop.xlane.xlu0 %576
        %578 = vadd.xlane.f32.xlu0 %v518
        %v579 = vpop.xlane.xlu0 %578
        %580 = vadd.xlane.f32.xlu0 %v519
        %v581 = vpop.xlane.xlu0 %580
        %582 = vadd.xlane.f32.xlu0 %v520
        %v583 = vpop.xlane.xlu0 %582
        %584 = vadd.xlane.f32.xlu0 %v521
        %v585 = vpop.xlane.xlu0 %584
        %v586 = vmul.f32 %v523, %v457
        %v587 = vmul.f32 %v525, %v457
        %v588 = vmul.f32 %v527, %v457
        %v589 = vmul.f32 %v529, %v457
        %v590 = vmul.f32 %v531, %v457
        %v591 = vmul.f32 %v533, %v457
        %v592 = vmul.f32 %v535, %v457
        %v593 = vmul.f32 %v537, %v457
        %v594 = vmul.f32 %v539, %v457
        %v595 = vmul.f32 %v541, %v457
        %v596 = vmul.f32 %v543, %v457
        %v597 = vmul.f32 %v545, %v457
        %v598 = vmul.f32 %v547, %v457
        %v599 = vmul.f32 %v549, %v457
        %v600 = vmul.f32 %v551, %v457
        %v601 = vmul.f32 %v553, %v457
        %v602 = vmul.f32 %v555, %v457
        %v603 = vmul.f32 %v557, %v457
        %v604 = vmul.f32 %v559, %v457
        %v605 = vmul.f32 %v561, %v457
        %v606 = vmul.f32 %v563, %v457
        %v607 = vmul.f32 %v565, %v457
        %v608 = vmul.f32 %v567, %v457
        %v609 = vmul.f32 %v569, %v457
        %v610 = vmul.f32 %v571, %v457
        %v611 = vmul.f32 %v573, %v457
        %v612 = vmul.f32 %v575, %v457
        %v613 = vmul.f32 %v577, %v457
        %v614 = vmul.f32 %v579, %v457
        %v615 = vmul.f32 %v581, %v457
        %v616 = vmul.f32 %v583, %v457
        %v617 = vmul.f32 %v585, %v457
        %v618 = vmul.f32 %v458, %v458
        %v619 = vmul.f32 %v459, %v459
        %v620 = vmul.f32 %v460, %v460
        %v621 = vmul.f32 %v461, %v461
        %v622 = vmul.f32 %v462, %v462
        %v623 = vmul.f32 %v463, %v463
        %v624 = vmul.f32 %v464, %v464
        %v625 = vmul.f32 %v465, %v465
        %v626 = vmul.f32 %v466, %v466
        %v627 = vmul.f32 %v467, %v467
        %v628 = vmul.f32 %v468, %v468
        %v629 = vmul.f32 %v469, %v469
        %v630 = vmul.f32 %v470, %v470
        %v631 = vmul.f32 %v471, %v471
        %v632 = vmul.f32 %v472, %v472
        %v633 = vmul.f32 %v473, %v473
        %v634 = vmul.f32 %v474, %v474
        %v635 = vmul.f32 %v475, %v475
        %v636 = vmul.f32 %v476, %v476
        %v637 = vmul.f32 %v477, %v477
        %v638 = vmul.f32 %v478, %v478
        %v639 = vmul.f32 %v479, %v479
        %v640 = vmul.f32 %v480, %v480
        %v641 = vmul.f32 %v481, %v481
        %v642 = vmul.f32 %v482, %v482
        %v643 = vmul.f32 %v483, %v483
        %v644 = vmul.f32 %v484, %v484
        %v645 = vmul.f32 %v485, %v485
        %v646 = vmul.f32 %v486, %v486
        %v647 = vmul.f32 %v487, %v487
        %v648 = vmul.f32 %v488, %v488
        %v649 = vmul.f32 %v489, %v489
        %v650 = vsub.f32 %v586, %v618
        %v651 = vsub.f32 %v587, %v619
        %v652 = vsub.f32 %v588, %v620
        %v653 = vsub.f32 %v589, %v621
        %v654 = vsub.f32 %v590, %v622
        %v655 = vsub.f32 %v591, %v623
        %v656 = vsub.f32 %v592, %v624
        %v657 = vsub.f32 %v593, %v625
        %v658 = vsub.f32 %v594, %v626
        %v659 = vsub.f32 %v595, %v627
        %v660 = vsub.f32 %v596, %v628
        %v661 = vsub.f32 %v597, %v629
        %v662 = vsub.f32 %v598, %v630
        %v663 = vsub.f32 %v599, %v631
        %v664 = vsub.f32 %v600, %v632
        %v665 = vsub.f32 %v601, %v633
        %v666 = vsub.f32 %v602, %v634
        %v667 = vsub.f32 %v603, %v635
        %v668 = vsub.f32 %v604, %v636
        %v669 = vsub.f32 %v605, %v637
        %v670 = vsub.f32 %v606, %v638
        %v671 = vsub.f32 %v607, %v639
        %v672 = vsub.f32 %v608, %v640
        %v673 = vsub.f32 %v609, %v641
        %v674 = vsub.f32 %v610, %v642
        %v675 = vsub.f32 %v611, %v643
        %v676 = vsub.f32 %v612, %v644
        %v677 = vsub.f32 %v613, %v645
        %v678 = vsub.f32 %v614, %v646
        %v679 = vsub.f32 %v615, %v647
        %v680 = vsub.f32 %v616, %v648
        %v681 = vsub.f32 %v617, %v649
        %v682 = vmax.f32 %v650, 0.0
        %v683 = vmax.f32 %v651, 0.0
        %v684 = vmax.f32 %v652, 0.0
        %v685 = vmax.f32 %v653, 0.0
        %v686 = vmax.f32 %v654, 0.0
        %v687 = vmax.f32 %v655, 0.0
        %v688 = vmax.f32 %v656, 0.0
        %v689 = vmax.f32 %v657, 0.0
        %v690 = vmax.f32 %v658, 0.0
        %v691 = vmax.f32 %v659, 0.0
        %v692 = vmax.f32 %v660, 0.0
        %v693 = vmax.f32 %v661, 0.0
        %v694 = vmax.f32 %v662, 0.0
        %v695 = vmax.f32 %v663, 0.0
        %v696 = vmax.f32 %v664, 0.0
        %v697 = vmax.f32 %v665, 0.0
        %v698 = vmax.f32 %v666, 0.0
        %v699 = vmax.f32 %v667, 0.0
        %v700 = vmax.f32 %v668, 0.0
        %v701 = vmax.f32 %v669, 0.0
        %v702 = vmax.f32 %v670, 0.0
        %v703 = vmax.f32 %v671, 0.0
        %v704 = vmax.f32 %v672, 0.0
        %v705 = vmax.f32 %v673, 0.0
        %v706 = vmax.f32 %v674, 0.0
        %v707 = vmax.f32 %v675, 0.0
        %v708 = vmax.f32 %v676, 0.0
        %v709 = vmax.f32 %v677, 0.0
        %v710 = vmax.f32 %v678, 0.0
        %v711 = vmax.f32 %v679, 0.0
        %v712 = vmax.f32 %v680, 0.0
        %v713 = vmax.f32 %v681, 0.0
        %v714 = vsub.f32 %v361, %v458
        %v715 = vsub.f32 %v362, %v459
        %v716 = vsub.f32 %v363, %v460
        %v717 = vsub.f32 %v364, %v461
        %v718 = vsub.f32 %v365, %v462
        %v719 = vsub.f32 %v366, %v463
        %v720 = vsub.f32 %v367, %v464
        %v721 = vsub.f32 %v368, %v465
        %v722 = vsub.f32 %v369, %v466
        %v723 = vsub.f32 %v370, %v467
        %v724 = vsub.f32 %v371, %v468
        %v725 = vsub.f32 %v372, %v469
        %v726 = vsub.f32 %v373, %v470
        %v727 = vsub.f32 %v374, %v471
        %v728 = vsub.f32 %v375, %v472
        %v729 = vsub.f32 %v376, %v473
        %v730 = vsub.f32 %v377, %v474
        %v731 = vsub.f32 %v378, %v475
        %v732 = vsub.f32 %v379, %v476
        %v733 = vsub.f32 %v380, %v477
        %v734 = vsub.f32 %v381, %v478
        %v735 = vsub.f32 %v382, %v479
        %v736 = vsub.f32 %v383, %v480
        %v737 = vsub.f32 %v384, %v481
        %v738 = vsub.f32 %v385, %v482
        %v739 = vsub.f32 %v386, %v483
        %v740 = vsub.f32 %v387, %v484
        %v741 = vsub.f32 %v388, %v485
        %v742 = vsub.f32 %v389, %v486
        %v743 = vsub.f32 %v390, %v487
        %v744 = vsub.f32 %v391, %v488
        %v745 = vsub.f32 %v392, %v489
        %v746 = vadd.f32 %v682, 1e-05
        %v747 = vadd.f32 %v683, 1e-05
        %v748 = vadd.f32 %v684, 1e-05
        %v749 = vadd.f32 %v685, 1e-05
        %v750 = vadd.f32 %v686, 1e-05
        %v751 = vadd.f32 %v687, 1e-05
        %v752 = vadd.f32 %v688, 1e-05
        %v753 = vadd.f32 %v689, 1e-05
        %v754 = vadd.f32 %v690, 1e-05
        %v755 = vadd.f32 %v691, 1e-05
        %v756 = vadd.f32 %v692, 1e-05
        %v757 = vadd.f32 %v693, 1e-05
        %v758 = vadd.f32 %v694, 1e-05
        %v759 = vadd.f32 %v695, 1e-05
        %v760 = vadd.f32 %v696, 1e-05
        %v761 = vadd.f32 %v697, 1e-05
        %v762 = vadd.f32 %v698, 1e-05
        %v763 = vadd.f32 %v699, 1e-05
        %v764 = vadd.f32 %v700, 1e-05
        %v765 = vadd.f32 %v701, 1e-05
        %v766 = vadd.f32 %v702, 1e-05
        %v767 = vadd.f32 %v703, 1e-05
        %v768 = vadd.f32 %v704, 1e-05
        %v769 = vadd.f32 %v705, 1e-05
        %v770 = vadd.f32 %v706, 1e-05
        %v771 = vadd.f32 %v707, 1e-05
        %v772 = vadd.f32 %v708, 1e-05
        %v773 = vadd.f32 %v709, 1e-05
        %v774 = vadd.f32 %v710, 1e-05
        %v775 = vadd.f32 %v711, 1e-05
        %v776 = vadd.f32 %v712, 1e-05
        %v777 = vadd.f32 %v713, 1e-05
        %v778 = vrsqrt.pop %v746
        %v779 = vrsqrt.pop %v747
        %v780 = vrsqrt.pop %v748
        %v781 = vrsqrt.pop %v749
        %v782 = vrsqrt.pop %v750
        %v783 = vrsqrt.pop %v751
        %v784 = vrsqrt.pop %v752
        %v785 = vrsqrt.pop %v753
        %v786 = vrsqrt.pop %v754
        %v787 = vrsqrt.pop %v755
        %v788 = vrsqrt.pop %v756
        %v789 = vrsqrt.pop %v757
        %v790 = vrsqrt.pop %v758
        %v791 = vrsqrt.pop %v759
        %v792 = vrsqrt.pop %v760
        %v793 = vrsqrt.pop %v761
        %v794 = vrsqrt.pop %v762
        %v795 = vrsqrt.pop %v763
        %v796 = vrsqrt.pop %v764
        %v797 = vrsqrt.pop %v765
        %v798 = vrsqrt.pop %v766
        %v799 = vrsqrt.pop %v767
        %v800 = vrsqrt.pop %v768
        %v801 = vrsqrt.pop %v769
        %v802 = vrsqrt.pop %v770
        %v803 = vrsqrt.pop %v771
        %v804 = vrsqrt.pop %v772
        %v805 = vrsqrt.pop %v773
        %v806 = vrsqrt.pop %v774
        %v807 = vrsqrt.pop %v775
        %v808 = vrsqrt.pop %v776
        %v809 = vrsqrt.pop %v777
        %v810 = vmul.f32 %v714, %v778
        %v811 = vmul.f32 %v715, %v779
        %v812 = vmul.f32 %v716, %v780
        %v813 = vmul.f32 %v717, %v781
        %v814 = vmul.f32 %v718, %v782
        %v815 = vmul.f32 %v719, %v783
        %v816 = vmul.f32 %v720, %v784
        %v817 = vmul.f32 %v721, %v785
        %v818 = vmul.f32 %v722, %v786
        %v819 = vmul.f32 %v723, %v787
        %v820 = vmul.f32 %v724, %v788
        %v821 = vmul.f32 %v725, %v789
        %v822 = vmul.f32 %v726, %v790
        %v823 = vmul.f32 %v727, %v791
        %v824 = vmul.f32 %v728, %v792
        %v825 = vmul.f32 %v729, %v793
        %v826 = vmul.f32 %v730, %v794
        %v827 = vmul.f32 %v731, %v795
        %v828 = vmul.f32 %v732, %v796
        %v829 = vmul.f32 %v733, %v797
        %v830 = vmul.f32 %v734, %v798
        %v831 = vmul.f32 %v735, %v799
        %v832 = vmul.f32 %v736, %v800
        %v833 = vmul.f32 %v737, %v801
        %v834 = vmul.f32 %v738, %v802
        %v835 = vmul.f32 %v739, %v803
        %v836 = vmul.f32 %v740, %v804
        %v837 = vmul.f32 %v741, %v805
        %v838 = vmul.f32 %v742, %v806
        %v839 = vmul.f32 %v743, %v807
        %v840 = vmul.f32 %v744, %v808
        %v841 = vmul.f32 %v745, %v809
        %v842 = vld [vmem:[%s1] sm:$0x1]
        %v844 = vlaneseq
        %v845 = vshrl.u32 %v844, 7
        %v846 = vsub.s32 0, %v845
        %v847 = vrot.slane %v842, %v846
        %v849 = vmul.f32 %v810, %v847
        %v850 = vmul.f32 %v811, %v847
        %v851 = vmul.f32 %v812, %v847
        %v852 = vmul.f32 %v813, %v847
        %v853 = vmul.f32 %v814, %v847
        %v854 = vmul.f32 %v815, %v847
        %v855 = vmul.f32 %v816, %v847
        %v856 = vmul.f32 %v817, %v847
        %v857 = vmul.f32 %v818, %v847
        %v858 = vmul.f32 %v819, %v847
        %v859 = vmul.f32 %v820, %v847
        %v860 = vmul.f32 %v821, %v847
        %v861 = vmul.f32 %v822, %v847
        %v862 = vmul.f32 %v823, %v847
        %v863 = vmul.f32 %v824, %v847
        %v864 = vmul.f32 %v825, %v847
        %v865 = vmul.f32 %v826, %v847
        %v866 = vmul.f32 %v827, %v847
        %v867 = vmul.f32 %v828, %v847
        %v868 = vmul.f32 %v829, %v847
        %v869 = vmul.f32 %v830, %v847
        %v870 = vmul.f32 %v831, %v847
        %v871 = vmul.f32 %v832, %v847
        %v872 = vmul.f32 %v833, %v847
        %v873 = vmul.f32 %v834, %v847
        %v874 = vmul.f32 %v835, %v847
        %v875 = vmul.f32 %v836, %v847
        %v876 = vmul.f32 %v837, %v847
        %v877 = vmul.f32 %v838, %v847
        %v878 = vmul.f32 %v839, %v847
        %v879 = vmul.f32 %v840, %v847
        %v880 = vmul.f32 %v841, %v847
        %v881 = vld [vmem:[%s2] sm:$0x1]
        %v883 = vlaneseq
        %v884 = vshrl.u32 %v883, 7
        %v885 = vsub.s32 0, %v884
        %v886 = vrot.slane %v881, %v885
        %v888 = vadd.f32 %v849, %v886
        %v889 = vadd.f32 %v850, %v886
        %v890 = vadd.f32 %v851, %v886
        %v891 = vadd.f32 %v852, %v886
        %v892 = vadd.f32 %v853, %v886
        %v893 = vadd.f32 %v854, %v886
        %v894 = vadd.f32 %v855, %v886
        %v895 = vadd.f32 %v856, %v886
        %v896 = vadd.f32 %v857, %v886
        %v897 = vadd.f32 %v858, %v886
        %v898 = vadd.f32 %v859, %v886
        %v899 = vadd.f32 %v860, %v886
        %v900 = vadd.f32 %v861, %v886
        %v901 = vadd.f32 %v862, %v886
        %v902 = vadd.f32 %v863, %v886
        %v903 = vadd.f32 %v864, %v886
        %v904 = vadd.f32 %v865, %v886
        %v905 = vadd.f32 %v866, %v886
        %v906 = vadd.f32 %v867, %v886
        %v907 = vadd.f32 %v868, %v886
        %v908 = vadd.f32 %v869, %v886
        %v909 = vadd.f32 %v870, %v886
        %v910 = vadd.f32 %v871, %v886
        %v911 = vadd.f32 %v872, %v886
        %v912 = vadd.f32 %v873, %v886
        %v913 = vadd.f32 %v874, %v886
        %v914 = vadd.f32 %v875, %v886
        %v915 = vadd.f32 %v876, %v886
        %v916 = vadd.f32 %v877, %v886
        %v917 = vadd.f32 %v878, %v886
        %v918 = vadd.f32 %v879, %v886
        %v919 = vadd.f32 %v880, %v886
        %v920 = vpack.c.bf16 %v889, %v888
        %v921 = vpack.c.bf16 %v891, %v890
        %v922 = vpack.c.bf16 %v893, %v892
        %v923 = vpack.c.bf16 %v895, %v894
        %v924 = vpack.c.bf16 %v897, %v896
        %v925 = vpack.c.bf16 %v899, %v898
        %v926 = vpack.c.bf16 %v901, %v900
        %v927 = vpack.c.bf16 %v903, %v902
        %v928 = vpack.c.bf16 %v905, %v904
        %v929 = vpack.c.bf16 %v907, %v906
        %v930 = vpack.c.bf16 %v909, %v908
        %v931 = vpack.c.bf16 %v911, %v910
        %v932 = vpack.c.bf16 %v913, %v912
        %v933 = vpack.c.bf16 %v915, %v914
        %v934 = vpack.c.bf16 %v917, %v916
        %v935 = vpack.c.bf16 %v919, %v918
        %v936 = vld [vmem:[#allocation5] sm:$0xff]
        %v937 = vld [vmem:[#allocation5 + $0x8] sm:$0xff]
        %v938 = vld [vmem:[#allocation5 + $0x10] sm:$0xff]
        %v939 = vld [vmem:[#allocation5 + $0x18] sm:$0xff]
        %v940 = vld [vmem:[#allocation5 + $0x20] sm:$0xff]
        %v941 = vld [vmem:[#allocation5 + $0x28] sm:$0xff]
        %v942 = vld [vmem:[#allocation5 + $0x30] sm:$0xff]
        %v943 = vld [vmem:[#allocation5 + $0x38] sm:$0xff]
        %v944 = vld [vmem:[#allocation5 + $0x40] sm:$0xff]
        %v945 = vld [vmem:[#allocation5 + $0x48] sm:$0xff]
        %v946 = vld [vmem:[#allocation5 + $0x50] sm:$0xff]
        %v947 = vld [vmem:[#allocation5 + $0x58] sm:$0xff]
        %v948 = vld [vmem:[#allocation5 + $0x60] sm:$0xff]
        %v949 = vld [vmem:[#allocation5 + $0x68] sm:$0xff]
        %v950 = vld [vmem:[#allocation5 + $0x70] sm:$0xff]
        %v951 = vld [vmem:[#allocation5 + $0x78] sm:$0xff]
        %v952 = vld [vmem:[%s4] sm:$0x3]
        %v954 = vlaneseq
        %v955 = vshrl.u32 %v954, 7
        %v956 = vsub.s32 0, %v955
        %v957 = vrot.slane %v952, %v956
        %v958 = vlaneseq
        %v959 = vshrl.u32 %v958, 7
        %v960 = vsub.s32 1, %v959
        %v961 = vrot.slane %v952, %v960
        %v980 = vunpack.c.l.b16 %v936
        %v981 = vunpack.c.h.b16 %v936
        %v982 = vunpack.c.l.b16 %v937
        %v983 = vunpack.c.h.b16 %v937
        %v984 = vunpack.c.l.b16 %v938
        %v985 = vunpack.c.h.b16 %v938
        %v986 = vunpack.c.l.b16 %v939
        %v987 = vunpack.c.h.b16 %v939
        %v988 = vunpack.c.l.b16 %v940
        %v989 = vunpack.c.h.b16 %v940
        %v990 = vunpack.c.l.b16 %v941
        %v991 = vunpack.c.h.b16 %v941
        %v992 = vunpack.c.l.b16 %v942
        %v993 = vunpack.c.h.b16 %v942
        %v994 = vunpack.c.l.b16 %v943
        %v995 = vunpack.c.h.b16 %v943
        %v996 = vunpack.c.l.b16 %v944
        %v997 = vunpack.c.h.b16 %v944
        %v998 = vunpack.c.l.b16 %v945
        %v999 = vunpack.c.h.b16 %v945
        %v1000 = vunpack.c.l.b16 %v946
        %v1001 = vunpack.c.h.b16 %v946
        %v1002 = vunpack.c.l.b16 %v947
        %v1003 = vunpack.c.h.b16 %v947
        %v1004 = vunpack.c.l.b16 %v948
        %v1005 = vunpack.c.h.b16 %v948
        %v1006 = vunpack.c.l.b16 %v949
        %v1007 = vunpack.c.h.b16 %v949
        %v1008 = vunpack.c.l.b16 %v950
        %v1009 = vunpack.c.h.b16 %v950
        %v1010 = vunpack.c.l.b16 %v951
        %v1011 = vunpack.c.h.b16 %v951
        %v1012 = vpack.c.b16 %v982, %v980
        %v1013 = vpack.c.b16 %v983, %v981
        %v1014 = vpack.c.b16 %v986, %v984
        %v1015 = vpack.c.b16 %v987, %v985
        %v1016 = vpack.c.b16 %v990, %v988
        %v1017 = vpack.c.b16 %v991, %v989
        %v1018 = vpack.c.b16 %v994, %v992
        %v1019 = vpack.c.b16 %v995, %v993
        %v1020 = vpack.c.b16 %v998, %v996
        %v1021 = vpack.c.b16 %v999, %v997
        %v1022 = vpack.c.b16 %v1002, %v1000
        %v1023 = vpack.c.b16 %v1003, %v1001
        %v1024 = vpack.c.b16 %v1006, %v1004
        %v1025 = vpack.c.b16 %v1007, %v1005
        %v1026 = vpack.c.b16 %v1010, %v1008
        %v1027 = vpack.c.b16 %v1011, %v1009
        %1044 = vmatprep.subr.bf16.mxu0 %v1013
        %1045 = vmatpush1.bf16.msra.mxu0 %v1012
        %1046 = vmatprep.subr.bf16.mxu0 %v1015
        %1047 = vmatpush1.bf16.msra.mxu0 %v1014
        %1048 = vmatprep.subr.bf16.mxu0 %v1017
        %1049 = vmatpush1.bf16.msra.mxu0 %v1016
        %1050 = vmatprep.subr.bf16.mxu0 %v1019
        %1051 = vmatpush1.bf16.msra.mxu0 %v1018
        %1052 = vmatprep.subr.bf16.mxu0 %v1021
        %1053 = vmatpush1.bf16.msra.mxu0 %v1020
        %1054 = vmatprep.subr.bf16.mxu0 %v1023
        %1055 = vmatpush1.bf16.msra.mxu0 %v1022
        %1056 = vmatprep.subr.bf16.mxu0 %v1025
        %1057 = vmatpush1.bf16.msra.mxu0 %v1024
        %1058 = vmatprep.subr.bf16.mxu0 %v1027
        %1059 = vmatpush1.bf16.msra.mxu0 %v1026
        %1060 = vmatprep.subr.bf16.mxu0 0
        %1061 = vmatpush1.bf16.msra.mxu0 0
        %1062 = vmatprep.subr.bf16.mxu0 0
        %1063 = vmatpush1.bf16.msra.mxu0 0
        %1064 = vmatprep.subr.bf16.mxu0 0
        %1065 = vmatpush1.bf16.msra.mxu0 0
        %1066 = vmatprep.subr.bf16.mxu0 0
        %1067 = vmatpush1.bf16.msra.mxu0 0
        %1068 = vmatprep.subr.bf16.mxu0 0
        %1069 = vmatpush1.bf16.msra.mxu0 0
        %1070 = vmatprep.subr.bf16.mxu0 0
        %1071 = vmatpush1.bf16.msra.mxu0 0
        %1072 = vmatprep.subr.bf16.mxu0 0
        %1073 = vmatpush1.bf16.msra.mxu0 0
        %1074 = vmatprep.subr.bf16.mxu0 0
        %1075 = vmatpush1.bf16.msra.mxu0 0
        %1076 = vmatprep.mubr.bf16.mxu0 0
        %1077 = vmatmul.mubr.bf16.gmra.mrb[0].mxu0 %v920
        %v1078 = vpop.f32.mrb[0].mxu0
        %v1079 = vadd.f32 %v957, %v1078
        %v1080 = vpop.f32.mrb[0].mxu0
        %v1081 = vadd.f32 %v961, %v1080
        %v1082 = vpop.f32.mrb[0].mxu0
        %v1083 = vadd.f32 %v957, %v1082
        %v1084 = vpop.f32.mrb[0].mxu0
        %v1085 = vadd.f32 %v961, %v1084
        %1086 = vmatprep.mubr.bf16.mxu0 0
        %1087 = vmatmul.mubr.bf16.gmra.mrb[0].mxu0 %v921
        %v1088 = vpop.f32.mrb[0].mxu0
        %v1089 = vadd.f32 %v957, %v1088
        %v1090 = vpop.f32.mrb[0].mxu0
        %v1091 = vadd.f32 %v961, %v1090
        %v1092 = vpop.f32.mrb[0].mxu0
        %v1093 = vadd.f32 %v957, %v1092
        %v1094 = vpop.f32.mrb[0].mxu0
        %v1095 = vadd.f32 %v961, %v1094
        %1096 = vmatprep.mubr.bf16.mxu0 0
        %1097 = vmatmul.mubr.bf16.gmra.mrb[0].mxu0 %v922
        %v1098 = vpop.f32.mrb[0].mxu0
        %v1099 = vadd.f32 %v957, %v1098
        %v1100 = vpop.f32.mrb[0].mxu0
        %v1101 = vadd.f32 %v961, %v1100
        %v1102 = vpop.f32.mrb[0].mxu0
        %v1103 = vadd.f32 %v957, %v1102
        %v1104 = vpop.f32.mrb[0].mxu0
        %v1105 = vadd.f32 %v961, %v1104
        %1106 = vmatprep.mubr.bf16.mxu0 0
        %1107 = vmatmul.mubr.bf16.gmra.mrb[0].mxu0 %v923
        %v1108 = vpop.f32.mrb[0].mxu0
        %v1109 = vadd.f32 %v957, %v1108
        %v1110 = vpop.f32.mrb[0].mxu0
        %v1111 = vadd.f32 %v961, %v1110
        %v1112 = vpop.f32.mrb[0].mxu0
        %v1113 = vadd.f32 %v957, %v1112
        %v1114 = vpop.f32.mrb[0].mxu0
        %v1115 = vadd.f32 %v961, %v1114
        %1116 = vmatprep.mubr.bf16.mxu0 0
        %1117 = vmatmul.mubr.bf16.gmra.mrb[0].mxu0 %v924
        %v1118 = vpop.f32.mrb[0].mxu0
        %v1119 = vadd.f32 %v957, %v1118
        %v1120 = vpop.f32.mrb[0].mxu0
        %v1121 = vadd.f32 %v961, %v1120
        %v1122 = vpop.f32.mrb[0].mxu0
        %v1123 = vadd.f32 %v957, %v1122
        %v1124 = vpop.f32.mrb[0].mxu0
        %v1125 = vadd.f32 %v961, %v1124
        %1126 = vmatprep.mubr.bf16.mxu0 0
        %1127 = vmatmul.mubr.bf16.gmra.mrb[0].mxu0 %v925
        %v1128 = vpop.f32.mrb[0].mxu0
        %v1129 = vadd.f32 %v957, %v1128
        %v1130 = vpop.f32.mrb[0].mxu0
        %v1131 = vadd.f32 %v961, %v1130
        %v1132 = vpop.f32.mrb[0].mxu0
        %v1133 = vadd.f32 %v957, %v1132
        %v1134 = vpop.f32.mrb[0].mxu0
        %v1135 = vadd.f32 %v961, %v1134
        %1136 = vmatprep.mubr.bf16.mxu0 0
        %1137 = vmatmul.mubr.bf16.gmra.mrb[0].mxu0 %v926
        %v1138 = vpop.f32.mrb[0].mxu0
        %v1139 = vadd.f32 %v957, %v1138
        %v1140 = vpop.f32.mrb[0].mxu0
        %v1141 = vadd.f32 %v961, %v1140
        %v1142 = vpop.f32.mrb[0].mxu0
        %v1143 = vadd.f32 %v957, %v1142
        %v1144 = vpop.f32.mrb[0].mxu0
        %v1145 = vadd.f32 %v961, %v1144
        %1146 = vmatprep.mubr.bf16.mxu0 0
        %1147 = vmatmul.mubr.bf16.gmra.mrb[0].mxu0 %v927
        %v1148 = vpop.f32.mrb[0].mxu0
        %v1149 = vadd.f32 %v957, %v1148
        %v1150 = vpop.f32.mrb[0].mxu0
        %v1151 = vadd.f32 %v961, %v1150
        %v1152 = vpop.f32.mrb[0].mxu0
        %v1153 = vadd.f32 %v957, %v1152
        %v1154 = vpop.f32.mrb[0].mxu0
        %v1155 = vadd.f32 %v961, %v1154
        %1156 = vmatprep.mubr.bf16.mxu0 0
        %1157 = vmatmul.mubr.bf16.gmra.mrb[0].mxu0 %v928
        %v1158 = vpop.f32.mrb[0].mxu0
        %v1159 = vadd.f32 %v957, %v1158
        %v1160 = vpop.f32.mrb[0].mxu0
        %v1161 = vadd.f32 %v961, %v1160
        %v1162 = vpop.f32.mrb[0].mxu0
        %v1163 = vadd.f32 %v957, %v1162
        %v1164 = vpop.f32.mrb[0].mxu0
        %v1165 = vadd.f32 %v961, %v1164
        %1166 = vmatprep.mubr.bf16.mxu0 0
        %1167 = vmatmul.mubr.bf16.gmra.mrb[0].mxu0 %v929
        %v1168 = vpop.f32.mrb[0].mxu0
        %v1169 = vadd.f32 %v957, %v1168
        %v1170 = vpop.f32.mrb[0].mxu0
        %v1171 = vadd.f32 %v961, %v1170
        %v1172 = vpop.f32.mrb[0].mxu0
        %v1173 = vadd.f32 %v957, %v1172
        %v1174 = vpop.f32.mrb[0].mxu0
        %v1175 = vadd.f32 %v961, %v1174
        %1176 = vmatprep.mubr.bf16.mxu0 0
        %1177 = vmatmul.mubr.bf16.gmra.mrb[0].mxu0 %v930
        %v1178 = vpop.f32.mrb[0].mxu0
        %v1179 = vadd.f32 %v957, %v1178
        %v1180 = vpop.f32.mrb[0].mxu0
        %v1181 = vadd.f32 %v961, %v1180
        %v1182 = vpop.f32.mrb[0].mxu0
        %v1183 = vadd.f32 %v957, %v1182
        %v1184 = vpop.f32.mrb[0].mxu0
        %v1185 = vadd.f32 %v961, %v1184
        %1186 = vmatprep.mubr.bf16.mxu0 0
        %1187 = vmatmul.mubr.bf16.gmra.mrb[0].mxu0 %v931
        %v1188 = vpop.f32.mrb[0].mxu0
        %v1189 = vadd.f32 %v957, %v1188
        %v1190 = vpop.f32.mrb[0].mxu0
        %v1191 = vadd.f32 %v961, %v1190
        %v1192 = vpop.f32.mrb[0].mxu0
        %v1193 = vadd.f32 %v957, %v1192
        %v1194 = vpop.f32.mrb[0].mxu0
        %v1195 = vadd.f32 %v961, %v1194
        %1196 = vmatprep.mubr.bf16.mxu0 0
        %1197 = vmatmul.mubr.bf16.gmra.mrb[0].mxu0 %v932
        %v1198 = vpop.f32.mrb[0].mxu0
        %v1199 = vadd.f32 %v957, %v1198
        %v1200 = vpop.f32.mrb[0].mxu0
        %v1201 = vadd.f32 %v961, %v1200
        %v1202 = vpop.f32.mrb[0].mxu0
        %v1203 = vadd.f32 %v957, %v1202
        %v1204 = vpop.f32.mrb[0].mxu0
        %v1205 = vadd.f32 %v961, %v1204
        %1206 = vmatprep.mubr.bf16.mxu0 0
        %1207 = vmatmul.mubr.bf16.gmra.mrb[0].mxu0 %v933
        %v1208 = vpop.f32.mrb[0].mxu0
        %v1209 = vadd.f32 %v957, %v1208
        %v1210 = vpop.f32.mrb[0].mxu0
        %v1211 = vadd.f32 %v961, %v1210
        %v1212 = vpop.f32.mrb[0].mxu0
        %v1213 = vadd.f32 %v957, %v1212
        %v1214 = vpop.f32.mrb[0].mxu0
        %v1215 = vadd.f32 %v961, %v1214
        %1216 = vmatprep.mubr.bf16.mxu0 0
        %1217 = vmatmul.mubr.bf16.gmra.mrb[0].mxu0 %v934
        %v1218 = vpop.f32.mrb[0].mxu0
        %v1219 = vadd.f32 %v957, %v1218
        %v1220 = vpop.f32.mrb[0].mxu0
        %v1221 = vadd.f32 %v961, %v1220
        %v1222 = vpop.f32.mrb[0].mxu0
        %v1223 = vadd.f32 %v957, %v1222
        %v1224 = vpop.f32.mrb[0].mxu0
        %v1225 = vadd.f32 %v961, %v1224
        %1226 = vmatprep.mubr.bf16.mxu0 0
        %1227 = vmatmul.mubr.bf16.gmra.mrb[0].mxu0 %v935
        %v1228 = vpop.f32.mrb[0].mxu0
        %v1229 = vadd.f32 %v957, %v1228
        %v1230 = vpop.f32.mrb[0].mxu0
        %v1231 = vadd.f32 %v961, %v1230
        %v1232 = vpop.f32.mrb[0].mxu0
        %v1233 = vadd.f32 %v957, %v1232
        %v1234 = vpop.f32.mrb[0].mxu0
        %v1235 = vadd.f32 %v961, %v1234
        %1236 = vdwg.mxu0
        %v1237 = vmax.f32 %v1079, 0.0
        %v1238 = vmax.f32 %v1081, 0.0
        %v1239 = vmax.f32 %v1083, 0.0
        %v1240 = vmax.f32 %v1085, 0.0
        %v1241 = vmax.f32 %v1089, 0.0
        %v1242 = vmax.f32 %v1091, 0.0
        %v1243 = vmax.f32 %v1093, 0.0
        %v1244 = vmax.f32 %v1095, 0.0
        %v1245 = vmax.f32 %v1099, 0.0
        %v1246 = vmax.f32 %v1101, 0.0
        %v1247 = vmax.f32 %v1103, 0.0
        %v1248 = vmax.f32 %v1105, 0.0
        %v1249 = vmax.f32 %v1109, 0.0
        %v1250 = vmax.f32 %v1111, 0.0
        %v1251 = vmax.f32 %v1113, 0.0
        %v1252 = vmax.f32 %v1115, 0.0
        %v1253 = vmax.f32 %v1119, 0.0
        %v1254 = vmax.f32 %v1121, 0.0
        %v1255 = vmax.f32 %v1123, 0.0
        %v1256 = vmax.f32 %v1125, 0.0
        %v1257 = vmax.f32 %v1129, 0.0
        %v1258 = vmax.f32 %v1131, 0.0
        %v1259 = vmax.f32 %v1133, 0.0
        %v1260 = vmax.f32 %v1135, 0.0
        %v1261 = vmax.f32 %v1139, 0.0
        %v1262 = vmax.f32 %v1141, 0.0
        %v1263 = vmax.f32 %v1143, 0.0
        %v1264 = vmax.f32 %v1145, 0.0
        %v1265 = vmax.f32 %v1149, 0.0
        %v1266 = vmax.f32 %v1151, 0.0
        %v1267 = vmax.f32 %v1153, 0.0
        %v1268 = vmax.f32 %v1155, 0.0
        %v1269 = vmax.f32 %v1159, 0.0
        %v1270 = vmax.f32 %v1161, 0.0
        %v1271 = vmax.f32 %v1163, 0.0
        %v1272 = vmax.f32 %v1165, 0.0
        %v1273 = vmax.f32 %v1169, 0.0
        %v1274 = vmax.f32 %v1171, 0.0
        %v1275 = vmax.f32 %v1173, 0.0
        %v1276 = vmax.f32 %v1175, 0.0
        %v1277 = vmax.f32 %v1179, 0.0
        %v1278 = vmax.f32 %v1181, 0.0
        %v1279 = vmax.f32 %v1183, 0.0
        %v1280 = vmax.f32 %v1185, 0.0
        %v1281 = vmax.f32 %v1189, 0.0
        %v1282 = vmax.f32 %v1191, 0.0
        %v1283 = vmax.f32 %v1193, 0.0
        %v1284 = vmax.f32 %v1195, 0.0
        %v1285 = vmax.f32 %v1199, 0.0
        %v1286 = vmax.f32 %v1201, 0.0
        %v1287 = vmax.f32 %v1203, 0.0
        %v1288 = vmax.f32 %v1205, 0.0
        %v1289 = vmax.f32 %v1209, 0.0
        %v1290 = vmax.f32 %v1211, 0.0
        %v1291 = vmax.f32 %v1213, 0.0
        %v1292 = vmax.f32 %v1215, 0.0
        %v1293 = vmax.f32 %v1219, 0.0
        %v1294 = vmax.f32 %v1221, 0.0
        %v1295 = vmax.f32 %v1223, 0.0
        %v1296 = vmax.f32 %v1225, 0.0
        %v1297 = vmax.f32 %v1229, 0.0
        %v1298 = vmax.f32 %v1231, 0.0
        %v1299 = vmax.f32 %v1233, 0.0
        %v1300 = vmax.f32 %v1235, 0.0
        %v1301 = vpack.c.bf16 %v1239, %v1237
        %v1302 = vpack.c.bf16 %v1240, %v1238
        %v1303 = vpack.c.bf16 %v1243, %v1241
        %v1304 = vpack.c.bf16 %v1244, %v1242
        %v1305 = vpack.c.bf16 %v1247, %v1245
        %v1306 = vpack.c.bf16 %v1248, %v1246
        %v1307 = vpack.c.bf16 %v1251, %v1249
        %v1308 = vpack.c.bf16 %v1252, %v1250
        %v1309 = vpack.c.bf16 %v1255, %v1253
        %v1310 = vpack.c.bf16 %v1256, %v1254
        %v1311 = vpack.c.bf16 %v1259, %v1257
        %v1312 = vpack.c.bf16 %v1260, %v1258
        %v1313 = vpack.c.bf16 %v1263, %v1261
        %v1314 = vpack.c.bf16 %v1264, %v1262
        %v1315 = vpack.c.bf16 %v1267, %v1265
        %v1316 = vpack.c.bf16 %v1268, %v1266
        %v1317 = vpack.c.bf16 %v1271, %v1269
        %v1318 = vpack.c.bf16 %v1272, %v1270
        %v1319 = vpack.c.bf16 %v1275, %v1273
        %v1320 = vpack.c.bf16 %v1276, %v1274
        %v1321 = vpack.c.bf16 %v1279, %v1277
        %v1322 = vpack.c.bf16 %v1280, %v1278
        %v1323 = vpack.c.bf16 %v1283, %v1281
        %v1324 = vpack.c.bf16 %v1284, %v1282
        %v1325 = vpack.c.bf16 %v1287, %v1285
        %v1326 = vpack.c.bf16 %v1288, %v1286
        %v1327 = vpack.c.bf16 %v1291, %v1289
        %v1328 = vpack.c.bf16 %v1292, %v1290
        %v1329 = vpack.c.bf16 %v1295, %v1293
        %v1330 = vpack.c.bf16 %v1296, %v1294
        %v1331 = vpack.c.bf16 %v1299, %v1297
        %v1332 = vpack.c.bf16 %v1300, %v1298
        %v1333 = vld [vmem:[#allocation7] sm:$0xf]
        %v1334 = vld [vmem:[#allocation7 + $0x4] sm:$0xf]
        %v1335 = vld [vmem:[#allocation7 + $0x8] sm:$0xf]
        %v1336 = vld [vmem:[#allocation7 + $0xc] sm:$0xf]
        %v1337 = vld [vmem:[#allocation7 + $0x10] sm:$0xf]
        %v1338 = vld [vmem:[#allocation7 + $0x14] sm:$0xf]
        %v1339 = vld [vmem:[#allocation7 + $0x18] sm:$0xf]
        %v1340 = vld [vmem:[#allocation7 + $0x1c] sm:$0xf]
        %v1341 = vld [vmem:[#allocation7 + $0x20] sm:$0xf]
        %v1342 = vld [vmem:[#allocation7 + $0x24] sm:$0xf]
        %v1343 = vld [vmem:[#allocation7 + $0x28] sm:$0xf]
        %v1344 = vld [vmem:[#allocation7 + $0x2c] sm:$0xf]
        %v1345 = vld [vmem:[#allocation7 + $0x30] sm:$0xf]
        %v1346 = vld [vmem:[#allocation7 + $0x34] sm:$0xf]
        %v1347 = vld [vmem:[#allocation7 + $0x38] sm:$0xf]
        %v1348 = vld [vmem:[#allocation7 + $0x3c] sm:$0xf]
        %v1349 = vld [vmem:[#allocation7 + $0x40] sm:$0xf]
        %v1350 = vld [vmem:[#allocation7 + $0x44] sm:$0xf]
        %v1351 = vld [vmem:[#allocation7 + $0x48] sm:$0xf]
        %v1352 = vld [vmem:[#allocation7 + $0x4c] sm:$0xf]
        %v1353 = vld [vmem:[#allocation7 + $0x50] sm:$0xf]
        %v1354 = vld [vmem:[#allocation7 + $0x54] sm:$0xf]
        %v1355 = vld [vmem:[#allocation7 + $0x58] sm:$0xf]
        %v1356 = vld [vmem:[#allocation7 + $0x5c] sm:$0xf]
        %v1357 = vld [vmem:[#allocation7 + $0x60] sm:$0xf]
        %v1358 = vld [vmem:[#allocation7 + $0x64] sm:$0xf]
        %v1359 = vld [vmem:[#allocation7 + $0x68] sm:$0xf]
        %v1360 = vld [vmem:[#allocation7 + $0x6c] sm:$0xf]
        %v1361 = vld [vmem:[#allocation7 + $0x70] sm:$0xf]
        %v1362 = vld [vmem:[#allocation7 + $0x74] sm:$0xf]
        %v1363 = vld [vmem:[#allocation7 + $0x78] sm:$0xf]
        %v1364 = vld [vmem:[#allocation7 + $0x7c] sm:$0xf]
        %v1365 = vld [vmem:[%s6] sm:$0x1]
        %v1367 = vlaneseq
        %v1368 = vshrl.u32 %v1367, 7
        %v1369 = vsub.s32 0, %v1368
        %v1370 = vrot.slane %v1365, %v1369
        %v1404 = vunpack.c.l.b16 %v1333
        %v1405 = vunpack.c.l.b16 %v1334
        %v1406 = vunpack.c.l.b16 %v1335
        %v1407 = vunpack.c.l.b16 %v1336
        %v1408 = vunpack.c.l.b16 %v1337
        %v1409 = vunpack.c.l.b16 %v1338
        %v1410 = vunpack.c.l.b16 %v1339
        %v1411 = vunpack.c.l.b16 %v1340
        %v1412 = vunpack.c.l.b16 %v1341
        %v1413 = vunpack.c.l.b16 %v1342
        %v1414 = vunpack.c.l.b16 %v1343
        %v1415 = vunpack.c.l.b16 %v1344
        %v1416 = vunpack.c.l.b16 %v1345
        %v1417 = vunpack.c.l.b16 %v1346
        %v1418 = vunpack.c.l.b16 %v1347
        %v1419 = vunpack.c.l.b16 %v1348
        %v1420 = vunpack.c.l.b16 %v1349
        %v1421 = vunpack.c.l.b16 %v1350
        %v1422 = vunpack.c.l.b16 %v1351
        %v1423 = vunpack.c.l.b16 %v1352
        %v1424 = vunpack.c.l.b16 %v1353
        %v1425 = vunpack.c.l.b16 %v1354
        %v1426 = vunpack.c.l.b16 %v1355
        %v1427 = vunpack.c.l.b16 %v1356
        %v1428 = vunpack.c.l.b16 %v1357
        %v1429 = vunpack.c.l.b16 %v1358
        %v1430 = vunpack.c.l.b16 %v1359
        %v1431 = vunpack.c.l.b16 %v1360
        %v1432 = vunpack.c.l.b16 %v1361
        %v1433 = vunpack.c.l.b16 %v1362
        %v1434 = vunpack.c.l.b16 %v1363
        %v1435 = vunpack.c.l.b16 %v1364
        %v1436 = vpack.c.b16 %v1405, %v1404
        %v1437 = vpack.c.b16 %v1407, %v1406
        %v1438 = vpack.c.b16 %v1409, %v1408
        %v1439 = vpack.c.b16 %v1411, %v1410
        %v1440 = vpack.c.b16 %v1413, %v1412
        %v1441 = vpack.c.b16 %v1415, %v1414
        %v1442 = vpack.c.b16 %v1417, %v1416
        %v1443 = vpack.c.b16 %v1419, %v1418
        %v1444 = vpack.c.b16 %v1421, %v1420
        %v1445 = vpack.c.b16 %v1423, %v1422
        %v1446 = vpack.c.b16 %v1425, %v1424
        %v1447 = vpack.c.b16 %v1427, %v1426
        %v1448 = vpack.c.b16 %v1429, %v1428
        %v1449 = vpack.c.b16 %v1431, %v1430
        %v1450 = vpack.c.b16 %v1433, %v1432
        %v1451 = vpack.c.b16 %v1435, %v1434
        %1468 = vmatprep.subr.bf16.mxu0 0
        %1469 = vmatpush1.bf16.msra.mxu0 %v1436
        %1470 = vmatprep.subr.bf16.mxu0 0
        %1471 = vmatpush1.bf16.msra.mxu0 %v1437
        %1472 = vmatprep.subr.bf16.mxu0 0
        %1473 = vmatpush1.bf16.msra.mxu0 %v1438
        %1474 = vmatprep.subr.bf16.mxu0 0
        %1475 = vmatpush1.bf16.msra.mxu0 %v1439
        %1476 = vmatprep.subr.bf16.mxu0 0
        %1477 = vmatpush1.bf16.msra.mxu0 %v1440
        %1478 = vmatprep.subr.bf16.mxu0 0
        %1479 = vmatpush1.bf16.msra.mxu0 %v1441
        %1480 = vmatprep.subr.bf16.mxu0 0
        %1481 = vmatpush1.bf16.msra.mxu0 %v1442
        %1482 = vmatprep.subr.bf16.mxu0 0
        %1483 = vmatpush1.bf16.msra.mxu0 %v1443
        %1484 = vmatprep.subr.bf16.mxu0 0
        %1485 = vmatpush1.bf16.msra.mxu0 %v1444
        %1486 = vmatprep.subr.bf16.mxu0 0
        %1487 = vmatpush1.bf16.msra.mxu0 %v1445
        %1488 = vmatprep.subr.bf16.mxu0 0
        %1489 = vmatpush1.bf16.msra.mxu0 %v1446
        %1490 = vmatprep.subr.bf16.mxu0 0
        %1491 = vmatpush1.bf16.msra.mxu0 %v1447
        %1492 = vmatprep.subr.bf16.mxu0 0
        %1493 = vmatpush1.bf16.msra.mxu0 %v1448
        %1494 = vmatprep.subr.bf16.mxu0 0
        %1495 = vmatpush1.bf16.msra.mxu0 %v1449
        %1496 = vmatprep.subr.bf16.mxu0 0
        %1497 = vmatpush1.bf16.msra.mxu0 %v1450
        %1498 = vmatprep.subr.bf16.mxu0 0
        %1499 = vmatpush1.bf16.msra.mxu0 %v1451
        %1500 = vmatprep.mubr.bf16.mxu0 %v1302
        %1501 = vmatmul.mubr.bf16.gmra.mrb[0].mxu0 %v1301
        %v1502 = vpop.f32.mrb[0].mxu0
        %v1503 = vadd.f32 %v1370, %v1502
        %v1504 = vpop.f32.mrb[0].mxu0
        %v1505 = vpop.f32.mrb[0].mxu0
        %v1506 = vadd.f32 %v1370, %v1505
        %v1507 = vpop.f32.mrb[0].mxu0
        %1508 = vmatprep.mubr.bf16.mxu0 %v1304
        %1509 = vmatmul.mubr.bf16.gmra.mrb[0].mxu0 %v1303
        %v1510 = vpop.f32.mrb[0].mxu0
        %v1511 = vadd.f32 %v1370, %v1510
        %v1512 = vpop.f32.mrb[0].mxu0
        %v1513 = vpop.f32.mrb[0].mxu0
        %v1514 = vadd.f32 %v1370, %v1513
        %v1515 = vpop.f32.mrb[0].mxu0
        %1516 = vmatprep.mubr.bf16.mxu0 %v1306
        %1517 = vmatmul.mubr.bf16.gmra.mrb[0].mxu0 %v1305
        %v1518 = vpop.f32.mrb[0].mxu0
        %v1519 = vadd.f32 %v1370, %v1518
        %v1520 = vpop.f32.mrb[0].mxu0
        %v1521 = vpop.f32.mrb[0].mxu0
        %v1522 = vadd.f32 %v1370, %v1521
        %v1523 = vpop.f32.mrb[0].mxu0
        %1524 = vmatprep.mubr.bf16.mxu0 %v1308
        %1525 = vmatmul.mubr.bf16.gmra.mrb[0].mxu0 %v1307
        %v1526 = vpop.f32.mrb[0].mxu0
        %v1527 = vadd.f32 %v1370, %v1526
        %v1528 = vpop.f32.mrb[0].mxu0
        %v1529 = vpop.f32.mrb[0].mxu0
        %v1530 = vadd.f32 %v1370, %v1529
        %v1531 = vpop.f32.mrb[0].mxu0
        %1532 = vmatprep.mubr.bf16.mxu0 %v1310
        %1533 = vmatmul.mubr.bf16.gmra.mrb[0].mxu0 %v1309
        %v1534 = vpop.f32.mrb[0].mxu0
        %v1535 = vadd.f32 %v1370, %v1534
        %v1536 = vpop.f32.mrb[0].mxu0
        %v1537 = vpop.f32.mrb[0].mxu0
        %v1538 = vadd.f32 %v1370, %v1537
        %v1539 = vpop.f32.mrb[0].mxu0
        %1540 = vmatprep.mubr.bf16.mxu0 %v1312
        %1541 = vmatmul.mubr.bf16.gmra.mrb[0].mxu0 %v1311
        %v1542 = vpop.f32.mrb[0].mxu0
        %v1543 = vadd.f32 %v1370, %v1542
        %v1544 = vpop.f32.mrb[0].mxu0
        %v1545 = vpop.f32.mrb[0].mxu0
        %v1546 = vadd.f32 %v1370, %v1545
        %v1547 = vpop.f32.mrb[0].mxu0
        %1548 = vmatprep.mubr.bf16.mxu0 %v1314
        %1549 = vmatmul.mubr.bf16.gmra.mrb[0].mxu0 %v1313
        %v1550 = vpop.f32.mrb[0].mxu0
        %v1551 = vadd.f32 %v1370, %v1550
        %v1552 = vpop.f32.mrb[0].mxu0
        %v1553 = vpop.f32.mrb[0].mxu0
        %v1554 = vadd.f32 %v1370, %v1553
        %v1555 = vpop.f32.mrb[0].mxu0
        %1556 = vmatprep.mubr.bf16.mxu0 %v1316
        %1557 = vmatmul.mubr.bf16.gmra.mrb[0].mxu0 %v1315
        %v1558 = vpop.f32.mrb[0].mxu0
        %v1559 = vadd.f32 %v1370, %v1558
        %v1560 = vpop.f32.mrb[0].mxu0
        %v1561 = vpop.f32.mrb[0].mxu0
        %v1562 = vadd.f32 %v1370, %v1561
        %v1563 = vpop.f32.mrb[0].mxu0
        %1564 = vmatprep.mubr.bf16.mxu0 %v1318
        %1565 = vmatmul.mubr.bf16.gmra.mrb[0].mxu0 %v1317
        %v1566 = vpop.f32.mrb[0].mxu0
        %v1567 = vadd.f32 %v1370, %v1566
        %v1568 = vpop.f32.mrb[0].mxu0
        %v1569 = vpop.f32.mrb[0].mxu0
        %v1570 = vadd.f32 %v1370, %v1569
        %v1571 = vpop.f32.mrb[0].mxu0
        %1572 = vmatprep.mubr.bf16.mxu0 %v1320
        %1573 = vmatmul.mubr.bf16.gmra.mrb[0].mxu0 %v1319
        %v1574 = vpop.f32.mrb[0].mxu0
        %v1575 = vadd.f32 %v1370, %v1574
        %v1576 = vpop.f32.mrb[0].mxu0
        %v1577 = vpop.f32.mrb[0].mxu0
        %v1578 = vadd.f32 %v1370, %v1577
        %v1579 = vpop.f32.mrb[0].mxu0
        %1580 = vmatprep.mubr.bf16.mxu0 %v1322
        %1581 = vmatmul.mubr.bf16.gmra.mrb[0].mxu0 %v1321
        %v1582 = vpop.f32.mrb[0].mxu0
        %v1583 = vadd.f32 %v1370, %v1582
        %v1584 = vpop.f32.mrb[0].mxu0
        %v1585 = vpop.f32.mrb[0].mxu0
        %v1586 = vadd.f32 %v1370, %v1585
        %v1587 = vpop.f32.mrb[0].mxu0
        %1588 = vmatprep.mubr.bf16.mxu0 %v1324
        %1589 = vmatmul.mubr.bf16.gmra.mrb[0].mxu0 %v1323
        %v1590 = vpop.f32.mrb[0].mxu0
        %v1591 = vadd.f32 %v1370, %v1590
        %v1592 = vpop.f32.mrb[0].mxu0
        %v1593 = vpop.f32.mrb[0].mxu0
        %v1594 = vadd.f32 %v1370, %v1593
        %v1595 = vpop.f32.mrb[0].mxu0
        %1596 = vmatprep.mubr.bf16.mxu0 %v1326
        %1597 = vmatmul.mubr.bf16.gmra.mrb[0].mxu0 %v1325
        %v1598 = vpop.f32.mrb[0].mxu0
        %v1599 = vadd.f32 %v1370, %v1598
        %v1600 = vpop.f32.mrb[0].mxu0
        %v1601 = vpop.f32.mrb[0].mxu0
        %v1602 = vadd.f32 %v1370, %v1601
        %v1603 = vpop.f32.mrb[0].mxu0
        %1604 = vmatprep.mubr.bf16.mxu0 %v1328
        %1605 = vmatmul.mubr.bf16.gmra.mrb[0].mxu0 %v1327
        %v1606 = vpop.f32.mrb[0].mxu0
        %v1607 = vadd.f32 %v1370, %v1606
        %v1608 = vpop.f32.mrb[0].mxu0
        %v1609 = vpop.f32.mrb[0].mxu0
        %v1610 = vadd.f32 %v1370, %v1609
        %v1611 = vpop.f32.mrb[0].mxu0
        %1612 = vmatprep.mubr.bf16.mxu0 %v1330
        %1613 = vmatmul.mubr.bf16.gmra.mrb[0].mxu0 %v1329
        %v1614 = vpop.f32.mrb[0].mxu0
        %v1615 = vadd.f32 %v1370, %v1614
        %v1616 = vpop.f32.mrb[0].mxu0
        %v1617 = vpop.f32.mrb[0].mxu0
        %v1618 = vadd.f32 %v1370, %v1617
        %v1619 = vpop.f32.mrb[0].mxu0
        %1620 = vmatprep.mubr.bf16.mxu0 %v1332
        %1621 = vmatmul.mubr.bf16.gmra.mrb[0].mxu0 %v1331
        %v1622 = vpop.f32.mrb[0].mxu0
        %v1623 = vadd.f32 %v1370, %v1622
        %v1624 = vpop.f32.mrb[0].mxu0
        %v1625 = vpop.f32.mrb[0].mxu0
        %v1626 = vadd.f32 %v1370, %v1625
        %v1627 = vpop.f32.mrb[0].mxu0
        %1628 = vdwg.mxu0
        %v1629 = vadd.f32 %v361, %v1503
        %v1630 = vadd.f32 %v362, %v1506
        %v1631 = vadd.f32 %v363, %v1511
        %v1632 = vadd.f32 %v364, %v1514
        %v1633 = vadd.f32 %v365, %v1519
        %v1634 = vadd.f32 %v366, %v1522
        %v1635 = vadd.f32 %v367, %v1527
        %v1636 = vadd.f32 %v368, %v1530
        %v1637 = vadd.f32 %v369, %v1535
        %v1638 = vadd.f32 %v370, %v1538
        %v1639 = vadd.f32 %v371, %v1543
        %v1640 = vadd.f32 %v372, %v1546
        %v1641 = vadd.f32 %v373, %v1551
        %v1642 = vadd.f32 %v374, %v1554
        %v1643 = vadd.f32 %v375, %v1559
        %v1644 = vadd.f32 %v376, %v1562
        %v1645 = vadd.f32 %v377, %v1567
        %v1646 = vadd.f32 %v378, %v1570
        %v1647 = vadd.f32 %v379, %v1575
        %v1648 = vadd.f32 %v380, %v1578
        %v1649 = vadd.f32 %v381, %v1583
        %v1650 = vadd.f32 %v382, %v1586
        %v1651 = vadd.f32 %v383, %v1591
        %v1652 = vadd.f32 %v384, %v1594
        %v1653 = vadd.f32 %v385, %v1599
        %v1654 = vadd.f32 %v386, %v1602
        %v1655 = vadd.f32 %v387, %v1607
        %v1656 = vadd.f32 %v388, %v1610
        %v1657 = vadd.f32 %v389, %v1615
        %v1658 = vadd.f32 %v390, %v1618
        %v1659 = vadd.f32 %v391, %v1623
        %v1660 = vadd.f32 %v392, %v1626
        %v1661 = vpack.c.bf16 %v1630, %v1629
        %v1662 = vpack.c.bf16 %v1632, %v1631
        %v1663 = vpack.c.bf16 %v1634, %v1633
        %v1664 = vpack.c.bf16 %v1636, %v1635
        %v1665 = vpack.c.bf16 %v1638, %v1637
        %v1666 = vpack.c.bf16 %v1640, %v1639
        %v1667 = vpack.c.bf16 %v1642, %v1641
        %v1668 = vpack.c.bf16 %v1644, %v1643
        %v1669 = vpack.c.bf16 %v1646, %v1645
        %v1670 = vpack.c.bf16 %v1648, %v1647
        %v1671 = vpack.c.bf16 %v1650, %v1649
        %v1672 = vpack.c.bf16 %v1652, %v1651
        %v1673 = vpack.c.bf16 %v1654, %v1653
        %v1674 = vpack.c.bf16 %v1656, %v1655
        %v1675 = vpack.c.bf16 %v1658, %v1657
        %v1676 = vpack.c.bf16 %v1660, %v1659
        %v1693 = vunpack.c.l.b16 %v1661
        %v1694 = vunpack.c.h.b16 %v1661
        %v1695 = vunpack.c.l.b16 %v1662
        %v1696 = vunpack.c.h.b16 %v1662
        %v1697 = vunpack.c.l.b16 %v1663
        %v1698 = vunpack.c.h.b16 %v1663
        %v1699 = vunpack.c.l.b16 %v1664
        %v1700 = vunpack.c.h.b16 %v1664
        %v1701 = vunpack.c.l.b16 %v1665
        %v1702 = vunpack.c.h.b16 %v1665
        %v1703 = vunpack.c.l.b16 %v1666
        %v1704 = vunpack.c.h.b16 %v1666
        %v1705 = vunpack.c.l.b16 %v1667
        %v1706 = vunpack.c.h.b16 %v1667
        %v1707 = vunpack.c.l.b16 %v1668
        %v1708 = vunpack.c.h.b16 %v1668
        %v1709 = vunpack.c.l.b16 %v1669
        %v1710 = vunpack.c.h.b16 %v1669
        %v1711 = vunpack.c.l.b16 %v1670
        %v1712 = vunpack.c.h.b16 %v1670
        %v1713 = vunpack.c.l.b16 %v1671
        %v1714 = vunpack.c.h.b16 %v1671
        %v1715 = vunpack.c.l.b16 %v1672
        %v1716 = vunpack.c.h.b16 %v1672
        %v1717 = vunpack.c.l.b16 %v1673
        %v1718 = vunpack.c.h.b16 %v1673
        %v1719 = vunpack.c.l.b16 %v1674
        %v1720 = vunpack.c.h.b16 %v1674
        %v1721 = vunpack.c.l.b16 %v1675
        %v1722 = vunpack.c.h.b16 %v1675
        %v1723 = vunpack.c.l.b16 %v1676
        %v1724 = vunpack.c.h.b16 %v1676
        %v1725 = vpack.c.b16 %v1693, %v1693
        %v1726 = vpack.c.b16 %v1694, %v1694
        %v1727 = vpack.c.b16 %v1695, %v1695
        %v1728 = vpack.c.b16 %v1696, %v1696
        %v1729 = vpack.c.b16 %v1697, %v1697
        %v1730 = vpack.c.b16 %v1698, %v1698
        %v1731 = vpack.c.b16 %v1699, %v1699
        %v1732 = vpack.c.b16 %v1700, %v1700
        %v1733 = vpack.c.b16 %v1701, %v1701
        %v1734 = vpack.c.b16 %v1702, %v1702
        %v1735 = vpack.c.b16 %v1703, %v1703
        %v1736 = vpack.c.b16 %v1704, %v1704
        %v1737 = vpack.c.b16 %v1705, %v1705
        %v1738 = vpack.c.b16 %v1706, %v1706
        %v1739 = vpack.c.b16 %v1707, %v1707
        %v1740 = vpack.c.b16 %v1708, %v1708
        %v1741 = vpack.c.b16 %v1709, %v1709
        %v1742 = vpack.c.b16 %v1710, %v1710
        %v1743 = vpack.c.b16 %v1711, %v1711
        %v1744 = vpack.c.b16 %v1712, %v1712
        %v1745 = vpack.c.b16 %v1713, %v1713
        %v1746 = vpack.c.b16 %v1714, %v1714
        %v1747 = vpack.c.b16 %v1715, %v1715
        %v1748 = vpack.c.b16 %v1716, %v1716
        %v1749 = vpack.c.b16 %v1717, %v1717
        %v1750 = vpack.c.b16 %v1718, %v1718
        %v1751 = vpack.c.b16 %v1719, %v1719
        %v1752 = vpack.c.b16 %v1720, %v1720
        %v1753 = vpack.c.b16 %v1721, %v1721
        %v1754 = vpack.c.b16 %v1722, %v1722
        %v1755 = vpack.c.b16 %v1723, %v1723
        %v1756 = vpack.c.b16 %v1724, %v1724
        %1789 = vst [vmem:[%s325] sm:$0xf] %v1725
        %1790 = vst [vmem:[%s325 + $0x4] sm:$0xf] %v1726
        %1791 = vst [vmem:[%s325 + $0x8] sm:$0xf] %v1727
        %1792 = vst [vmem:[%s325 + $0xc] sm:$0xf] %v1728
        %1793 = vst [vmem:[%s325 + $0x10] sm:$0xf] %v1729
        %1794 = vst [vmem:[%s325 + $0x14] sm:$0xf] %v1730
        %1795 = vst [vmem:[%s325 + $0x18] sm:$0xf] %v1731
        %1796 = vst [vmem:[%s325 + $0x1c] sm:$0xf] %v1732
        %1797 = vst [vmem:[%s325 + $0x20] sm:$0xf] %v1733
        %1798 = vst [vmem:[%s325 + $0x24] sm:$0xf] %v1734
        %1799 = vst [vmem:[%s325 + $0x28] sm:$0xf] %v1735
        %1800 = vst [vmem:[%s325 + $0x2c] sm:$0xf] %v1736
        %1801 = vst [vmem:[%s325 + $0x30] sm:$0xf] %v1737
        %1802 = vst [vmem:[%s325 + $0x34] sm:$0xf] %v1738
        %1803 = vst [vmem:[%s325 + $0x38] sm:$0xf] %v1739
        %1804 = vst [vmem:[%s325 + $0x3c] sm:$0xf] %v1740
        %1805 = vst [vmem:[%s325 + $0x40] sm:$0xf] %v1741
        %1806 = vst [vmem:[%s325 + $0x44] sm:$0xf] %v1742
        %1807 = vst [vmem:[%s325 + $0x48] sm:$0xf] %v1743
        %1808 = vst [vmem:[%s325 + $0x4c] sm:$0xf] %v1744
        %1809 = vst [vmem:[%s325 + $0x50] sm:$0xf] %v1745
        %1810 = vst [vmem:[%s325 + $0x54] sm:$0xf] %v1746
        %1811 = vst [vmem:[%s325 + $0x58] sm:$0xf] %v1747
        %1812 = vst [vmem:[%s325 + $0x5c] sm:$0xf] %v1748
        %1813 = vst [vmem:[%s325 + $0x60] sm:$0xf] %v1749
        %1814 = vst [vmem:[%s325 + $0x64] sm:$0xf] %v1750
        %1815 = vst [vmem:[%s325 + $0x68] sm:$0xf] %v1751
        %1816 = vst [vmem:[%s325 + $0x6c] sm:$0xf] %v1752
        %1817 = vst [vmem:[%s325 + $0x70] sm:$0xf] %v1753
        %1818 = vst [vmem:[%s325 + $0x74] sm:$0xf] %v1754
        %1819 = vst [vmem:[%s325 + $0x78] sm:$0xf] %v1755
        %1820 = vst [vmem:[%s325 + $0x7c] sm:$0xf] %v1756
        %s1821 = sand.u32 %s185, 1
        %s1822 = scalar_lea.sflag [#allocation4], %s1821
        %s1823 = sand.u32 %s185, 1
        %s1824 = smul.addr %s1823, 128
        %s1825 = scalar_lea.vmem [#allocation8], %s1824
        // Predicated region
        $region61: #{tpu_custom_call.1} parent=47 // pred_check
          %p1826 = pneg %p195
        $region62: #{tpu_custom_call.1} parent=47 // pred_check_branch
          %1828 = sbr.rel (%p1826) target = $region64
        $region63: #{tpu_custom_call.1} parent=47 // pred_region
          %s1829 = smul.u32 32, %s25
          %s1831 = ssub.s32 2048, 2048
          %1832 = vsyncadd %s1822, %s1831
          %s1833 = smul.addr %s1829, 64
          %s1834 = scalar_lea.hbm %s7, %s1833
          %s1835 = sshll.u32 %s1825, 4
          %s1836 = int_to_ptr.vmem [resolvable:$true] %s1835
          %1841 = dma.vmem_to_hbm [thread:$0]  %s1836, 2048, %s1834, %s1822, 64, 64, 4
        $region64: #{tpu_custom_call.1} parent=47 // pred_fallthru
          _
      $region48: #{tpu_custom_call.1} parent=5 // pred_fallthru
        _
      %p1842 = scmp.le.s32.totalorder 2, %s20
      // Predicated region
      $region65: #{tpu_custom_call.1} parent=5 // pred_check
        %p1843 = pneg %p1842
      $region66: #{tpu_custom_call.1} parent=5 // pred_check_branch
        %1845 = sbr.rel (%p1843) target = $region68
      $region67: #{tpu_custom_call.1} parent=5 // pred_region
        %s1846 = ssub.s32 %s20, 2
        // Predicated region
        $region69: #{tpu_custom_call.1} parent=67 // pred_check
          %p1847 = pneg %p201
        $region70: #{tpu_custom_call.1} parent=67 // pred_check_branch
          %1849 = sbr.rel (%p1847) target = $region72
        $region71: #{tpu_custom_call.1} parent=67 // pred_region
          %s1850 = sand.u32 %s186, 1
          %s1851 = scalar_lea.sflag [#allocation4], %s1850
          %s1852 = sand.u32 %s186, 1
          %s1853 = smul.addr %s1852, 128
          %s1854 = scalar_lea.vmem [#allocation8], %s1853
          %1855 = dma.done %s1851, 2048
        $region72: #{tpu_custom_call.1} parent=67 // pred_fallthru
          _
      $region68: #{tpu_custom_call.1} parent=5 // pred_fallthru
        _
    $region6: #{tpu_custom_call.1} parent=1 // loop_footer
      %s24 = sadd.s32 1, %s20
    $region7: #{tpu_custom_call.1} parent=1 // loop_footer_branch
      %19 = sbr.rel target = $region3
    $region8: #{tpu_custom_call.1} parent=1 // loop_exit
      _
    %1856 = vsyncpa [#allocation3], 1
    %s1857 = scalar_lea.sflag [#allocation3], 1
    %1858 = vsyncpa %s1857, 1
    %1859 = vsyncpa [#allocation6], 1
    %1860 = vsyncpa [#allocation4], 1
    %s1861 = scalar_lea.sflag [#allocation4], 1
    %1862 = vsyncpa %s1861, 1

// kernel: tpu_custom_call.1
$region0: #{tpu_custom_call.1}
  #allocation0 [shape = 'u32[]', space=smem, size = 0x4, offset = 0x4, fixed_abs, tag = 'smem constant byte address 0x4 - core index']
  #allocation1 [shape = 'u32[144,128]{1,0:T(1,128)}', space=vmem, size = 0x12000, scoped, tag = 'internal scratch']
  %s0 = inlined_call_operand.hbm [shape: bf16[512,128], index: 0, kind: input, shape index: {}]
  %s1 = inlined_call_operand.vmem [shape: f32[1,128], index: 1, kind: input, shape index: {}]
  %s2 = inlined_call_operand.vmem [shape: f32[1,128], index: 2, kind: input, shape index: {}]
  %s3 = inlined_call_operand.hbm [shape: bf16[128,256], index: 3, kind: input, shape index: {}]
  %s4 = inlined_call_operand.vmem [shape: f32[1,256], index: 4, kind: input, shape index: {}]
  %s5 = inlined_call_operand.hbm [shape: bf16[256,128], index: 5, kind: input, shape index: {}]
  %s6 = inlined_call_operand.vmem [shape: f32[1,128], index: 6, kind: input, shape index: {}]
  %s7 = inlined_call_operand.hbm [shape: bf16[512,128], index: 7, kind: output, shape index: {}]
  %s8 = sld [smem:[#allocation0]]
  $region73: #{tpu_custom_call.1} parent=0
    _
  %s10 = ssub.s32 1, %s8
  %s11 = scalar_select 0, %s10, %s8
  $region1: #{tpu_custom_call.1} parent=0
    #allocation2 [shape = 'u8[131072]{0}', space=vmem, size = 0x20000, scoped, tag = 'input window, operand 0']
    #allocation3 [shape = 's32[2]{0}', space=sflag, size = 0x8, scoped, tag = 'scoped memory for tpu_custom_call.1']
    #allocation4 [shape = 's32[2]{0}', space=sflag, size = 0x8, scoped, tag = 'scoped memory for tpu_custom_call.1']
    #allocation5 [shape = 'u8[65536]{0}', space=vmem, size = 0x10000, scoped, tag = 'input window, operand 3, single buffered']
    #allocation6 [shape = 's32[1]{0}', space=sflag, size = 0x4, scoped, tag = 'scoped memory for tpu_custom_call.1']
    #allocation7 [shape = 'u8[65536]{0}', space=vmem, size = 0x10000, scoped, tag = 'input window, operand 5, single buffered']
    #allocation8 [shape = 'u8[131072]{0}', space=vmem, size = 0x20000, scoped, tag = 'output window, operand 0']
    %12 = vsyncpa [#allocation3], 0
    %s13 = scalar_lea.sflag [#allocation3], 1
    %14 = vsyncpa %s13, 0
    %15 = vsyncpa [#allocation6], 0
    %16 = vsyncpa [#allocation4], 0
    %s17 = scalar_lea.sflag [#allocation4], 1
    %18 = vsyncpa %s17, 0
    loop: start=0, step=1, limit=4
    $region2: #{tpu_custom_call.1} parent=1 // loop_pre_header
      _
    $region3: #{tpu_custom_call.1} parent=1 // loop_header
      %s20 = sphi 0, %s24
      %p21 = scmp.ge.s32.totalorder %s20, 4
      %s30 = sphi 0, %s32
      %s33 = sphi 0, %s30
      %s34 = sphi 0, %s33
      %s50 = sphi 0, %s34
      %s54 = sphi 0, %s54
      %s56 = sphi 0, %s54
      %s57 = sphi 0, %s56
      %s71 = sphi 0, %s57
      %s75 = sphi 0, %s75
      %s77 = sphi 0, %s75
      %s78 = sphi 0, %s77
      %s92 = sphi 0, %s78
      %s96 = sphi 0, %s96
      %s98 = sphi 0, %s96
      %s99 = sphi 0, %s98
      %s113 = sphi 0, %s99
      %s117 = sphi 0, %s117
      %s119 = sphi 0, %s117
      %s120 = sphi 0, %s119
      %s134 = sphi 0, %s120
      %s138 = sphi 0, %s138
      %s140 = sphi 0, %s138
      %s141 = sphi 0, %s140
      %s155 = sphi 0, %s141
      %s159 = sphi 0, %s159
      %s161 = sphi 0, %s159
      %s162 = sphi 0, %s161
      %s176 = sphi 0, %s162
      %s182 = sphi 0, %s184
      %s185 = sphi 0, %s182
      %s186 = sphi 0, %s185
      %s202 = sphi 0, %s186
    $region4: #{tpu_custom_call.1} parent=1 // loop_header_branch
      %23 = sbr.rel (%p21) target = $region8
    $region5: #{tpu_custom_call.1} parent=1 // loop_body
      %s25 = ssub.s32 %s20, 1
      %s26 = ssub.s32 %s20, 2
      %s27 = sadd.s32 %s20, 1
      %s28 = ssub.s32 %s20, %s27
      %p29 = scmp.eq.s32.totalorder %s28, 0
      %s31 = sadd.s32 %s30, 1
      %s32 = scalar_select %p29, %s30, %s31
      %p35 = pneg %p29
      %p36 = scmp.eq.s32.totalorder %s20, 1
      %p37 = por %p35, %p36
      %p38 = scmp.ne.s32.totalorder %s30, %s33
      %p39 = scmp.eq.s32.totalorder %s20, 0
      %p40 = por %p38, %p39
      %p41 = scmp.ne.s32.totalorder %s30, %s33
      %p42 = scmp.eq.s32.totalorder %s25, 1
      %p43 = por %p41, %p42
      %p44 = scmp.ne.s32.totalorder %s33, %s34
      %p45 = scmp.eq.s32.totalorder %s25, 0
      %p46 = por %p44, %p45
      %p47 = scmp.ne.s32.totalorder %s33, %s34
      %p48 = scmp.eq.s32.totalorder %s26, 1
      %p49 = por %p47, %p48
      %p51 = scmp.ne.s32.totalorder %s34, %s50
      %p52 = scmp.eq.s32.totalorder %s26, 0
      %p53 = por %p51, %p52
      %s55 = sadd.s32 %s54, 1
      %p58 = scmp.eq.s32.totalorder %s20, 1
      %p59 = scmp.ne.s32.totalorder %s54, %s56
      %p60 = scmp.eq.s32.totalorder %s20, 0
      %p61 = por %p59, %p60
      %p62 = scmp.ne.s32.totalorder %s54, %s56
      %p63 = scmp.eq.s32.totalorder %s25, 1
      %p64 = por %p62, %p63
      %p65 = scmp.ne.s32.totalorder %s56, %s57
      %p66 = scmp.eq.s32.totalorder %s25, 0
      %p67 = por %p65, %p66
      %p68 = scmp.ne.s32.totalorder %s56, %s57
      %p69 = scmp.eq.s32.totalorder %s26, 1
      %p70 = por %p68, %p69
      %p72 = scmp.ne.s32.totalorder %s57, %s71
      %p73 = scmp.eq.s32.totalorder %s26, 0
      %p74 = por %p72, %p73
      %s76 = sadd.s32 %s75, 1
      %p79 = scmp.eq.s32.totalorder %s20, 1
      %p80 = scmp.ne.s32.totalorder %s75, %s77
      %p81 = scmp.eq.s32.totalorder %s20, 0
      %p82 = por %p80, %p81
      %p83 = scmp.ne.s32.totalorder %s75, %s77
      %p84 = scmp.eq.s32.totalorder %s25, 1
      %p85 = por %p83, %p84
      %p86 = scmp.ne.s32.totalorder %s77, %s78
      %p87 = scmp.eq.s32.totalorder %s25, 0
      %p88 = por %p86, %p87
      %p89 = scmp.ne.s32.totalorder %s77, %s78
      %p90 = scmp.eq.s32.totalorder %s26, 1
      %p91 = por %p89, %p90
      %p93 = scmp.ne.s32.totalorder %s78, %s92
      %p94 = scmp.eq.s32.totalorder %s26, 0
      %p95 = por %p93, %p94
      %s97 = sadd.s32 %s96, 1
      %p100 = scmp.eq.s32.totalorder %s20, 1
      %p101 = scmp.ne.s32.totalorder %s96, %s98
      %p102 = scmp.eq.s32.totalorder %s20, 0
      %p103 = por %p101, %p102
      %p104 = scmp.ne.s32.totalorder %s96, %s98
      %p105 = scmp.eq.s32.totalorder %s25, 1
      %p106 = por %p104, %p105
      %p107 = scmp.ne.s32.totalorder %s98, %s99
      %p108 = scmp.eq.s32.totalorder %s25, 0
      %p109 = por %p107, %p108
      %p110 = scmp.ne.s32.totalorder %s98, %s99
      %p111 = scmp.eq.s32.totalorder %s26, 1
      %p112 = por %p110, %p111
      %p114 = scmp.ne.s32.totalorder %s99, %s113
      %p115 = scmp.eq.s32.totalorder %s26, 0
      %p116 = por %p114, %p115
      %s118 = sadd.s32 %s117, 1
      %p121 = scmp.eq.s32.totalorder %s20, 1
      %p122 = scmp.ne.s32.totalorder %s117, %s119
      %p123 = scmp.eq.s32.totalorder %s20, 0
      %p124 = por %p122, %p123
      %p125 = scmp.ne.s32.totalorder %s117, %s119
      %p126 = scmp.eq.s32.totalorder %s25, 1
      %p127 = por %p125, %p126
      %p128 = scmp.ne.s32.totalorder %s119, %s120
      %p129 = scmp.eq.s32.totalorder %s25, 0
      %p130 = por %p128, %p129
      %p131 = scmp.ne.s32.totalorder %s119, %s120
      %p132 = scmp.eq.s32.totalorder %s26, 1
      %p133 = por %p131, %p132
      %p135 = scmp.ne.s32.totalorder %s120, %s134
      %p136 = scmp.eq.s32.totalorder %s26, 0
      %p137 = por %p135, %p136
      %s139 = sadd.s32 %s138, 1
      %p142 = scmp.eq.s32.totalorder %s20, 1
      %p143 = scmp.ne.s32.totalorder %s138, %s140
      %p144 = scmp.eq.s32.totalorder %s20, 0
      %p145 = por %p143, %p144
      %p146 = scmp.ne.s32.totalorder %s138, %s140
      %p147 = scmp.eq.s32.totalorder %s25, 1
      %p148 = por %p146, %p147
      %p149 = scmp.ne.s32.totalorder %s140, %s141
      %p150 = scmp.eq.s32.totalorder %s25, 0
      %p151 = por %p149, %p150
      %p152 = scmp.ne.s32.totalorder %s140, %s141
      %p153 = scmp.eq.s32.totalorder %s26, 1
      %p154 = por %p152, %p153
      %p156 = scmp.ne.s32.totalorder %s141, %s155
      %p157 = scmp.eq.s32.totalorder %s26, 0
      %p158 = por %p156, %p157
      %s160 = sadd.s32 %s159, 1
      %p163 = scmp.eq.s32.totalorder %s20, 1
      %p164 = scmp.ne.s32.totalorder %s159, %s161
      %p165 = scmp.eq.s32.totalorder %s20, 0
      %p166 = por %p164, %p165
      %p167 = scmp.ne.s32.totalorder %s159, %s161
      %p168 = scmp.eq.s32.totalorder %s25, 1
      %p169 = por %p167, %p168
      %p170 = scmp.ne.s32.totalorder %s161, %s162
      %p171 = scmp.eq.s32.totalorder %s25, 0
      %p172 = por %p170, %p171
      %p173 = scmp.ne.s32.totalorder %s161, %s162
      %p174 = scmp.eq.s32.totalorder %s26, 1
      %p175 = por %p173, %p174
      %p177 = scmp.ne.s32.totalorder %s162, %s176
      %p178 = scmp.eq.s32.totalorder %s26, 0
      %p179 = por %p177, %p178
      %s180 = ssub.s32 %s20, %s27
      %p181 = scmp.eq.s32.totalorder %s180, 0
      %s183 = sadd.s32 %s182, 1
      %s184 = scalar_select %p181, %s182, %s183
      %p187 = pneg %p181
      %p188 = scmp.eq.s32.totalorder %s20, 1
      %p189 = por %p187, %p188
      %p190 = scmp.ne.s32.totalorder %s182, %s185
      %p191 = scmp.eq.s32.totalorder %s20, 0
      %p192 = por %p190, %p191
      %p193 = scmp.ne.s32.totalorder %s182, %s185
      %p194 = scmp.eq.s32.totalorder %s25, 1
      %p195 = por %p193, %p194
      %p196 = scmp.ne.s32.totalorder %s185, %s186
      %p197 = scmp.eq.s32.totalorder %s25, 0
      %p198 = por %p196, %p197
      %p199 = scmp.ne.s32.totalorder %s185, %s186
      %p200 = scmp.eq.s32.totalorder %s26, 1
      %p201 = por %p199, %p200
      %p203 = scmp.ne.s32.totalorder %s186, %s202
      %p204 = scmp.eq.s32.totalorder %s26, 0
      %p205 = por %p203, %p204
      %p206 = scmp.le.s32.totalorder 1, %s20
      %p207 = scmp.lt.s32.totalorder %s20, 3
      %p208 = pnand %p206, %p207
      %p209 = pneg %p208
      // Predicated region
      $region9: #{tpu_custom_call.1} parent=5 // pred_check
        _
      $region10: #{tpu_custom_call.1} parent=5 // pred_check_branch
        %211 = sbr.rel (%p208) target = $region12
      $region11: #{tpu_custom_call.1} parent=5 // pred_region
        %s212 = ssub.s32 %s20, 1
        // Predicated region
        $region13: #{tpu_custom_call.1} parent=11 // pred_check
          %p213 = pneg %p67
        $region14: #{tpu_custom_call.1} parent=11 // pred_check_branch
          %215 = sbr.rel (%p213) target = $region16
        $region15: #{tpu_custom_call.1} parent=11 // pred_region
          _
        $region16: #{tpu_custom_call.1} parent=11 // pred_fallthru
          _
        // Predicated region
        $region17: #{tpu_custom_call.1} parent=11 // pred_check
          %p216 = pneg %p88
        $region18: #{tpu_custom_call.1} parent=11 // pred_check_branch
          %218 = sbr.rel (%p216) target = $region20
        $region19: #{tpu_custom_call.1} parent=11 // pred_region
          _
        $region20: #{tpu_custom_call.1} parent=11 // pred_fallthru
          _
        // Predicated region
        $region21: #{tpu_custom_call.1} parent=11 // pred_check
          %p219 = pneg %p109
        $region22: #{tpu_custom_call.1} parent=11 // pred_check_branch
          %221 = sbr.rel (%p219) target = $region24
        $region23: #{tpu_custom_call.1} parent=11 // pred_region
          %s223 = ssub.s32 2048, 2048
          %224 = vsyncadd [#allocation6], %s223
          %s225 = sshll.u32 [#allocation5], 4
          %s226 = int_to_ptr.vmem [resolvable:$true] %s225
          %231 = dma.hbm_to_vmem [thread:$0]  %s3, 2048, %s226, [#allocation6], 128, 128, 8
        $region24: #{tpu_custom_call.1} parent=11 // pred_fallthru
          _
        // Predicated region
        $region25: #{tpu_custom_call.1} parent=11 // pred_check
          %p232 = pneg %p130
        $region26: #{tpu_custom_call.1} parent=11 // pred_check_branch
          %234 = sbr.rel (%p232) target = $region28
        $region27: #{tpu_custom_call.1} parent=11 // pred_region
          _
        $region28: #{tpu_custom_call.1} parent=11 // pred_fallthru
          _
        // Predicated region
        $region29: #{tpu_custom_call.1} parent=11 // pred_check
          %p235 = pneg %p151
        $region30: #{tpu_custom_call.1} parent=11 // pred_check_branch
          %237 = sbr.rel (%p235) target = $region32
        $region31: #{tpu_custom_call.1} parent=11 // pred_region
          %s239 = ssub.s32 2048, 2048
          %240 = vsyncadd [#allocation6], %s239
          %s241 = sshll.u32 [#allocation7], 4
          %s242 = int_to_ptr.vmem [resolvable:$true] %s241
          %247 = dma.hbm_to_vmem [thread:$0]  %s5, 2048, %s242, [#allocation6], 64, 64, 4
        $region32: #{tpu_custom_call.1} parent=11 // pred_fallthru
          _
        // Predicated region
        $region33: #{tpu_custom_call.1} parent=11 // pred_check
          %p248 = pneg %p172
        $region34: #{tpu_custom_call.1} parent=11 // pred_check_branch
          %250 = sbr.rel (%p248) target = $region36
        $region35: #{tpu_custom_call.1} parent=11 // pred_region
          _
        $region36: #{tpu_custom_call.1} parent=11 // pred_fallthru
          _
      $region12: #{tpu_custom_call.1} parent=5 // pred_fallthru
        _
      %p251 = scmp.lt.s32.totalorder %s20, 2
      // Predicated region
      $region37: #{tpu_custom_call.1} parent=5 // pred_check
        %p252 = pneg %p251
      $region38: #{tpu_custom_call.1} parent=5 // pred_check_branch
        %254 = sbr.rel (%p252) target = $region40
      $region39: #{tpu_custom_call.1} parent=5 // pred_region
        // Predicated region
        $region41: #{tpu_custom_call.1} parent=39 // pred_check
          %p255 = pneg %p40
        $region42: #{tpu_custom_call.1} parent=39 // pred_check_branch
          %257 = sbr.rel (%p255) target = $region44
        $region43: #{tpu_custom_call.1} parent=39 // pred_region
          %s258 = sand.u32 %s30, 1
          %s259 = scalar_lea.sflag [#allocation3], %s258
          %s260 = sand.u32 %s30, 1
          %s261 = smul.addr %s260, 128
          %s262 = scalar_lea.vmem [#allocation2], %s261
          %s263 = smul.u32 32, %s20
          %s265 = ssub.s32 2048, 2048
          %266 = vsyncadd %s259, %s265
          %s267 = smul.addr %s263, 64
          %s268 = scalar_lea.hbm %s0, %s267
          %s269 = sshll.u32 %s262, 4
          %s270 = int_to_ptr.vmem [resolvable:$true] %s269
          %275 = dma.hbm_to_vmem [thread:$0]  %s268, 2048, %s270, %s259, 64, 64, 4
        $region44: #{tpu_custom_call.1} parent=39 // pred_fallthru
          _
      $region40: #{tpu_custom_call.1} parent=5 // pred_fallthru
        _
      %p276 = scmp.le.s32.totalorder 1, %s20
      %p277 = scmp.lt.s32.totalorder %s20, 3
      %p278 = pnand %p276, %p277
      %p279 = pneg %p278
      // Predicated region
      $region45: #{tpu_custom_call.1} parent=5 // pred_check
        _
      $region46: #{tpu_custom_call.1} parent=5 // pred_check_branch
        %281 = sbr.rel (%p278) target = $region48
      $region47: #{tpu_custom_call.1} parent=5 // pred_region
        %s282 = ssub.s32 %s20, 1
        %s283 = sand.u32 %s33, 1
        %s284 = scalar_lea.sflag [#allocation3], %s283
        %s285 = sand.u32 %s33, 1
        %s286 = smul.addr %s285, 128
        %s287 = scalar_lea.vmem [#allocation2], %s286
        // Predicated region
        $region49: #{tpu_custom_call.1} parent=47 // pred_check
          %p288 = pneg %p46
        $region50: #{tpu_custom_call.1} parent=47 // pred_check_branch
          %290 = sbr.rel (%p288) target = $region52
        $region51: #{tpu_custom_call.1} parent=47 // pred_region
          %291 = dma.done %s284, 2048
        $region52: #{tpu_custom_call.1} parent=47 // pred_fallthru
          _
        // Predicated region
        $region53: #{tpu_custom_call.1} parent=47 // pred_check
          %p292 = pneg %p109
        $region54: #{tpu_custom_call.1} parent=47 // pred_check_branch
          %294 = sbr.rel (%p292) target = $region56
        $region55: #{tpu_custom_call.1} parent=47 // pred_region
          %295 = dma.done [#allocation6], 2048
        $region56: #{tpu_custom_call.1} parent=47 // pred_fallthru
          _
        // Predicated region
        $region57: #{tpu_custom_call.1} parent=47 // pred_check
          %p296 = pneg %p151
        $region58: #{tpu_custom_call.1} parent=47 // pred_check_branch
          %298 = sbr.rel (%p296) target = $region60
        $region59: #{tpu_custom_call.1} parent=47 // pred_region
          %299 = dma.done [#allocation6], 2048
        $region60: #{tpu_custom_call.1} parent=47 // pred_fallthru
          _
        %s300 = sand.u32 %s33, 1
        %s301 = scalar_lea.sflag [#allocation3], %s300
        %s302 = sand.u32 %s33, 1
        %s303 = smul.addr %s302, 128
        %s304 = scalar_lea.vmem [#allocation2], %s303
        %p305 = pneg %p46
        %p306 = pneg %p43
        %p307 = pneg %p67
        %p308 = pneg %p64
        %p309 = pneg %p88
        %p310 = pneg %p85
        %p311 = pneg %p109
        %p312 = pneg %p106
        %p313 = pneg %p130
        %p314 = pneg %p127
        %p315 = pneg %p151
        %p316 = pneg %p148
        %p317 = pneg %p172
        %p318 = pneg %p169
        %p319 = pneg %p198
        %p320 = pneg %p195
        %s321 = sand.u32 %s185, 1
        %s322 = scalar_lea.sflag [#allocation4], %s321
        %s323 = sand.u32 %s185, 1
        %s324 = smul.addr %s323, 128
        %s325 = scalar_lea.vmem [#allocation8], %s324
        %s326 = smul.u32 32, %s25
        %s327 = smul.u32 32, %s25
        %v329 = vld [vmem:[%s287] sm:$0xf]
        %v330 = vld [vmem:[%s287 + $0x4] sm:$0xf]
        %v331 = vld [vmem:[%s287 + $0x8] sm:$0xf]
        %v332 = vld [vmem:[%s287 + $0xc] sm:$0xf]
        %v333 = vld [vmem:[%s287 + $0x10] sm:$0xf]
        %v334 = vld [vmem:[%s287 + $0x14] sm:$0xf]
        %v335 = vld [vmem:[%s287 + $0x18] sm:$0xf]
        %v336 = vld [vmem:[%s287 + $0x1c] sm:$0xf]
        %v337 = vld [vmem:[%s287 + $0x20] sm:$0xf]
        %v338 = vld [vmem:[%s287 + $0x24] sm:$0xf]
        %v339 = vld [vmem:[%s287 + $0x28] sm:$0xf]
        %v340 = vld [vmem:[%s287 + $0x2c] sm:$0xf]
        %v341 = vld [vmem:[%s287 + $0x30] sm:$0xf]
        %v342 = vld [vmem:[%s287 + $0x34] sm:$0xf]
        %v343 = vld [vmem:[%s287 + $0x38] sm:$0xf]
        %v344 = vld [vmem:[%s287 + $0x3c] sm:$0xf]
        %v345 = vld [vmem:[%s287 + $0x40] sm:$0xf]
        %v346 = vld [vmem:[%s287 + $0x44] sm:$0xf]
        %v347 = vld [vmem:[%s287 + $0x48] sm:$0xf]
        %v348 = vld [vmem:[%s287 + $0x4c] sm:$0xf]
        %v349 = vld [vmem:[%s287 + $0x50] sm:$0xf]
        %v350 = vld [vmem:[%s287 + $0x54] sm:$0xf]
        %v351 = vld [vmem:[%s287 + $0x58] sm:$0xf]
        %v352 = vld [vmem:[%s287 + $0x5c] sm:$0xf]
        %v353 = vld [vmem:[%s287 + $0x60] sm:$0xf]
        %v354 = vld [vmem:[%s287 + $0x64] sm:$0xf]
        %v355 = vld [vmem:[%s287 + $0x68] sm:$0xf]
        %v356 = vld [vmem:[%s287 + $0x6c] sm:$0xf]
        %v357 = vld [vmem:[%s287 + $0x70] sm:$0xf]
        %v358 = vld [vmem:[%s287 + $0x74] sm:$0xf]
        %v359 = vld [vmem:[%s287 + $0x78] sm:$0xf]
        %v360 = vld [vmem:[%s287 + $0x7c] sm:$0xf]
        %v361 = vunpack.c.l.bf16 %v329
        %v362 = vunpack.c.l.bf16 %v330
        %v363 = vunpack.c.l.bf16 %v331
        %v364 = vunpack.c.l.bf16 %v332
        %v365 = vunpack.c.l.bf16 %v333
        %v366 = vunpack.c.l.bf16 %v334
        %v367 = vunpack.c.l.bf16 %v335
        %v368 = vunpack.c.l.bf16 %v336
        %v369 = vunpack.c.l.bf16 %v337
        %v370 = vunpack.c.l.bf16 %v338
        %v371 = vunpack.c.l.bf16 %v339
        %v372 = vunpack.c.l.bf16 %v340
        %v373 = vunpack.c.l.bf16 %v341
        %v374 = vunpack.c.l.bf16 %v342
        %v375 = vunpack.c.l.bf16 %v343
        %v376 = vunpack.c.l.bf16 %v344
        %v377 = vunpack.c.l.bf16 %v345
        %v378 = vunpack.c.l.bf16 %v346
        %v379 = vunpack.c.l.bf16 %v347
        %v380 = vunpack.c.l.bf16 %v348
        %v381 = vunpack.c.l.bf16 %v349
        %v382 = vunpack.c.l.bf16 %v350
        %v383 = vunpack.c.l.bf16 %v351
        %v384 = vunpack.c.l.bf16 %v352
        %v385 = vunpack.c.l.bf16 %v353
        %v386 = vunpack.c.l.bf16 %v354
        %v387 = vunpack.c.l.bf16 %v355
        %v388 = vunpack.c.l.bf16 %v356
        %v389 = vunpack.c.l.bf16 %v357
        %v390 = vunpack.c.l.bf16 %v358
        %v391 = vunpack.c.l.bf16 %v359
        %v392 = vunpack.c.l.bf16 %v360
        %393 = vadd.xlane.f32.xlu0 %v361
        %v394 = vpop.xlane.xlu0 %393
        %395 = vadd.xlane.f32.xlu0 %v362
        %v396 = vpop.xlane.xlu0 %395
        %397 = vadd.xlane.f32.xlu0 %v363
        %v398 = vpop.xlane.xlu0 %397
        %399 = vadd.xlane.f32.xlu0 %v364
        %v400 = vpop.xlane.xlu0 %399
        %401 = vadd.xlane.f32.xlu0 %v365
        %v402 = vpop.xlane.xlu0 %401
        %403 = vadd.xlane.f32.xlu0 %v366
        %v404 = vpop.xlane.xlu0 %403
        %405 = vadd.xlane.f32.xlu0 %v367
        %v406 = vpop.xlane.xlu0 %405
        %407 = vadd.xlane.f32.xlu0 %v368
        %v408 = vpop.xlane.xlu0 %407
        %409 = vadd.xlane.f32.xlu0 %v369
        %v410 = vpop.xlane.xlu0 %409
        %411 = vadd.xlane.f32.xlu0 %v370
        %v412 = vpop.xlane.xlu0 %411
        %413 = vadd.xlane.f32.xlu0 %v371
        %v414 = vpop.xlane.xlu0 %413
        %415 = vadd.xlane.f32.xlu0 %v372
        %v416 = vpop.xlane.xlu0 %415
        %417 = vadd.xlane.f32.xlu0 %v373
        %v418 = vpop.xlane.xlu0 %417
        %419 = vadd.xlane.f32.xlu0 %v374
        %v420 = vpop.xlane.xlu0 %419
        %421 = vadd.xlane.f32.xlu0 %v375
        %v422 = vpop.xlane.xlu0 %421
        %423 = vadd.xlane.f32.xlu0 %v376
        %v424 = vpop.xlane.xlu0 %423
        %425 = vadd.xlane.f32.xlu0 %v377
        %v426 = vpop.xlane.xlu0 %425
        %427 = vadd.xlane.f32.xlu0 %v378
        %v428 = vpop.xlane.xlu0 %427
        %429 = vadd.xlane.f32.xlu0 %v379
        %v430 = vpop.xlane.xlu0 %429
        %431 = vadd.xlane.f32.xlu0 %v380
        %v432 = vpop.xlane.xlu0 %431
        %433 = vadd.xlane.f32.xlu0 %v381
        %v434 = vpop.xlane.xlu0 %433
        %435 = vadd.xlane.f32.xlu0 %v382
        %v436 = vpop.xlane.xlu0 %435
        %437 = vadd.xlane.f32.xlu0 %v383
        %v438 = vpop.xlane.xlu0 %437
        %439 = vadd.xlane.f32.xlu0 %v384
        %v440 = vpop.xlane.xlu0 %439
        %441 = vadd.xlane.f32.xlu0 %v385
        %v442 = vpop.xlane.xlu0 %441
        %443 = vadd.xlane.f32.xlu0 %v386
        %v444 = vpop.xlane.xlu0 %443
        %445 = vadd.xlane.f32.xlu0 %v387
        %v446 = vpop.xlane.xlu0 %445
        %447 = vadd.xlane.f32.xlu0 %v388
        %v448 = vpop.xlane.xlu0 %447
        %449 = vadd.xlane.f32.xlu0 %v389
        %v450 = vpop.xlane.xlu0 %449
        %451 = vadd.xlane.f32.xlu0 %v390
        %v452 = vpop.xlane.xlu0 %451
        %453 = vadd.xlane.f32.xlu0 %v391
        %v454 = vpop.xlane.xlu0 %453
        %455 = vadd.xlane.f32.xlu0 %v392
        %v456 = vpop.xlane.xlu0 %455
        %v457 = vrcp.pop 128.0
        %v458 = vmul.f32 %v394, %v457
        %v459 = vmul.f32 %v396, %v457
        %v460 = vmul.f32 %v398, %v457
        %v461 = vmul.f32 %v400, %v457
        %v462 = vmul.f32 %v402, %v457
        %v463 = vmul.f32 %v404, %v457
        %v464 = vmul.f32 %v406, %v457
        %v465 = vmul.f32 %v408, %v457
        %v466 = vmul.f32 %v410, %v457
        %v467 = vmul.f32 %v412, %v457
        %v468 = vmul.f32 %v414, %v457
        %v469 = vmul.f32 %v416, %v457
        %v470 = vmul.f32 %v418, %v457
        %v471 = vmul.f32 %v420, %v457
        %v472 = vmul.f32 %v422, %v457
        %v473 = vmul.f32 %v424, %v457
        %v474 = vmul.f32 %v426, %v457
        %v475 = vmul.f32 %v428, %v457
        %v476 = vmul.f32 %v430, %v457
        %v477 = vmul.f32 %v432, %v457
        %v478 = vmul.f32 %v434, %v457
        %v479 = vmul.f32 %v436, %v457
        %v480 = vmul.f32 %v438, %v457
        %v481 = vmul.f32 %v440, %v457
        %v482 = vmul.f32 %v442, %v457
        %v483 = vmul.f32 %v444, %v457
        %v484 = vmul.f32 %v446, %v457
        %v485 = vmul.f32 %v448, %v457
        %v486 = vmul.f32 %v450, %v457
        %v487 = vmul.f32 %v452, %v457
        %v488 = vmul.f32 %v454, %v457
        %v489 = vmul.f32 %v456, %v457
        %v490 = vmul.f32 %v361, %v361
        %v491 = vmul.f32 %v362, %v362
        %v492 = vmul.f32 %v363, %v363
        %v493 = vmul.f32 %v364, %v364
        %v494 = vmul.f32 %v365, %v365
        %v495 = vmul.f32 %v366, %v366
        %v496 = vmul.f32 %v367, %v367
        %v497 = vmul.f32 %v368, %v368
        %v498 = vmul.f32 %v369, %v369
        %v499 = vmul.f32 %v370, %v370
        %v500 = vmul.f32 %v371, %v371
        %v501 = vmul.f32 %v372, %v372
        %v502 = vmul.f32 %v373, %v373
        %v503 = vmul.f32 %v374, %v374
        %v504 = vmul.f32 %v375, %v375
        %v505 = vmul.f32 %v376, %v376
        %v506 = vmul.f32 %v377, %v377
        %v507 = vmul.f32 %v378, %v378
        %v508 = vmul.f32 %v379, %v379
        %v509 = vmul.f32 %v380, %v380
        %v510 = vmul.f32 %v381, %v381
        %v511 = vmul.f32 %v382, %v382
        %v512 = vmul.f32 %v383, %v383
        %v513 = vmul.f32 %v384, %v384
        %v514 = vmul.f32 %v385, %v385
        %v515 = vmul.f32 %v386, %v386
        %v516 = vmul.f32 %v387, %v387
        %v517 = vmul.f32 %v388, %v388
        %v518 = vmul.f32 %v389, %v389
        %v519 = vmul.f32 %v390, %v390
        %v520 = vmul.f32 %v391, %v391
        %v521 = vmul.f32 %v392, %v392
        %522 = vadd.xlane.f32.xlu0 %v490
        %v523 = vpop.xlane.xlu0 %522
        %524 = vadd.xlane.f32.xlu0 %v491
        %v525 = vpop.xlane.xlu0 %524
        %526 = vadd.xlane.f32.xlu0 %v492
        %v527 = vpop.xlane.xlu0 %526
        %528 = vadd.xlane.f32.xlu0 %v493
        %v529 = vpop.xlane.xlu0 %528
        %530 = vadd.xlane.f32.xlu0 %v494
        %v531 = vpop.xlane.xlu0 %530
        %532 = vadd.xlane.f32.xlu0 %v495
        %v533 = vpop.xlane.xlu0 %532
        %534 = vadd.xlane.f32.xlu0 %v496
        %v535 = vpop.xlane.xlu0 %534
        %536 = vadd.xlane.f32.xlu0 %v497
        %v537 = vpop.xlane.xlu0 %536
        %538 = vadd.xlane.f32.xlu0 %v498
        %v539 = vpop.xlane.xlu0 %538
        %540 = vadd.xlane.f32.xlu0 %v499
        %v541 = vpop.xlane.xlu0 %540
        %542 = vadd.xlane.f32.xlu0 %v500
        %v543 = vpop.xlane.xlu0 %542
        %544 = vadd.xlane.f32.xlu0 %v501
        %v545 = vpop.xlane.xlu0 %544
        %546 = vadd.xlane.f32.xlu0 %v502
        %v547 = vpop.xlane.xlu0 %546
        %548 = vadd.xlane.f32.xlu0 %v503
        %v549 = vpop.xlane.xlu0 %548
        %550 = vadd.xlane.f32.xlu0 %v504
        %v551 = vpop.xlane.xlu0 %550
        %552 = vadd.xlane.f32.xlu0 %v505
        %v553 = vpop.xlane.xlu0 %552
        %554 = vadd.xlane.f32.xlu0 %v506
        %v555 = vpop.xlane.xlu0 %554
        %556 = vadd.xlane.f32.xlu0 %v507
        %v557 = vpop.xlane.xlu0 %556
        %558 = vadd.xlane.f32.xlu0 %v508
        %v559 = vpop.xlane.xlu0 %558
        %560 = vadd.xlane.f32.xlu0 %v509
        %v561 = vpop.xlane.xlu0 %560
        %562 = vadd.xlane.f32.xlu0 %v510
        %v563 = vpop.xlane.xlu0 %562
        %564 = vadd.xlane.f32.xlu0 %v511
        %v565 = vpop.xlane.xlu0 %564
        %566 = vadd.xlane.f32.xlu0 %v512
        %v567 = vpop.xlane.xlu0 %566
        %568 = vadd.xlane.f32.xlu0 %v513
        %v569 = vpop.xlane.xlu0 %568
        %570 = vadd.xlane.f32.xlu0 %v514
        %v571 = vpop.xlane.xlu0 %570
        %572 = vadd.xlane.f32.xlu0 %v515
        %v573 = vpop.xlane.xlu0 %572
        %574 = vadd.xlane.f32.xlu0 %v516
        %v575 = vpop.xlane.xlu0 %574
        %576 = vadd.xlane.f32.xlu0 %v517
        %v577 = vpop.xlane.xlu0 %576
        %578 = vadd.xlane.f32.xlu0 %v518
        %v579 = vpop.xlane.xlu0 %578
        %580 = vadd.xlane.f32.xlu0 %v519
        %v581 = vpop.xlane.xlu0 %580
        %582 = vadd.xlane.f32.xlu0 %v520
        %v583 = vpop.xlane.xlu0 %582
        %584 = vadd.xlane.f32.xlu0 %v521
        %v585 = vpop.xlane.xlu0 %584
        %v586 = vmul.f32 %v523, %v457
        %v587 = vmul.f32 %v525, %v457
        %v588 = vmul.f32 %v527, %v457
        %v589 = vmul.f32 %v529, %v457
        %v590 = vmul.f32 %v531, %v457
        %v591 = vmul.f32 %v533, %v457
        %v592 = vmul.f32 %v535, %v457
        %v593 = vmul.f32 %v537, %v457
        %v594 = vmul.f32 %v539, %v457
        %v595 = vmul.f32 %v541, %v457
        %v596 = vmul.f32 %v543, %v457
        %v597 = vmul.f32 %v545, %v457
        %v598 = vmul.f32 %v547, %v457
        %v599 = vmul.f32 %v549, %v457
        %v600 = vmul.f32 %v551, %v457
        %v601 = vmul.f32 %v553, %v457
        %v602 = vmul.f32 %v555, %v457
        %v603 = vmul.f32 %v557, %v457
        %v604 = vmul.f32 %v559, %v457
        %v605 = vmul.f32 %v561, %v457
        %v606 = vmul.f32 %v563, %v457
        %v607 = vmul.f32 %v565, %v457
        %v608 = vmul.f32 %v567, %v457
        %v609 = vmul.f32 %v569, %v457
        %v610 = vmul.f32 %v571, %v457
        %v611 = vmul.f32 %v573, %v457
        %v612 = vmul.f32 %v575, %v457
        %v613 = vmul.f32 %v577, %v457
        %v614 = vmul.f32 %v579, %v457
        %v615 = vmul.f32 %v581, %v457
        %v616 = vmul.f32 %v583, %v457
        %v617 = vmul.f32 %v585, %v457
        %v618 = vmul.f32 %v458, %v458
        %v619 = vmul.f32 %v459, %v459
        %v620 = vmul.f32 %v460, %v460
        %v621 = vmul.f32 %v461, %v461
        %v622 = vmul.f32 %v462, %v462
        %v623 = vmul.f32 %v463, %v463
        %v624 = vmul.f32 %v464, %v464
        %v625 = vmul.f32 %v465, %v465
        %v626 = vmul.f32 %v466, %v466
        %v627 = vmul.f32 %v467, %v467
        %v628 = vmul.f32 %v468, %v468
        %v629 = vmul.f32 %v469, %v469
        %v630 = vmul.f32 %v470, %v470
        %v631 = vmul.f32 %v471, %v471
        %v632 = vmul.f32 %v472, %v472
        %v633 = vmul.f32 %v473, %v473
        %v634 = vmul.f32 %v474, %v474
        %v635 = vmul.f32 %v475, %v475
        %v636 = vmul.f32 %v476, %v476
        %v637 = vmul.f32 %v477, %v477
        %v638 = vmul.f32 %v478, %v478
        %v639 = vmul.f32 %v479, %v479
        %v640 = vmul.f32 %v480, %v480
        %v641 = vmul.f32 %v481, %v481
        %v642 = vmul.f32 %v482, %v482
        %v643 = vmul.f32 %v483, %v483
        %v644 = vmul.f32 %v484, %v484
        %v645 = vmul.f32 %v485, %v485
        %v646 = vmul.f32 %v486, %v486
        %v647 = vmul.f32 %v487, %v487
        %v648 = vmul.f32 %v488, %v488
        %v649 = vmul.f32 %v489, %v489
        %v650 = vsub.f32 %v586, %v618
        %v651 = vsub.f32 %v587, %v619
        %v652 = vsub.f32 %v588, %v620
        %v653 = vsub.f32 %v589, %v621
        %v654 = vsub.f32 %v590, %v622
        %v655 = vsub.f32 %v591, %v623
        %v656 = vsub.f32 %v592, %v624
        %v657 = vsub.f32 %v593, %v625
        %v658 = vsub.f32 %v594, %v626
        %v659 = vsub.f32 %v595, %v627
        %v660 = vsub.f32 %v596, %v628
        %v661 = vsub.f32 %v597, %v629
        %v662 = vsub.f32 %v598, %v630
        %v663 = vsub.f32 %v599, %v631
        %v664 = vsub.f32 %v600, %v632
        %v665 = vsub.f32 %v601, %v633
        %v666 = vsub.f32 %v602, %v634
        %v667 = vsub.f32 %v603, %v635
        %v668 = vsub.f32 %v604, %v636
        %v669 = vsub.f32 %v605, %v637
        %v670 = vsub.f32 %v606, %v638
        %v671 = vsub.f32 %v607, %v639
        %v672 = vsub.f32 %v608, %v640
        %v673 = vsub.f32 %v609, %v641
        %v674 = vsub.f32 %v610, %v642
        %v675 = vsub.f32 %v611, %v643
        %v676 = vsub.f32 %v612, %v644
        %v677 = vsub.f32 %v613, %v645
        %v678 = vsub.f32 %v614, %v646
        %v679 = vsub.f32 %v615, %v647
        %v680 = vsub.f32 %v616, %v648
        %v681 = vsub.f32 %v617, %v649
        %v682 = vmax.f32 %v650, 0.0
        %v683 = vmax.f32 %v651, 0.0
        %v684 = vmax.f32 %v652, 0.0
        %v685 = vmax.f32 %v653, 0.0
        %v686 = vmax.f32 %v654, 0.0
        %v687 = vmax.f32 %v655, 0.0
        %v688 = vmax.f32 %v656, 0.0
        %v689 = vmax.f32 %v657, 0.0
        %v690 = vmax.f32 %v658, 0.0
        %v691 = vmax.f32 %v659, 0.0
        %v692 = vmax.f32 %v660, 0.0
        %v693 = vmax.f32 %v661, 0.0
        %v694 = vmax.f32 %v662, 0.0
        %v695 = vmax.f32 %v663, 0.0
        %v696 = vmax.f32 %v664, 0.0
        %v697 = vmax.f32 %v665, 0.0
        %v698 = vmax.f32 %v666, 0.0
        %v699 = vmax.f32 %v667, 0.0
        %v700 = vmax.f32 %v668, 0.0
        %v701 = vmax.f32 %v669, 0.0
        %v702 = vmax.f32 %v670, 0.0
        %v703 = vmax.f32 %v671, 0.0
        %v704 = vmax.f32 %v672, 0.0
        %v705 = vmax.f32 %v673, 0.0
        %v706 = vmax.f32 %v674, 0.0
        %v707 = vmax.f32 %v675, 0.0
        %v708 = vmax.f32 %v676, 0.0
        %v709 = vmax.f32 %v677, 0.0
        %v710 = vmax.f32 %v678, 0.0
        %v711 = vmax.f32 %v679, 0.0
        %v712 = vmax.f32 %v680, 0.0
        %v713 = vmax.f32 %v681, 0.0
        %v714 = vsub.f32 %v361, %v458
        %v715 = vsub.f32 %v362, %v459
        %v716 = vsub.f32 %v363, %v460
        %v717 = vsub.f32 %v364, %v461
        %v718 = vsub.f32 %v365, %v462
        %v719 = vsub.f32 %v366, %v463
        %v720 = vsub.f32 %v367, %v464
        %v721 = vsub.f32 %v368, %v465
        %v722 = vsub.f32 %v369, %v466
        %v723 = vsub.f32 %v370, %v467
        %v724 = vsub.f32 %v371, %v468
        %v725 = vsub.f32 %v372, %v469
        %v726 = vsub.f32 %v373, %v470
        %v727 = vsub.f32 %v374, %v471
        %v728 = vsub.f32 %v375, %v472
        %v729 = vsub.f32 %v376, %v473
        %v730 = vsub.f32 %v377, %v474
        %v731 = vsub.f32 %v378, %v475
        %v732 = vsub.f32 %v379, %v476
        %v733 = vsub.f32 %v380, %v477
        %v734 = vsub.f32 %v381, %v478
        %v735 = vsub.f32 %v382, %v479
        %v736 = vsub.f32 %v383, %v480
        %v737 = vsub.f32 %v384, %v481
        %v738 = vsub.f32 %v385, %v482
        %v739 = vsub.f32 %v386, %v483
        %v740 = vsub.f32 %v387, %v484
        %v741 = vsub.f32 %v388, %v485
        %v742 = vsub.f32 %v389, %v486
        %v743 = vsub.f32 %v390, %v487
        %v744 = vsub.f32 %v391, %v488
        %v745 = vsub.f32 %v392, %v489
        %v746 = vadd.f32 %v682, 1e-05
        %v747 = vadd.f32 %v683, 1e-05
        %v748 = vadd.f32 %v684, 1e-05
        %v749 = vadd.f32 %v685, 1e-05
        %v750 = vadd.f32 %v686, 1e-05
        %v751 = vadd.f32 %v687, 1e-05
        %v752 = vadd.f32 %v688, 1e-05
        %v753 = vadd.f32 %v689, 1e-05
        %v754 = vadd.f32 %v690, 1e-05
        %v755 = vadd.f32 %v691, 1e-05
        %v756 = vadd.f32 %v692, 1e-05
        %v757 = vadd.f32 %v693, 1e-05
        %v758 = vadd.f32 %v694, 1e-05
        %v759 = vadd.f32 %v695, 1e-05
        %v760 = vadd.f32 %v696, 1e-05
        %v761 = vadd.f32 %v697, 1e-05
        %v762 = vadd.f32 %v698, 1e-05
        %v763 = vadd.f32 %v699, 1e-05
        %v764 = vadd.f32 %v700, 1e-05
        %v765 = vadd.f32 %v701, 1e-05
        %v766 = vadd.f32 %v702, 1e-05
        %v767 = vadd.f32 %v703, 1e-05
        %v768 = vadd.f32 %v704, 1e-05
        %v769 = vadd.f32 %v705, 1e-05
        %v770 = vadd.f32 %v706, 1e-05
        %v771 = vadd.f32 %v707, 1e-05
        %v772 = vadd.f32 %v708, 1e-05
        %v773 = vadd.f32 %v709, 1e-05
        %v774 = vadd.f32 %v710, 1e-05
        %v775 = vadd.f32 %v711, 1e-05
        %v776 = vadd.f32 %v712, 1e-05
        %v777 = vadd.f32 %v713, 1e-05
        %v778 = vrsqrt.pop %v746
        %v779 = vrsqrt.pop %v747
        %v780 = vrsqrt.pop %v748
        %v781 = vrsqrt.pop %v749
        %v782 = vrsqrt.pop %v750
        %v783 = vrsqrt.pop %v751
        %v784 = vrsqrt.pop %v752
        %v785 = vrsqrt.pop %v753
        %v786 = vrsqrt.pop %v754
        %v787 = vrsqrt.pop %v755
        %v788 = vrsqrt.pop %v756
        %v789 = vrsqrt.pop %v757
        %v790 = vrsqrt.pop %v758
        %v791 = vrsqrt.pop %v759
        %v792 = vrsqrt.pop %v760
        %v793 = vrsqrt.pop %v761
        %v794 = vrsqrt.pop %v762
        %v795 = vrsqrt.pop %v763
        %v796 = vrsqrt.pop %v764
        %v797 = vrsqrt.pop %v765
        %v798 = vrsqrt.pop %v766
        %v799 = vrsqrt.pop %v767
        %v800 = vrsqrt.pop %v768
        %v801 = vrsqrt.pop %v769
        %v802 = vrsqrt.pop %v770
        %v803 = vrsqrt.pop %v771
        %v804 = vrsqrt.pop %v772
        %v805 = vrsqrt.pop %v773
        %v806 = vrsqrt.pop %v774
        %v807 = vrsqrt.pop %v775
        %v808 = vrsqrt.pop %v776
        %v809 = vrsqrt.pop %v777
        %v810 = vmul.f32 %v714, %v778
        %v811 = vmul.f32 %v715, %v779
        %v812 = vmul.f32 %v716, %v780
        %v813 = vmul.f32 %v717, %v781
        %v814 = vmul.f32 %v718, %v782
        %v815 = vmul.f32 %v719, %v783
        %v816 = vmul.f32 %v720, %v784
        %v817 = vmul.f32 %v721, %v785
        %v818 = vmul.f32 %v722, %v786
        %v819 = vmul.f32 %v723, %v787
        %v820 = vmul.f32 %v724, %v788
        %v821 = vmul.f32 %v725, %v789
        %v822 = vmul.f32 %v726, %v790
        %v823 = vmul.f32 %v727, %v791
        %v824 = vmul.f32 %v728, %v792
        %v825 = vmul.f32 %v729, %v793
        %v826 = vmul.f32 %v730, %v794
        %v827 = vmul.f32 %v731, %v795
        %v828 = vmul.f32 %v732, %v796
        %v829 = vmul.f32 %v733, %v797
        %v830 = vmul.f32 %v734, %v798
        %v831 = vmul.f32 %v735, %v799
        %v832 = vmul.f32 %v736, %v800
        %v833 = vmul.f32 %v737, %v801
        %v834 = vmul.f32 %v738, %v802
        %v835 = vmul.f32 %v739, %v803
        %v836 = vmul.f32 %v740, %v804
        %v837 = vmul.f32 %v741, %v805
        %v838 = vmul.f32 %v742, %v806
        %v839 = vmul.f32 %v743, %v807
        %v840 = vmul.f32 %v744, %v808
        %v841 = vmul.f32 %v745, %v809
        %v842 = vld [vmem:[%s1] sm:$0x1]
        %v844 = vlaneseq
        %v845 = vshrl.u32 %v844, 7
        %v846 = vsub.s32 0, %v845
        %v847 = vrot.slane %v842, %v846
        %v849 = vmul.f32 %v810, %v847
        %v850 = vmul.f32 %v811, %v847
        %v851 = vmul.f32 %v812, %v847
        %v852 = vmul.f32 %v813, %v847
        %v853 = vmul.f32 %v814, %v847
        %v854 = vmul.f32 %v815, %v847
        %v855 = vmul.f32 %v816, %v847
        %v856 = vmul.f32 %v817, %v847
        %v857 = vmul.f32 %v818, %v847
        %v858 = vmul.f32 %v819, %v847
        %v859 = vmul.f32 %v820, %v847
        %v860 = vmul.f32 %v821, %v847
        %v861 = vmul.f32 %v822, %v847
        %v862 = vmul.f32 %v823, %v847
        %v863 = vmul.f32 %v824, %v847
        %v864 = vmul.f32 %v825, %v847
        %v865 = vmul.f32 %v826, %v847
        %v866 = vmul.f32 %v827, %v847
        %v867 = vmul.f32 %v828, %v847
        %v868 = vmul.f32 %v829, %v847
        %v869 = vmul.f32 %v830, %v847
        %v870 = vmul.f32 %v831, %v847
        %v871 = vmul.f32 %v832, %v847
        %v872 = vmul.f32 %v833, %v847
        %v873 = vmul.f32 %v834, %v847
        %v874 = vmul.f32 %v835, %v847
        %v875 = vmul.f32 %v836, %v847
        %v876 = vmul.f32 %v837, %v847
        %v877 = vmul.f32 %v838, %v847
        %v878 = vmul.f32 %v839, %v847
        %v879 = vmul.f32 %v840, %v847
        %v880 = vmul.f32 %v841, %v847
        %v881 = vld [vmem:[%s2] sm:$0x1]
        %v883 = vlaneseq
        %v884 = vshrl.u32 %v883, 7
        %v885 = vsub.s32 0, %v884
        %v886 = vrot.slane %v881, %v885
        %v888 = vadd.f32 %v849, %v886
        %v889 = vadd.f32 %v850, %v886
        %v890 = vadd.f32 %v851, %v886
        %v891 = vadd.f32 %v852, %v886
        %v892 = vadd.f32 %v853, %v886
        %v893 = vadd.f32 %v854, %v886
        %v894 = vadd.f32 %v855, %v886
        %v895 = vadd.f32 %v856, %v886
        %v896 = vadd.f32 %v857, %v886
        %v897 = vadd.f32 %v858, %v886
        %v898 = vadd.f32 %v859, %v886
        %v899 = vadd.f32 %v860, %v886
        %v900 = vadd.f32 %v861, %v886
        %v901 = vadd.f32 %v862, %v886
        %v902 = vadd.f32 %v863, %v886
        %v903 = vadd.f32 %v864, %v886
        %v904 = vadd.f32 %v865, %v886
        %v905 = vadd.f32 %v866, %v886
        %v906 = vadd.f32 %v867, %v886
        %v907 = vadd.f32 %v868, %v886
        %v908 = vadd.f32 %v869, %v886
        %v909 = vadd.f32 %v870, %v886
        %v910 = vadd.f32 %v871, %v886
        %v911 = vadd.f32 %v872, %v886
        %v912 = vadd.f32 %v873, %v886
        %v913 = vadd.f32 %v874, %v886
        %v914 = vadd.f32 %v875, %v886
        %v915 = vadd.f32 %v876, %v886
        %v916 = vadd.f32 %v877, %v886
        %v917 = vadd.f32 %v878, %v886
        %v918 = vadd.f32 %v879, %v886
        %v919 = vadd.f32 %v880, %v886
        %v920 = vpack.c.bf16 %v889, %v888
        %v921 = vpack.c.bf16 %v891, %v890
        %v922 = vpack.c.bf16 %v893, %v892
        %v923 = vpack.c.bf16 %v895, %v894
        %v924 = vpack.c.bf16 %v897, %v896
        %v925 = vpack.c.bf16 %v899, %v898
        %v926 = vpack.c.bf16 %v901, %v900
        %v927 = vpack.c.bf16 %v903, %v902
        %v928 = vpack.c.bf16 %v905, %v904
        %v929 = vpack.c.bf16 %v907, %v906
        %v930 = vpack.c.bf16 %v909, %v908
        %v931 = vpack.c.bf16 %v911, %v910
        %v932 = vpack.c.bf16 %v913, %v912
        %v933 = vpack.c.bf16 %v915, %v914
        %v934 = vpack.c.bf16 %v917, %v916
        %v935 = vpack.c.bf16 %v919, %v918
        %v936 = vld [vmem:[#allocation5] sm:$0xff]
        %v937 = vld [vmem:[#allocation5 + $0x8] sm:$0xff]
        %v938 = vld [vmem:[#allocation5 + $0x10] sm:$0xff]
        %v939 = vld [vmem:[#allocation5 + $0x18] sm:$0xff]
        %v940 = vld [vmem:[#allocation5 + $0x20] sm:$0xff]
        %v941 = vld [vmem:[#allocation5 + $0x28] sm:$0xff]
        %v942 = vld [vmem:[#allocation5 + $0x30] sm:$0xff]
        %v943 = vld [vmem:[#allocation5 + $0x38] sm:$0xff]
        %v944 = vld [vmem:[#allocation5 + $0x40] sm:$0xff]
        %v945 = vld [vmem:[#allocation5 + $0x48] sm:$0xff]
        %v946 = vld [vmem:[#allocation5 + $0x50] sm:$0xff]
        %v947 = vld [vmem:[#allocation5 + $0x58] sm:$0xff]
        %v948 = vld [vmem:[#allocation5 + $0x60] sm:$0xff]
        %v949 = vld [vmem:[#allocation5 + $0x68] sm:$0xff]
        %v950 = vld [vmem:[#allocation5 + $0x70] sm:$0xff]
        %v951 = vld [vmem:[#allocation5 + $0x78] sm:$0xff]
        %v952 = vld [vmem:[%s4] sm:$0x3]
        %v954 = vlaneseq
        %v955 = vshrl.u32 %v954, 7
        %v956 = vsub.s32 0, %v955
        %v957 = vrot.slane %v952, %v956
        %v958 = vlaneseq
        %v959 = vshrl.u32 %v958, 7
        %v960 = vsub.s32 1, %v959
        %v961 = vrot.slane %v952, %v960
        %v980 = vunpack.c.l.b16 %v936
        %v981 = vunpack.c.h.b16 %v936
        %v982 = vunpack.c.l.b16 %v937
        %v983 = vunpack.c.h.b16 %v937
        %v984 = vunpack.c.l.b16 %v938
        %v985 = vunpack.c.h.b16 %v938
        %v986 = vunpack.c.l.b16 %v939
        %v987 = vunpack.c.h.b16 %v939
        %v988 = vunpack.c.l.b16 %v940
        %v989 = vunpack.c.h.b16 %v940
        %v990 = vunpack.c.l.b16 %v941
        %v991 = vunpack.c.h.b16 %v941
        %v992 = vunpack.c.l.b16 %v942
        %v993 = vunpack.c.h.b16 %v942
        %v994 = vunpack.c.l.b16 %v943
        %v995 = vunpack.c.h.b16 %v943
        %v996 = vunpack.c.l.b16 %v944
        %v997 = vunpack.c.h.b16 %v944
        %v998 = vunpack.c.l.b16 %v945
        %v999 = vunpack.c.h.b16 %v945
        %v1000 = vunpack.c.l.b16 %v946
        %v1001 = vunpack.c.h.b16 %v946
        %v1002 = vunpack.c.l.b16 %v947
        %v1003 = vunpack.c.h.b16 %v947
        %v1004 = vunpack.c.l.b16 %v948
        %v1005 = vunpack.c.h.b16 %v948
        %v1006 = vunpack.c.l.b16 %v949
        %v1007 = vunpack.c.h.b16 %v949
        %v1008 = vunpack.c.l.b16 %v950
        %v1009 = vunpack.c.h.b16 %v950
        %v1010 = vunpack.c.l.b16 %v951
        %v1011 = vunpack.c.h.b16 %v951
        %v1012 = vpack.c.b16 %v982, %v980
        %v1013 = vpack.c.b16 %v983, %v981
        %v1014 = vpack.c.b16 %v986, %v984
        %v1015 = vpack.c.b16 %v987, %v985
        %v1016 = vpack.c.b16 %v990, %v988
        %v1017 = vpack.c.b16 %v991, %v989
        %v1018 = vpack.c.b16 %v994, %v992
        %v1019 = vpack.c.b16 %v995, %v993
        %v1020 = vpack.c.b16 %v998, %v996
        %v1021 = vpack.c.b16 %v999, %v997
        %v1022 = vpack.c.b16 %v1002, %v1000
        %v1023 = vpack.c.b16 %v1003, %v1001
        %v1024 = vpack.c.b16 %v1006, %v1004
        %v1025 = vpack.c.b16 %v1007, %v1005
        %v1026 = vpack.c.b16 %v1010, %v1008
        %v1027 = vpack.c.b16 %v1011, %v1009
        %1044 = vmatprep.subr.bf16.mxu0 %v1013
        %1045 = vmatpush1.bf16.msra.mxu0 %v1012
        %1046 = vmatprep.subr.bf16.mxu0 %v1015
        %1047 = vmatpush1.bf16.msra.mxu0 %v1014
        %1048 = vmatprep.subr.bf16.mxu0 %v1017
        %1049 = vmatpush1.bf16.msra.mxu0 %v1016
        %1050 = vmatprep.subr.bf16.mxu0 %v1019
        %1051 = vmatpush1.bf16.msra.mxu0 %v1018
        %1052 = vmatprep.subr.bf16.mxu0 %v1021
        %1053 = vmatpush1.bf16.msra.mxu0 %v1020
        %1054 = vmatprep.subr.bf16.mxu0 %v1023
        %1055 = vmatpush1.bf16.msra.mxu0 %v1022
        %1056 = vmatprep.subr.bf16.mxu0 %v1025
        %1057 = vmatpush1.bf16.msra.mxu0 %v1024
        %1058 = vmatprep.subr.bf16.mxu0 %v1027
        %1059 = vmatpush1.bf16.msra.mxu0 %v1026
        %1060 = vmatprep.subr.bf16.mxu0 0
        %1061 = vmatpush1.bf16.msra.mxu0 0
        %1062 = vmatprep.subr.bf16.mxu0 0
        %1063 = vmatpush1.bf16.msra.mxu0 0
        %1064 = vmatprep.subr.bf16.mxu0 0
        %1065 = vmatpush1.bf16.msra.mxu0 0
        %1066 = vmatprep.subr.bf16.mxu0 0
        %1067 = vmatpush1.bf16.msra.mxu0 0
        %1068 = vmatprep.subr.bf16.mxu0 0
        %1069 = vmatpush1.bf16.msra.mxu0 0
        %1070 = vmatprep.subr.bf16.mxu0 0
        %1071 = vmatpush1.bf16.msra.mxu0 0
        %1072 = vmatprep.subr.bf16.mxu0 0
        %1073 = vmatpush1.bf16.msra.mxu0 0
        %1074 = vmatprep.subr.bf16.mxu0 0
        %1075 = vmatpush1.bf16.msra.mxu0 0
        %1076 = vmatprep.mubr.bf16.mxu0 0
        %1077 = vmatmul.mubr.bf16.gmra.mrb[0].mxu0 %v920
        %v1078 = vpop.f32.mrb[0].mxu0
        %v1079 = vadd.f32 %v957, %v1078
        %v1080 = vpop.f32.mrb[0].mxu0
        %v1081 = vadd.f32 %v961, %v1080
        %v1082 = vpop.f32.mrb[0].mxu0
        %v1083 = vadd.f32 %v957, %v1082
        %v1084 = vpop.f32.mrb[0].mxu0
        %v1085 = vadd.f32 %v961, %v1084
        %1086 = vmatprep.mubr.bf16.mxu0 0
        %1087 = vmatmul.mubr.bf16.gmra.mrb[0].mxu0 %v921
        %v1088 = vpop.f32.mrb[0].mxu0
        %v1089 = vadd.f32 %v957, %v1088
        %v1090 = vpop.f32.mrb[0].mxu0
        %v1091 = vadd.f32 %v961, %v1090
        %v1092 = vpop.f32.mrb[0].mxu0
        %v1093 = vadd.f32 %v957, %v1092
        %v1094 = vpop.f32.mrb[0].mxu0
        %v1095 = vadd.f32 %v961, %v1094
        %1096 = vmatprep.mubr.bf16.mxu0 0
        %1097 = vmatmul.mubr.bf16.gmra.mrb[0].mxu0 %v922
        %v1098 = vpop.f32.mrb[0].mxu0
        %v1099 = vadd.f32 %v957, %v1098
        %v1100 = vpop.f32.mrb[0].mxu0
        %v1101 = vadd.f32 %v961, %v1100
        %v1102 = vpop.f32.mrb[0].mxu0
        %v1103 = vadd.f32 %v957, %v1102
        %v1104 = vpop.f32.mrb[0].mxu0
        %v1105 = vadd.f32 %v961, %v1104
        %1106 = vmatprep.mubr.bf16.mxu0 0
        %1107 = vmatmul.mubr.bf16.gmra.mrb[0].mxu0 %v923
        %v1108 = vpop.f32.mrb[0].mxu0
        %v1109 = vadd.f32 %v957, %v1108
        %v1110 = vpop.f32.mrb[0].mxu0
        %v1111 = vadd.f32 %v961, %v1110
        %v1112 = vpop.f32.mrb[0].mxu0
        %v1113 = vadd.f32 %v957, %v1112
        %v1114 = vpop.f32.mrb[0].mxu0
        %v1115 = vadd.f32 %v961, %v1114
        %1116 = vmatprep.mubr.bf16.mxu0 0
        %1117 = vmatmul.mubr.bf16.gmra.mrb[0].mxu0 %v924
        %v1118 = vpop.f32.mrb[0].mxu0
        %v1119 = vadd.f32 %v957, %v1118
        %v1120 = vpop.f32.mrb[0].mxu0
        %v1121 = vadd.f32 %v961, %v1120
        %v1122 = vpop.f32.mrb[0].mxu0
        %v1123 = vadd.f32 %v957, %v1122
        %v1124 = vpop.f32.mrb[0].mxu0
        %v1125 = vadd.f32 %v961, %v1124
        %1126 = vmatprep.mubr.bf16.mxu0 0
        %1127 = vmatmul.mubr.bf16.gmra.mrb[0].mxu0 %v925
        %v1128 = vpop.f32.mrb[0].mxu0
        %v1129 = vadd.f32 %v957, %v1128
        %v1130 = vpop.f32.mrb[0].mxu0
        %v1131 = vadd.f32 %v961, %v1130
        %v1132 = vpop.f32.mrb[0].mxu0
        %v1133 = vadd.f32 %v957, %v1132
        %v1134 = vpop.f32.mrb[0].mxu0
        %v1135 = vadd.f32 %v961, %v1134
        %1136 = vmatprep.mubr.bf16.mxu0 0
        %1137 = vmatmul.mubr.bf16.gmra.mrb[0].mxu0 %v926
        %v1138 = vpop.f32.mrb[0].mxu0
        %v1139 = vadd.f32 %v957, %v1138
        %v1140 = vpop.f32.mrb[0].mxu0
        %v1141 = vadd.f32 %v961, %v1140
        %v1142 = vpop.f32.mrb[0].mxu0
        %v1143 = vadd.f32 %v957, %v1142
        %v1144 = vpop.f32.mrb[0].mxu0
        %v1145 = vadd.f32 %v961, %v1144
        %1146 = vmatprep.mubr.bf16.mxu0 0
        %1147 = vmatmul.mubr.bf16.gmra.mrb[0].mxu0 %v927
        %v1148 = vpop.f32.mrb[0].mxu0
        %v1149 = vadd.f32 %v957, %v1148
        %v1150 = vpop.f32.mrb[0].mxu0
        %v1151 = vadd.f32 %v961, %v1150
        %v1152 = vpop.f32.mrb[0].mxu0
        %v1153 = vadd.f32 %v957, %v1152
        %v1154 = vpop.f32.mrb[0].mxu0
        %v1155 = vadd.f32 %v961, %v1154
        %1156 = vmatprep.mubr.bf16.mxu0 0
        %1157 = vmatmul.mubr.bf16.gmra.mrb[0].mxu0 %v928
        %v1158 = vpop.f32.mrb[0].mxu0
        %v1159 = vadd.f32 %v957, %v1158
        %v1160 = vpop.f32.mrb[0].mxu0
        %v1161 = vadd.f32 %v961, %v1160
        %v1162 = vpop.f32.mrb[0].mxu0
        %v1163 = vadd.f32 %v957, %v1162
        %v1164 = vpop.f32.mrb[0].mxu0
        %v1165 = vadd.f32 %v961, %v1164
        %1166 = vmatprep.mubr.bf16.mxu0 0
        %1167 = vmatmul.mubr.bf16.gmra.mrb[0].mxu0 %v929
        %v1168 = vpop.f32.mrb[0].mxu0
        %v1169 = vadd.f32 %v957, %v1168
        %v1170 = vpop.f32.mrb[0].mxu0
        %v1171 = vadd.f32 %v961, %v1170
        %v1172 = vpop.f32.mrb[0].mxu0
        %v1173 = vadd.f32 %v957, %v1172
        %v1174 = vpop.f32.mrb[0].mxu0
        %v1175 = vadd.f32 %v961, %v1174
        %1176 = vmatprep.mubr.bf16.mxu0 0
        %1177 = vmatmul.mubr.bf16.gmra.mrb[0].mxu0 %v930
        %v1178 = vpop.f32.mrb[0].mxu0
        %v1179 = vadd.f32 %v957, %v1178
        %v1180 = vpop.f32.mrb[0].mxu0
        %v1181 = vadd.f32 %v961, %v1180
        %v1182 = vpop.f32.mrb[0].mxu0
        %v1183 = vadd.f32 %v957, %v1182
        %v1184 = vpop.f32.mrb[0].mxu0
        %v1185 = vadd.f32 %v961, %v1184
        %1186 = vmatprep.mubr.bf16.mxu0 0
        %1187 = vmatmul.mubr.bf16.gmra.mrb[0].mxu0 %v931
        %v1188 = vpop.f32.mrb[0].mxu0
        %v1189 = vadd.f32 %v957, %v1188
        %v1190 = vpop.f32.mrb[0].mxu0
        %v1191 = vadd.f32 %v961, %v1190
        %v1192 = vpop.f32.mrb[0].mxu0
        %v1193 = vadd.f32 %v957, %v1192
        %v1194 = vpop.f32.mrb[0].mxu0
        %v1195 = vadd.f32 %v961, %v1194
        %1196 = vmatprep.mubr.bf16.mxu0 0
        %1197 = vmatmul.mubr.bf16.gmra.mrb[0].mxu0 %v932
        %v1198 = vpop.f32.mrb[0].mxu0
        %v1199 = vadd.f32 %v957, %v1198
        %v1200 = vpop.f32.mrb[0].mxu0
        %v1201 = vadd.f32 %v961, %v1200
        %v1202 = vpop.f32.mrb[0].mxu0
        %v1203 = vadd.f32 %v957, %v1202
        %v1204 = vpop.f32.mrb[0].mxu0
        %v1205 = vadd.f32 %v961, %v1204
        %1206 = vmatprep.mubr.bf16.mxu0 0
        %1207 = vmatmul.mubr.bf16.gmra.mrb[0].mxu0 %v933
        %v1208 = vpop.f32.mrb[0].mxu0
        %v1209 = vadd.f32 %v957, %v1208
        %v1210 = vpop.f32.mrb[0].mxu0
        %v1211 = vadd.f32 %v961, %v1210
        %v1212 = vpop.f32.mrb[0].mxu0
        %v1213 = vadd.f32 %v957, %v1212
        %v1214 = vpop.f32.mrb[0].mxu0
        %v1215 = vadd.f32 %v961, %v1214
        %1216 = vmatprep.mubr.bf16.mxu0 0
        %1217 = vmatmul.mubr.bf16.gmra.mrb[0].mxu0 %v934
        %v1218 = vpop.f32.mrb[0].mxu0
        %v1219 = vadd.f32 %v957, %v1218
        %v1220 = vpop.f32.mrb[0].mxu0
        %v1221 = vadd.f32 %v961, %v1220
        %v1222 = vpop.f32.mrb[0].mxu0
        %v1223 = vadd.f32 %v957, %v1222
        %v1224 = vpop.f32.mrb[0].mxu0
        %v1225 = vadd.f32 %v961, %v1224
        %1226 = vmatprep.mubr.bf16.mxu0 0
        %1227 = vmatmul.mubr.bf16.gmra.mrb[0].mxu0 %v935
        %v1228 = vpop.f32.mrb[0].mxu0
        %v1229 = vadd.f32 %v957, %v1228
        %v1230 = vpop.f32.mrb[0].mxu0
        %v1231 = vadd.f32 %v961, %v1230
        %v1232 = vpop.f32.mrb[0].mxu0
        %v1233 = vadd.f32 %v957, %v1232
        %v1234 = vpop.f32.mrb[0].mxu0
        %v1235 = vadd.f32 %v961, %v1234
        %1236 = vdwg.mxu0
        %v1237 = vmax.f32 %v1079, 0.0
        %v1238 = vmax.f32 %v1081, 0.0
        %v1239 = vmax.f32 %v1083, 0.0
        %v1240 = vmax.f32 %v1085, 0.0
        %v1241 = vmax.f32 %v1089, 0.0
        %v1242 = vmax.f32 %v1091, 0.0
        %v1243 = vmax.f32 %v1093, 0.0
        %v1244 = vmax.f32 %v1095, 0.0
        %v1245 = vmax.f32 %v1099, 0.0
        %v1246 = vmax.f32 %v1101, 0.0
        %v1247 = vmax.f32 %v1103, 0.0
        %v1248 = vmax.f32 %v1105, 0.0
        %v1249 = vmax.f32 %v1109, 0.0
        %v1250 = vmax.f32 %v1111, 0.0
        %v1251 = vmax.f32 %v1113, 0.0
        %v1252 = vmax.f32 %v1115, 0.0
        %v1253 = vmax.f32 %v1119, 0.0
        %v1254 = vmax.f32 %v1121, 0.0
        %v1255 = vmax.f32 %v1123, 0.0
        %v1256 = vmax.f32 %v1125, 0.0
        %v1257 = vmax.f32 %v1129, 0.0
        %v1258 = vmax.f32 %v1131, 0.0
        %v1259 = vmax.f32 %v1133, 0.0
        %v1260 = vmax.f32 %v1135, 0.0
        %v1261 = vmax.f32 %v1139, 0.0
        %v1262 = vmax.f32 %v1141, 0.0
        %v1263 = vmax.f32 %v1143, 0.0
        %v1264 = vmax.f32 %v1145, 0.0
        %v1265 = vmax.f32 %v1149, 0.0
        %v1266 = vmax.f32 %v1151, 0.0
        %v1267 = vmax.f32 %v1153, 0.0
        %v1268 = vmax.f32 %v1155, 0.0
        %v1269 = vmax.f32 %v1159, 0.0
        %v1270 = vmax.f32 %v1161, 0.0
        %v1271 = vmax.f32 %v1163, 0.0
        %v1272 = vmax.f32 %v1165, 0.0
        %v1273 = vmax.f32 %v1169, 0.0
        %v1274 = vmax.f32 %v1171, 0.0
        %v1275 = vmax.f32 %v1173, 0.0
        %v1276 = vmax.f32 %v1175, 0.0
        %v1277 = vmax.f32 %v1179, 0.0
        %v1278 = vmax.f32 %v1181, 0.0
        %v1279 = vmax.f32 %v1183, 0.0
        %v1280 = vmax.f32 %v1185, 0.0
        %v1281 = vmax.f32 %v1189, 0.0
        %v1282 = vmax.f32 %v1191, 0.0
        %v1283 = vmax.f32 %v1193, 0.0
        %v1284 = vmax.f32 %v1195, 0.0
        %v1285 = vmax.f32 %v1199, 0.0
        %v1286 = vmax.f32 %v1201, 0.0
        %v1287 = vmax.f32 %v1203, 0.0
        %v1288 = vmax.f32 %v1205, 0.0
        %v1289 = vmax.f32 %v1209, 0.0
        %v1290 = vmax.f32 %v1211, 0.0
        %v1291 = vmax.f32 %v1213, 0.0
        %v1292 = vmax.f32 %v1215, 0.0
        %v1293 = vmax.f32 %v1219, 0.0
        %v1294 = vmax.f32 %v1221, 0.0
        %v1295 = vmax.f32 %v1223, 0.0
        %v1296 = vmax.f32 %v1225, 0.0
        %v1297 = vmax.f32 %v1229, 0.0
        %v1298 = vmax.f32 %v1231, 0.0
        %v1299 = vmax.f32 %v1233, 0.0
        %v1300 = vmax.f32 %v1235, 0.0
        %v1301 = vpack.c.bf16 %v1239, %v1237
        %v1302 = vpack.c.bf16 %v1240, %v1238
        %v1303 = vpack.c.bf16 %v1243, %v1241
        %v1304 = vpack.c.bf16 %v1244, %v1242
        %v1305 = vpack.c.bf16 %v1247, %v1245
        %v1306 = vpack.c.bf16 %v1248, %v1246
        %v1307 = vpack.c.bf16 %v1251, %v1249
        %v1308 = vpack.c.bf16 %v1252, %v1250
        %v1309 = vpack.c.bf16 %v1255, %v1253
        %v1310 = vpack.c.bf16 %v1256, %v1254
        %v1311 = vpack.c.bf16 %v1259, %v1257
        %v1312 = vpack.c.bf16 %v1260, %v1258
        %v1313 = vpack.c.bf16 %v1263, %v1261
        %v1314 = vpack.c.bf16 %v1264, %v1262
        %v1315 = vpack.c.bf16 %v1267, %v1265
        %v1316 = vpack.c.bf16 %v1268, %v1266
        %v1317 = vpack.c.bf16 %v1271, %v1269
        %v1318 = vpack.c.bf16 %v1272, %v1270
        %v1319 = vpack.c.bf16 %v1275, %v1273
        %v1320 = vpack.c.bf16 %v1276, %v1274
        %v1321 = vpack.c.bf16 %v1279, %v1277
        %v1322 = vpack.c.bf16 %v1280, %v1278
        %v1323 = vpack.c.bf16 %v1283, %v1281
        %v1324 = vpack.c.bf16 %v1284, %v1282
        %v1325 = vpack.c.bf16 %v1287, %v1285
        %v1326 = vpack.c.bf16 %v1288, %v1286
        %v1327 = vpack.c.bf16 %v1291, %v1289
        %v1328 = vpack.c.bf16 %v1292, %v1290
        %v1329 = vpack.c.bf16 %v1295, %v1293
        %v1330 = vpack.c.bf16 %v1296, %v1294
        %v1331 = vpack.c.bf16 %v1299, %v1297
        %v1332 = vpack.c.bf16 %v1300, %v1298
        %v1333 = vld [vmem:[#allocation7] sm:$0xf]
        %v1334 = vld [vmem:[#allocation7 + $0x4] sm:$0xf]
        %v1335 = vld [vmem:[#allocation7 + $0x8] sm:$0xf]
        %v1336 = vld [vmem:[#allocation7 + $0xc] sm:$0xf]
        %v1337 = vld [vmem:[#allocation7 + $0x10] sm:$0xf]
        %v1338 = vld [vmem:[#allocation7 + $0x14] sm:$0xf]
        %v1339 = vld [vmem:[#allocation7 + $0x18] sm:$0xf]
        %v1340 = vld [vmem:[#allocation7 + $0x1c] sm:$0xf]
        %v1341 = vld [vmem:[#allocation7 + $0x20] sm:$0xf]
        %v1342 = vld [vmem:[#allocation7 + $0x24] sm:$0xf]
        %v1343 = vld [vmem:[#allocation7 + $0x28] sm:$0xf]
        %v1344 = vld [vmem:[#allocation7 + $0x2c] sm:$0xf]
        %v1345 = vld [vmem:[#allocation7 + $0x30] sm:$0xf]
        %v1346 = vld [vmem:[#allocation7 + $0x34] sm:$0xf]
        %v1347 = vld [vmem:[#allocation7 + $0x38] sm:$0xf]
        %v1348 = vld [vmem:[#allocation7 + $0x3c] sm:$0xf]
        %v1349 = vld [vmem:[#allocation7 + $0x40] sm:$0xf]
        %v1350 = vld [vmem:[#allocation7 + $0x44] sm:$0xf]
        %v1351 = vld [vmem:[#allocation7 + $0x48] sm:$0xf]
        %v1352 = vld [vmem:[#allocation7 + $0x4c] sm:$0xf]
        %v1353 = vld [vmem:[#allocation7 + $0x50] sm:$0xf]
        %v1354 = vld [vmem:[#allocation7 + $0x54] sm:$0xf]
        %v1355 = vld [vmem:[#allocation7 + $0x58] sm:$0xf]
        %v1356 = vld [vmem:[#allocation7 + $0x5c] sm:$0xf]
        %v1357 = vld [vmem:[#allocation7 + $0x60] sm:$0xf]
        %v1358 = vld [vmem:[#allocation7 + $0x64] sm:$0xf]
        %v1359 = vld [vmem:[#allocation7 + $0x68] sm:$0xf]
        %v1360 = vld [vmem:[#allocation7 + $0x6c] sm:$0xf]
        %v1361 = vld [vmem:[#allocation7 + $0x70] sm:$0xf]
        %v1362 = vld [vmem:[#allocation7 + $0x74] sm:$0xf]
        %v1363 = vld [vmem:[#allocation7 + $0x78] sm:$0xf]
        %v1364 = vld [vmem:[#allocation7 + $0x7c] sm:$0xf]
        %v1365 = vld [vmem:[%s6] sm:$0x1]
        %v1367 = vlaneseq
        %v1368 = vshrl.u32 %v1367, 7
        %v1369 = vsub.s32 0, %v1368
        %v1370 = vrot.slane %v1365, %v1369
        %v1404 = vunpack.c.l.b16 %v1333
        %v1405 = vunpack.c.l.b16 %v1334
        %v1406 = vunpack.c.l.b16 %v1335
        %v1407 = vunpack.c.l.b16 %v1336
        %v1408 = vunpack.c.l.b16 %v1337
        %v1409 = vunpack.c.l.b16 %v1338
        %v1410 = vunpack.c.l.b16 %v1339
        %v1411 = vunpack.c.l.b16 %v1340
        %v1412 = vunpack.c.l.b16 %v1341
        %v1413 = vunpack.c.l.b16 %v1342
        %v1414 = vunpack.c.l.b16 %v1343
        %v1415 = vunpack.c.l.b16 %v1344
        %v1416 = vunpack.c.l.b16 %v1345
        %v1417 = vunpack.c.l.b16 %v1346
        %v1418 = vunpack.c.l.b16 %v1347
        %v1419 = vunpack.c.l.b16 %v1348
        %v1420 = vunpack.c.l.b16 %v1349
        %v1421 = vunpack.c.l.b16 %v1350
        %v1422 = vunpack.c.l.b16 %v1351
        %v1423 = vunpack.c.l.b16 %v1352
        %v1424 = vunpack.c.l.b16 %v1353
        %v1425 = vunpack.c.l.b16 %v1354
        %v1426 = vunpack.c.l.b16 %v1355
        %v1427 = vunpack.c.l.b16 %v1356
        %v1428 = vunpack.c.l.b16 %v1357
        %v1429 = vunpack.c.l.b16 %v1358
        %v1430 = vunpack.c.l.b16 %v1359
        %v1431 = vunpack.c.l.b16 %v1360
        %v1432 = vunpack.c.l.b16 %v1361
        %v1433 = vunpack.c.l.b16 %v1362
        %v1434 = vunpack.c.l.b16 %v1363
        %v1435 = vunpack.c.l.b16 %v1364
        %v1436 = vpack.c.b16 %v1405, %v1404
        %v1437 = vpack.c.b16 %v1407, %v1406
        %v1438 = vpack.c.b16 %v1409, %v1408
        %v1439 = vpack.c.b16 %v1411, %v1410
        %v1440 = vpack.c.b16 %v1413, %v1412
        %v1441 = vpack.c.b16 %v1415, %v1414
        %v1442 = vpack.c.b16 %v1417, %v1416
        %v1443 = vpack.c.b16 %v1419, %v1418
        %v1444 = vpack.c.b16 %v1421, %v1420
        %v1445 = vpack.c.b16 %v1423, %v1422
        %v1446 = vpack.c.b16 %v1425, %v1424
        %v1447 = vpack.c.b16 %v1427, %v1426
        %v1448 = vpack.c.b16 %v1429, %v1428
        %v1449 = vpack.c.b16 %v1431, %v1430
        %v1450 = vpack.c.b16 %v1433, %v1432
        %v1451 = vpack.c.b16 %v1435, %v1434
        %1468 = vmatprep.subr.bf16.mxu0 0
        %1469 = vmatpush1.bf16.msra.mxu0 %v1436
        %1470 = vmatprep.subr.bf16.mxu0 0
        %1471 = vmatpush1.bf16.msra.mxu0 %v1437
        %1472 = vmatprep.subr.bf16.mxu0 0
        %1473 = vmatpush1.bf16.msra.mxu0 %v1438
        %1474 = vmatprep.subr.bf16.mxu0 0
        %1475 = vmatpush1.bf16.msra.mxu0 %v1439
        %1476 = vmatprep.subr.bf16.mxu0 0
        %1477 = vmatpush1.bf16.msra.mxu0 %v1440
        %1478 = vmatprep.subr.bf16.mxu0 0
        %1479 = vmatpush1.bf16.msra.mxu0 %v1441
        %1480 = vmatprep.subr.bf16.mxu0 0
        %1481 = vmatpush1.bf16.msra.mxu0 %v1442
        %1482 = vmatprep.subr.bf16.mxu0 0
        %1483 = vmatpush1.bf16.msra.mxu0 %v1443
        %1484 = vmatprep.subr.bf16.mxu0 0
        %1485 = vmatpush1.bf16.msra.mxu0 %v1444
        %1486 = vmatprep.subr.bf16.mxu0 0
        %1487 = vmatpush1.bf16.msra.mxu0 %v1445
        %1488 = vmatprep.subr.bf16.mxu0 0
        %1489 = vmatpush1.bf16.msra.mxu0 %v1446
        %1490 = vmatprep.subr.bf16.mxu0 0
        %1491 = vmatpush1.bf16.msra.mxu0 %v1447
        %1492 = vmatprep.subr.bf16.mxu0 0
        %1493 = vmatpush1.bf16.msra.mxu0 %v1448
        %1494 = vmatprep.subr.bf16.mxu0 0
        %1495 = vmatpush1.bf16.msra.mxu0 %v1449
        %1496 = vmatprep.subr.bf16.mxu0 0
        %1497 = vmatpush1.bf16.msra.mxu0 %v1450
        %1498 = vmatprep.subr.bf16.mxu0 0
        %1499 = vmatpush1.bf16.msra.mxu0 %v1451
        %1500 = vmatprep.mubr.bf16.mxu0 %v1302
        %1501 = vmatmul.mubr.bf16.gmra.mrb[0].mxu0 %v1301
        %v1502 = vpop.f32.mrb[0].mxu0
        %v1503 = vadd.f32 %v1370, %v1502
        %v1504 = vpop.f32.mrb[0].mxu0
        %v1505 = vpop.f32.mrb[0].mxu0
        %v1506 = vadd.f32 %v1370, %v1505
        %v1507 = vpop.f32.mrb[0].mxu0
        %1508 = vmatprep.mubr.bf16.mxu0 %v1304
        %1509 = vmatmul.mubr.bf16.gmra.mrb[0].mxu0 %v1303
        %v1510 = vpop.f32.mrb[0].mxu0
        %v1511 = vadd.f32 %v1370, %v1510
        %v1512 = vpop.f32.mrb[0].mxu0
        %v1513 = vpop.f32.mrb[0].mxu0
        %v1514 = vadd.f32 %v1370, %v1513
        %v1515 = vpop.f32.mrb[0].mxu0
        %1516 = vmatprep.mubr.bf16.mxu0 %v1306
        %1517 = vmatmul.mubr.bf16.gmra.mrb[0].mxu0 %v1305
        %v1518 = vpop.f32.mrb[0].mxu0
        %v1519 = vadd.f32 %v1370, %v1518
        %v1520 = vpop.f32.mrb[0].mxu0
        %v1521 = vpop.f32.mrb[0].mxu0
        %v1522 = vadd.f32 %v1370, %v1521
        %v1523 = vpop.f32.mrb[0].mxu0
        %1524 = vmatprep.mubr.bf16.mxu0 %v1308
        %1525 = vmatmul.mubr.bf16.gmra.mrb[0].mxu0 %v1307
        %v1526 = vpop.f32.mrb[0].mxu0
        %v1527 = vadd.f32 %v1370, %v1526
        %v1528 = vpop.f32.mrb[0].mxu0
        %v1529 = vpop.f32.mrb[0].mxu0
        %v1530 = vadd.f32 %v1370, %v1529
        %v1531 = vpop.f32.mrb[0].mxu0
        %1532 = vmatprep.mubr.bf16.mxu0 %v1310
        %1533 = vmatmul.mubr.bf16.gmra.mrb[0].mxu0 %v1309
        %v1534 = vpop.f32.mrb[0].mxu0
        %v1535 = vadd.f32 %v1370, %v1534
        %v1536 = vpop.f32.mrb[0].mxu0
        %v1537 = vpop.f32.mrb[0].mxu0
        %v1538 = vadd.f32 %v1370, %v1537
        %v1539 = vpop.f32.mrb[0].mxu0
        %1540 = vmatprep.mubr.bf16.mxu0 %v1312
        %1541 = vmatmul.mubr.bf16.gmra.mrb[0].mxu0 %v1311
        %v1542 = vpop.f32.mrb[0].mxu0
        %v1543 = vadd.f32 %v1370, %v1542
        %v1544 = vpop.f32.mrb[0].mxu0
        %v1545 = vpop.f32.mrb[0].mxu0
        %v1546 = vadd.f32 %v1370, %v1545
        %v1547 = vpop.f32.mrb[0].mxu0
        %1548 = vmatprep.mubr.bf16.mxu0 %v1314
        %1549 = vmatmul.mubr.bf16.gmra.mrb[0].mxu0 %v1313
        %v1550 = vpop.f32.mrb[0].mxu0
        %v1551 = vadd.f32 %v1370, %v1550
        %v1552 = vpop.f32.mrb[0].mxu0
        %v1553 = vpop.f32.mrb[0].mxu0
        %v1554 = vadd.f32 %v1370, %v1553
        %v1555 = vpop.f32.mrb[0].mxu0
        %1556 = vmatprep.mubr.bf16.mxu0 %v1316
        %1557 = vmatmul.mubr.bf16.gmra.mrb[0].mxu0 %v1315
        %v1558 = vpop.f32.mrb[0].mxu0
        %v1559 = vadd.f32 %v1370, %v1558
        %v1560 = vpop.f32.mrb[0].mxu0
        %v1561 = vpop.f32.mrb[0].mxu0
        %v1562 = vadd.f32 %v1370, %v1561
        %v1563 = vpop.f32.mrb[0].mxu0
        %1564 = vmatprep.mubr.bf16.mxu0 %v1318
        %1565 = vmatmul.mubr.bf16.gmra.mrb[0].mxu0 %v1317
        %v1566 = vpop.f32.mrb[0].mxu0
        %v1567 = vadd.f32 %v1370, %v1566
        %v1568 = vpop.f32.mrb[0].mxu0
        %v1569 = vpop.f32.mrb[0].mxu0
        %v1570 = vadd.f32 %v1370, %v1569
        %v1571 = vpop.f32.mrb[0].mxu0
        %1572 = vmatprep.mubr.bf16.mxu0 %v1320
        %1573 = vmatmul.mubr.bf16.gmra.mrb[0].mxu0 %v1319
        %v1574 = vpop.f32.mrb[0].mxu0
        %v1575 = vadd.f32 %v1370, %v1574
        %v1576 = vpop.f32.mrb[0].mxu0
        %v1577 = vpop.f32.mrb[0].mxu0
        %v1578 = vadd.f32 %v1370, %v1577
        %v1579 = vpop.f32.mrb[0].mxu0
        %1580 = vmatprep.mubr.bf16.mxu0 %v1322
        %1581 = vmatmul.mubr.bf16.gmra.mrb[0].mxu0 %v1321
        %v1582 = vpop.f32.mrb[0].mxu0
        %v1583 = vadd.f32 %v1370, %v1582
        %v1584 = vpop.f32.mrb[0].mxu0
        %v1585 = vpop.f32.mrb[0].mxu0
        %v1586 = vadd.f32 %v1370, %v1585
        %v1587 = vpop.f32.mrb[0].mxu0
        %1588 = vmatprep.mubr.bf16.mxu0 %v1324
        %1589 = vmatmul.mubr.bf16.gmra.mrb[0].mxu0 %v1323
        %v1590 = vpop.f32.mrb[0].mxu0
        %v1591 = vadd.f32 %v1370, %v1590
        %v1592 = vpop.f32.mrb[0].mxu0
        %v1593 = vpop.f32.mrb[0].mxu0
        %v1594 = vadd.f32 %v1370, %v1593
        %v1595 = vpop.f32.mrb[0].mxu0
        %1596 = vmatprep.mubr.bf16.mxu0 %v1326
        %1597 = vmatmul.mubr.bf16.gmra.mrb[0].mxu0 %v1325
        %v1598 = vpop.f32.mrb[0].mxu0
        %v1599 = vadd.f32 %v1370, %v1598
        %v1600 = vpop.f32.mrb[0].mxu0
        %v1601 = vpop.f32.mrb[0].mxu0
        %v1602 = vadd.f32 %v1370, %v1601
        %v1603 = vpop.f32.mrb[0].mxu0
        %1604 = vmatprep.mubr.bf16.mxu0 %v1328
        %1605 = vmatmul.mubr.bf16.gmra.mrb[0].mxu0 %v1327
        %v1606 = vpop.f32.mrb[0].mxu0
        %v1607 = vadd.f32 %v1370, %v1606
        %v1608 = vpop.f32.mrb[0].mxu0
        %v1609 = vpop.f32.mrb[0].mxu0
        %v1610 = vadd.f32 %v1370, %v1609
        %v1611 = vpop.f32.mrb[0].mxu0
        %1612 = vmatprep.mubr.bf16.mxu0 %v1330
        %1613 = vmatmul.mubr.bf16.gmra.mrb[0].mxu0 %v1329
        %v1614 = vpop.f32.mrb[0].mxu0
        %v1615 = vadd.f32 %v1370, %v1614
        %v1616 = vpop.f32.mrb[0].mxu0
        %v1617 = vpop.f32.mrb[0].mxu0
        %v1618 = vadd.f32 %v1370, %v1617
        %v1619 = vpop.f32.mrb[0].mxu0
        %1620 = vmatprep.mubr.bf16.mxu0 %v1332
        %1621 = vmatmul.mubr.bf16.gmra.mrb[0].mxu0 %v1331
        %v1622 = vpop.f32.mrb[0].mxu0
        %v1623 = vadd.f32 %v1370, %v1622
        %v1624 = vpop.f32.mrb[0].mxu0
        %v1625 = vpop.f32.mrb[0].mxu0
        %v1626 = vadd.f32 %v1370, %v1625
        %v1627 = vpop.f32.mrb[0].mxu0
        %1628 = vdwg.mxu0
        %v1629 = vadd.f32 %v361, %v1503
        %v1630 = vadd.f32 %v362, %v1506
        %v1631 = vadd.f32 %v363, %v1511
        %v1632 = vadd.f32 %v364, %v1514
        %v1633 = vadd.f32 %v365, %v1519
        %v1634 = vadd.f32 %v366, %v1522
        %v1635 = vadd.f32 %v367, %v1527
        %v1636 = vadd.f32 %v368, %v1530
        %v1637 = vadd.f32 %v369, %v1535
        %v1638 = vadd.f32 %v370, %v1538
        %v1639 = vadd.f32 %v371, %v1543
        %v1640 = vadd.f32 %v372, %v1546
        %v1641 = vadd.f32 %v373, %v1551
        %v1642 = vadd.f32 %v374, %v1554
        %v1643 = vadd.f32 %v375, %v1559
        %v1644 = vadd.f32 %v376, %v1562
        %v1645 = vadd.f32 %v377, %v1567
        %v1646 = vadd.f32 %v378, %v1570
        %v1647 = vadd.f32 %v379, %v1575
        %v1648 = vadd.f32 %v380, %v1578
        %v1649 = vadd.f32 %v381, %v1583
        %v1650 = vadd.f32 %v382, %v1586
        %v1651 = vadd.f32 %v383, %v1591
        %v1652 = vadd.f32 %v384, %v1594
        %v1653 = vadd.f32 %v385, %v1599
        %v1654 = vadd.f32 %v386, %v1602
        %v1655 = vadd.f32 %v387, %v1607
        %v1656 = vadd.f32 %v388, %v1610
        %v1657 = vadd.f32 %v389, %v1615
        %v1658 = vadd.f32 %v390, %v1618
        %v1659 = vadd.f32 %v391, %v1623
        %v1660 = vadd.f32 %v392, %v1626
        %v1661 = vpack.c.bf16 %v1630, %v1629
        %v1662 = vpack.c.bf16 %v1632, %v1631
        %v1663 = vpack.c.bf16 %v1634, %v1633
        %v1664 = vpack.c.bf16 %v1636, %v1635
        %v1665 = vpack.c.bf16 %v1638, %v1637
        %v1666 = vpack.c.bf16 %v1640, %v1639
        %v1667 = vpack.c.bf16 %v1642, %v1641
        %v1668 = vpack.c.bf16 %v1644, %v1643
        %v1669 = vpack.c.bf16 %v1646, %v1645
        %v1670 = vpack.c.bf16 %v1648, %v1647
        %v1671 = vpack.c.bf16 %v1650, %v1649
        %v1672 = vpack.c.bf16 %v1652, %v1651
        %v1673 = vpack.c.bf16 %v1654, %v1653
        %v1674 = vpack.c.bf16 %v1656, %v1655
        %v1675 = vpack.c.bf16 %v1658, %v1657
        %v1676 = vpack.c.bf16 %v1660, %v1659
        %v1693 = vunpack.c.l.b16 %v1661
        %v1694 = vunpack.c.h.b16 %v1661
        %v1695 = vunpack.c.l.b16 %v1662
        %v1696 = vunpack.c.h.b16 %v1662
        %v1697 = vunpack.c.l.b16 %v1663
        %v1698 = vunpack.c.h.b16 %v1663
        %v1699 = vunpack.c.l.b16 %v1664
        %v1700 = vunpack.c.h.b16 %v1664
        %v1701 = vunpack.c.l.b16 %v1665
        %v1702 = vunpack.c.h.b16 %v1665
        %v1703 = vunpack.c.l.b16 %v1666
        %v1704 = vunpack.c.h.b16 %v1666
        %v1705 = vunpack.c.l.b16 %v1667
        %v1706 = vunpack.c.h.b16 %v1667
        %v1707 = vunpack.c.l.b16 %v1668
        %v1708 = vunpack.c.h.b16 %v1668
        %v1709 = vunpack.c.l.b16 %v1669
        %v1710 = vunpack.c.h.b16 %v1669
        %v1711 = vunpack.c.l.b16 %v1670
        %v1712 = vunpack.c.h.b16 %v1670
        %v1713 = vunpack.c.l.b16 %v1671
        %v1714 = vunpack.c.h.b16 %v1671
        %v1715 = vunpack.c.l.b16 %v1672
        %v1716 = vunpack.c.h.b16 %v1672
        %v1717 = vunpack.c.l.b16 %v1673
        %v1718 = vunpack.c.h.b16 %v1673
        %v1719 = vunpack.c.l.b16 %v1674
        %v1720 = vunpack.c.h.b16 %v1674
        %v1721 = vunpack.c.l.b16 %v1675
        %v1722 = vunpack.c.h.b16 %v1675
        %v1723 = vunpack.c.l.b16 %v1676
        %v1724 = vunpack.c.h.b16 %v1676
        %v1725 = vpack.c.b16 %v1693, %v1693
        %v1726 = vpack.c.b16 %v1694, %v1694
        %v1727 = vpack.c.b16 %v1695, %v1695
        %v1728 = vpack.c.b16 %v1696, %v1696
        %v1729 = vpack.c.b16 %v1697, %v1697
        %v1730 = vpack.c.b16 %v1698, %v1698
        %v1731 = vpack.c.b16 %v1699, %v1699
        %v1732 = vpack.c.b16 %v1700, %v1700
        %v1733 = vpack.c.b16 %v1701, %v1701
        %v1734 = vpack.c.b16 %v1702, %v1702
        %v1735 = vpack.c.b16 %v1703, %v1703
        %v1736 = vpack.c.b16 %v1704, %v1704
        %v1737 = vpack.c.b16 %v1705, %v1705
        %v1738 = vpack.c.b16 %v1706, %v1706
        %v1739 = vpack.c.b16 %v1707, %v1707
        %v1740 = vpack.c.b16 %v1708, %v1708
        %v1741 = vpack.c.b16 %v1709, %v1709
        %v1742 = vpack.c.b16 %v1710, %v1710
        %v1743 = vpack.c.b16 %v1711, %v1711
        %v1744 = vpack.c.b16 %v1712, %v1712
        %v1745 = vpack.c.b16 %v1713, %v1713
        %v1746 = vpack.c.b16 %v1714, %v1714
        %v1747 = vpack.c.b16 %v1715, %v1715
        %v1748 = vpack.c.b16 %v1716, %v1716
        %v1749 = vpack.c.b16 %v1717, %v1717
        %v1750 = vpack.c.b16 %v1718, %v1718
        %v1751 = vpack.c.b16 %v1719, %v1719
        %v1752 = vpack.c.b16 %v1720, %v1720
        %v1753 = vpack.c.b16 %v1721, %v1721
        %v1754 = vpack.c.b16 %v1722, %v1722
        %v1755 = vpack.c.b16 %v1723, %v1723
        %v1756 = vpack.c.b16 %v1724, %v1724
        %1789 = vst [vmem:[%s325] sm:$0xf] %v1725
        %1790 = vst [vmem:[%s325 + $0x4] sm:$0xf] %v1726
        %1791 = vst [vmem:[%s325 + $0x8] sm:$0xf] %v1727
        %1792 = vst [vmem:[%s325 + $0xc] sm:$0xf] %v1728
        %1793 = vst [vmem:[%s325 + $0x10] sm:$0xf] %v1729
        %1794 = vst [vmem:[%s325 + $0x14] sm:$0xf] %v1730
        %1795 = vst [vmem:[%s325 + $0x18] sm:$0xf] %v1731
        %1796 = vst [vmem:[%s325 + $0x1c] sm:$0xf] %v1732
        %1797 = vst [vmem:[%s325 + $0x20] sm:$0xf] %v1733
        %1798 = vst [vmem:[%s325 + $0x24] sm:$0xf] %v1734
        %1799 = vst [vmem:[%s325 + $0x28] sm:$0xf] %v1735
        %1800 = vst [vmem:[%s325 + $0x2c] sm:$0xf] %v1736
        %1801 = vst [vmem:[%s325 + $0x30] sm:$0xf] %v1737
        %1802 = vst [vmem:[%s325 + $0x34] sm:$0xf] %v1738
        %1803 = vst [vmem:[%s325 + $0x38] sm:$0xf] %v1739
        %1804 = vst [vmem:[%s325 + $0x3c] sm:$0xf] %v1740
        %1805 = vst [vmem:[%s325 + $0x40] sm:$0xf] %v1741
        %1806 = vst [vmem:[%s325 + $0x44] sm:$0xf] %v1742
        %1807 = vst [vmem:[%s325 + $0x48] sm:$0xf] %v1743
        %1808 = vst [vmem:[%s325 + $0x4c] sm:$0xf] %v1744
        %1809 = vst [vmem:[%s325 + $0x50] sm:$0xf] %v1745
        %1810 = vst [vmem:[%s325 + $0x54] sm:$0xf] %v1746
        %1811 = vst [vmem:[%s325 + $0x58] sm:$0xf] %v1747
        %1812 = vst [vmem:[%s325 + $0x5c] sm:$0xf] %v1748
        %1813 = vst [vmem:[%s325 + $0x60] sm:$0xf] %v1749
        %1814 = vst [vmem:[%s325 + $0x64] sm:$0xf] %v1750
        %1815 = vst [vmem:[%s325 + $0x68] sm:$0xf] %v1751
        %1816 = vst [vmem:[%s325 + $0x6c] sm:$0xf] %v1752
        %1817 = vst [vmem:[%s325 + $0x70] sm:$0xf] %v1753
        %1818 = vst [vmem:[%s325 + $0x74] sm:$0xf] %v1754
        %1819 = vst [vmem:[%s325 + $0x78] sm:$0xf] %v1755
        %1820 = vst [vmem:[%s325 + $0x7c] sm:$0xf] %v1756
        %s1821 = sand.u32 %s185, 1
        %s1822 = scalar_lea.sflag [#allocation4], %s1821
        %s1823 = sand.u32 %s185, 1
        %s1824 = smul.addr %s1823, 128
        %s1825 = scalar_lea.vmem [#allocation8], %s1824
        // Predicated region
        $region61: #{tpu_custom_call.1} parent=47 // pred_check
          %p1826 = pneg %p195
        $region62: #{tpu_custom_call.1} parent=47 // pred_check_branch
          %1828 = sbr.rel (%p1826) target = $region64
        $region63: #{tpu_custom_call.1} parent=47 // pred_region
          %s1829 = smul.u32 32, %s25
          %s1831 = ssub.s32 2048, 2048
          %1832 = vsyncadd %s1822, %s1831
          %s1833 = smul.addr %s1829, 64
          %s1834 = scalar_lea.hbm %s7, %s1833
          %s1835 = sshll.u32 %s1825, 4
          %s1836 = int_to_ptr.vmem [resolvable:$true] %s1835
          %1841 = dma.vmem_to_hbm [thread:$0]  %s1836, 2048, %s1834, %s1822, 64, 64, 4
        $region64: #{tpu_custom_call.1} parent=47 // pred_fallthru
          _
      $region48: #{tpu_custom_call.1} parent=5 // pred_fallthru
        _
      %p1842 = scmp.le.s32.totalorder 2, %s20
      // Predicated region
      $region65: #{tpu_custom_call.1} parent=5 // pred_check
        %p1843 = pneg %p1842
      $region66: #{tpu_custom_call.1} parent=5 // pred_check_branch
        %1845 = sbr.rel (%p1843) target = $region68
      $region67: #{tpu_custom_call.1} parent=5 // pred_region
        %s1846 = ssub.s32 %s20, 2
        // Predicated region
        $region69: #{tpu_custom_call.1} parent=67 // pred_check
          %p1847 = pneg %p201
        $region70: #{tpu_custom_call.1} parent=67 // pred_check_branch
          %1849 = sbr.rel (%p1847) target = $region72
        $region71: #{tpu_custom_call.1} parent=67 // pred_region
          %s1850 = sand.u32 %s186, 1
          %s1851 = scalar_lea.sflag [#allocation4], %s1850
          %s1852 = sand.u32 %s186, 1
          %s1853 = smul.addr %s1852, 128
          %s1854 = scalar_lea.vmem [#allocation8], %s1853
          %1855 = dma.done %s1851, 2048
        $region72: #{tpu_custom_call.1} parent=67 // pred_fallthru
          _
      $region68: #{tpu_custom_call.1} parent=5 // pred_fallthru
        _
    $region6: #{tpu_custom_call.1} parent=1 // loop_footer
      %s24 = sadd.s32 1, %s20
    $region7: #{tpu_custom_call.1} parent=1 // loop_footer_branch
      %19 = sbr.rel target = $region3
    $region8: #{tpu_custom_call.1} parent=1 // loop_exit
      _
    %1856 = vsyncpa [#allocation3], 1
    %s1857 = scalar_lea.sflag [#allocation3], 1
    %1858 = vsyncpa %s1857, 1
    %1859 = vsyncpa [#allocation6], 1
    %1860 = vsyncpa [#allocation4], 1
    %s1861 = scalar_lea.sflag [#allocation4], 1
    %1862 = vsyncpa %s1861, 1

</llo_original>
